<compile_context>
chip_gen: v7x
topology: tpu7x:2x2x1
jax: 0.10.0
libtpu: 0.0.40
codegen_flags: <defaults>
</compile_context>

<pallas_src>
import functools

import jax
import jax.numpy as jnp
from jax.experimental import pallas as pl
from jax.experimental.pallas import tpu as pltpu


# ----------------------------- config ("args") ------------------------------
class Args:
    word_vocab_size = 100
    word_dim = 32
    char_vocab_size = 50
    char_dim = 8
    max_word_len = 8
    FILTER_SIZES = (2, 3)
    num_feature_maps = 16
    hidden_dim = 32
    num_layers = 2
    num_heads = 2
    class_size = 3
    no_char_emb = False


# ------------------------------ fused kernel --------------------------------
def _nn4snli_kernel(*refs, T, BP, B, H, num_layers, filter_sizes, F, MW,
                    num_heads):
    """Whole NN4SNLI forward in one kernel.

    Row layout of every (N=T*BP, .) tensor is time-major: row = t*BP + b with
    b in [0,B) = premise, [B,2B) = hypothesis, [2B,BP) = sublane padding.
    """
    G = 8 * H                      # fused gate width: 4 gates x 2 directions x H
    it = iter(refs)
    word_ref = next(it)            # (N, word_dim) f32
    char_ref = next(it)            # (N, MW*char_dim) bf16
    lmask_ref = next(it)           # (N, 1) f32  t < length (pack semantics)
    smask_ref = next(it)           # (N, 1) f32  t < sentence max (softmax range)
    sel_ref = next(it)             # (2B, N) f32 0/1 per-sentence selection
    wtoe_ref = next(it)            # (MW*CD, sum_fs L_fs*F) bf16 block-Toeplitz
    btoe_ref = next(it)            # (1, sum_fs L_fs*F) f32
    lstm_refs = []
    for i in range(num_layers):
        if i == 0:
            wih, b, whh = next(it), next(it), next(it)
            lstm_refs.append((wih, None, b, whh))
        else:
            lstm_refs.append((next(it), next(it), next(it), next(it)))
    s2t_w1_ref = next(it)
    s2t_b1_ref = next(it)
    s2t_w2_ref = next(it)
    s2t_b2_ref = next(it)
    fc1_w_ref = next(it)
    fc1_b_ref = next(it)
    fc2_wa_ref = next(it)
    fc2_wb_ref = next(it)
    fc2_b_ref = next(it)
    fco_w_ref = next(it)
    fco_b_ref = next(it)
    out_ref = next(it)
    buf_refs = [next(it) for _ in range(num_layers)]   # per-layer (N, 2H) scratch

    lstm_mask = lmask_ref[...]                         # (N, 1)

    # ---------------- CharCNN: one block-Toeplitz matmul ----------------
    conv = jnp.dot(char_ref[...], wtoe_ref[...],
                   preferred_element_type=jnp.float32) + btoe_ref[...]
    conv = jnp.maximum(conv, 0.0)
    feats = []
    off = 0
    for fs in filter_sizes:
        L = MW - fs + 1
        acc = conv[:, off:off + F]
        for l in range(1, L):                          # segmented max (VPU only)
            acc = jnp.maximum(acc, conv[:, off + l * F:off + (l + 1) * F])
        feats.append(acc)
        off += L * F
    x_emb = jnp.concatenate([word_ref[...]] + feats, axis=1)   # (N, emb_dim) f32
    x_emb_bf = x_emb.astype(jnp.bfloat16)

    # ------------- stacked BiLSTM (both directions fused) ---------------
    lane_g = jax.lax.broadcasted_iota(jnp.int32, (1, G), 1)
    is_g = (lane_g >= 4 * H) & (lane_g < 6 * H)        # tanh (cell-input) columns
    lane_h = jax.lax.broadcasted_iota(jnp.int32, (1, 2 * H), 1)
    col_fwd = lane_h < H                               # fwd half of h/c columns

    prev_bf = None
    for li, (wx_ref, wh_ref, b_ref, whh_ref) in enumerate(lstm_refs):
        # hoisted input projection for ALL rows and BOTH directions (1-2 matmuls)
        g = jnp.dot(x_emb_bf, wx_ref[...],
                    preferred_element_type=jnp.float32) + b_ref[...]
        if wh_ref is not None:
            g = g + jnp.dot(prev_bf, wh_ref[...],
                            preferred_element_type=jnp.float32)
        gf = g[:, 0:G]                                 # fwd-direction x-gates
        gb = g[:, G:2 * G]                             # bwd-direction x-gates
        whh = whh_ref[...]                             # (2H, G) block-diag bf16
        buf = buf_refs[li]
        h = jnp.zeros((BP, 2 * H), jnp.float32)        # [h_fwd | h_bwd]
        c = jnp.zeros((BP, 2 * H), jnp.float32)
        for s in range(T):                             # static unroll, T is small
            rf = slice(s * BP, (s + 1) * BP)           # fwd reads time s
            rb = slice((T - 1 - s) * BP, (T - s) * BP)  # bwd reads time T-1-s
            gates = gf[rf] + gb[rb] + jnp.dot(
                h.astype(jnp.bfloat16), whh, preferred_element_type=jnp.float32)
            act = jnp.where(is_g, jnp.tanh(gates), jax.nn.sigmoid(gates))
            i_g = act[:, 0:2 * H]
            f_g = act[:, 2 * H:4 * H]
            g_g = act[:, 4 * H:6 * H]
            o_g = act[:, 6 * H:8 * H]
            c_new = f_g * c + i_g * g_g
            h_new = o_g * jnp.tanh(c_new)
            valid = jnp.where(col_fwd, lstm_mask[rf], lstm_mask[rb]) > 0.0
            h = jnp.where(valid, h_new, h)             # pack: freeze state past len
            c = jnp.where(valid, c_new, c)
            out_t = jnp.where(valid, h_new, 0.0)       # unpack: zeros past len
            buf[rf, 0:H] = out_t[:, 0:H]               # fwd half at time s
            buf[rb, H:2 * H] = out_t[:, H:2 * H]       # bwd half at time T-1-s
        prev_bf = buf[...].astype(jnp.bfloat16)

    x_enc = buf_refs[num_layers - 1][...]              # (N, 2H) f32

    # ------------- s2tSA: all heads, both sentences at once -------------
    x_bf = x_enc.astype(jnp.bfloat16)
    f1 = jnp.maximum(
        jnp.dot(x_bf, s2t_w1_ref[...], preferred_element_type=jnp.float32)
        + s2t_b1_ref[...], 0.0)                        # (N, nh*H)
    logit = (jnp.dot(f1.astype(jnp.bfloat16), s2t_w2_ref[...],
                     preferred_element_type=jnp.float32)
             + s2t_b2_ref[...])                        # (N, nh*2H)
    logit = logit - jnp.max(logit, axis=0, keepdims=True)   # per-col shift (safe)
    e = jnp.exp(logit) * smask_ref[...]                # zero rows past sentence max
    x_rep = jnp.concatenate([x_enc] * num_heads, axis=1)     # (N, nh*2H)
    sel = sel_ref[...]
    denom = jnp.dot(sel, e, preferred_element_type=jnp.float32)        # (2B, nh*2H)
    numer = jnp.dot(sel, e * x_rep, preferred_element_type=jnp.float32)
    v = numer / denom                                  # (2B, nh*2H)
    v_p = v[0:B]
    v_h = v[B:2 * B]

    # --------------------------- classifier -----------------------------
    vcat = jnp.concatenate([v_p, v_h, jnp.abs(v_p - v_h), v_p * v_h], axis=1)
    vcat_bf = vcat.astype(jnp.bfloat16)
    h1 = jnp.maximum(
        jnp.dot(vcat_bf, fc1_w_ref[...], preferred_element_type=jnp.float32)
        + fc1_b_ref[...], 0.0)
    # fc2(cat([v, h1])) == v @ W2a + h1 @ W2b + b2  (W2 pre-split at init)
    h2 = jnp.maximum(
        jnp.dot(vcat_bf, fc2_wa_ref[...], preferred_element_type=jnp.float32)
        + jnp.dot(h1.astype(jnp.bfloat16), fc2_wb_ref[...],
                  preferred_element_type=jnp.float32)
        + fc2_b_ref[...], 0.0)
    out_ref[...] = (jnp.dot(h2.astype(jnp.bfloat16), fco_w_ref[...],
                            preferred_element_type=jnp.float32)
                    + fco_b_ref[...])


# ------------------------------- parameters ----------------------------------
def _fuse_gate_cols(wf, wb, H):
    # (rows, 4H) fwd/bwd weights in PyTorch gate order [i,f,g,o] -> (rows, 8H)
    # with per-gate [fwd | bwd] column interleave.
    pieces = []
    for k in range(4):
        pieces.append(wf[:, k * H:(k + 1) * H])
        pieces.append(wb[:, k * H:(k + 1) * H])
    return jnp.concatenate(pieces, axis=1)


def init_params(key, args):
    H = args.hidden_dim
    F = args.num_feature_maps
    CD = args.char_dim
    MW = args.max_word_len
    nh = args.num_heads
    G = 8 * H
    keys = iter(jax.random.split(key, 128))

    def nrm(shape, scale=0.1):
        return (scale * jax.random.normal(next(keys), shape)).astype(jnp.float32)

    p = {}
    p['word_emb'] = nrm((args.word_vocab_size, args.word_dim), 1.0)
    p['char_emb'] = nrm((args.char_vocab_size, CD), 1.0).at[0].set(0.0)  # pad idx 0

    # CharCNN -> block-Toeplitz weight: window l of filter fs occupies its own
    # output column block; the in-kernel segmented max reproduces max_pool1d.
    tot = sum((MW - fs + 1) * F for fs in args.FILTER_SIZES)
    w_toe = jnp.zeros((MW * CD, tot), jnp.float32)
    b_toe = jnp.zeros((1, tot), jnp.float32)
    off = 0
    for fs in args.FILTER_SIZES:
        L = MW - fs + 1
        w = nrm((fs * CD, F))          # conv weight, pre-transposed
        b = nrm((1, F))
        for l in range(L):
            w_toe = w_toe.at[l * CD:l * CD + fs * CD,
                             off + l * F:off + (l + 1) * F].set(w)
            b_toe = b_toe.at[:, off + l * F:off + (l + 1) * F].set(b)
        off += L * F
    p['w_toe'] = w_toe.astype(jnp.bfloat16)
    p['b_toe'] = b_toe

    emb_dim = args.word_dim + len(args.FILTER_SIZES) * F
    lstm = []
    for i in range(args.num_layers):
        in_dim = emb_dim if i == 0 else emb_dim + 2 * H
        wih_f, wih_b = nrm((in_dim, 4 * H)), nrm((in_dim, 4 * H))
        whh_f, whh_b = nrm((H, 4 * H)), nrm((H, 4 * H))
        bias_f = nrm((1, 4 * H)) + nrm((1, 4 * H))     # b_ih + b_hh (fwd)
        bias_b = nrm((1, 4 * H)) + nrm((1, 4 * H))     # b_ih + b_hh (bwd)
        z_in = jnp.zeros_like(wih_f)
        z_h = jnp.zeros_like(whh_f)
        # [fwd-only | bwd-only] stacked along columns -> one x-projection matmul
        wih_fb = jnp.concatenate([_fuse_gate_cols(wih_f, z_in, H),
                                  _fuse_gate_cols(z_in, wih_b, H)], axis=1)
        # block-diagonal recurrent weight (h_fwd rows feed fwd gate cols only)
        whh = jnp.concatenate([_fuse_gate_cols(whh_f, z_h, H),
                               _fuse_gate_cols(z_h, whh_b, H)], axis=0)
        bias = jnp.concatenate([_fuse_gate_cols(bias_f, bias_b, H),
                                jnp.zeros((1, G), jnp.float32)], axis=1)
        layer = {'b': bias, 'whh': whh.astype(jnp.bfloat16)}
        if i == 0:
            layer['wih'] = wih_fb.astype(jnp.bfloat16)
        else:
            layer['wihx'] = wih_fb[:emb_dim].astype(jnp.bfloat16)   # emb part
            layer['wihh'] = wih_fb[emb_dim:].astype(jnp.bfloat16)   # prev-out part
        lstm.append(layer)
    p['lstm'] = lstm

    # s2tSA heads: fc1 weights concatenated along cols, fc2 block-diagonal.
    p['s2t_w1'] = jnp.concatenate([nrm((2 * H, H)) for _ in range(nh)],
                                  axis=1).astype(jnp.bfloat16)
    p['s2t_b1'] = jnp.concatenate([nrm((1, H)) for _ in range(nh)], axis=1)
    w2 = jnp.zeros((nh * H, nh * 2 * H), jnp.float32)
    b2 = jnp.zeros((1, nh * 2 * H), jnp.float32)
    for i in range(nh):
        w2 = w2.at[i * H:(i + 1) * H,
                   i * 2 * H:(i + 1) * 2 * H].set(nrm((H, 2 * H)))
        b2 = b2.at[:, i * 2 * H:(i + 1) * 2 * H].set(nrm((1, 2 * H)))
    p['s2t_w2'] = w2.astype(jnp.bfloat16)
    p['s2t_b2'] = b2

    Dv = nh * 4 * 2 * H
    p['fc1_w'] = nrm((Dv, H)).astype(jnp.bfloat16)
    p['fc1_b'] = nrm((1, H))
    p['fc2_wa'] = nrm((Dv, H)).astype(jnp.bfloat16)    # fc2 weight split: v part
    p['fc2_wb'] = nrm((H, H)).astype(jnp.bfloat16)     # fc2 weight split: h1 part
    p['fc2_b'] = nrm((1, H))
    p['fc_out_w'] = nrm((H, args.class_size)).astype(jnp.bfloat16)
    p['fc_out_b'] = nrm((1, args.class_size))
    return p


# --------------------------------- forward -----------------------------------
def nn4snli_forward(args, params, p_idx, p_len, h_idx, h_len, char_p, char_h):
    B, Tp = p_idx.shape
    _, Th = h_idx.shape
    T = max(Tp, Th)
    twoB = 2 * B
    BP = ((twoB + 7) // 8) * 8        # pad the folded batch to full sublanes
    N = T * BP
    H = args.hidden_dim
    MW = args.max_word_len
    CD = args.char_dim

    # ---------------------- XLA glue (fuses under jit) -----------------------
    # TODO(synk): nn.Embedding gathers stay as plain JAX indexing; a Pallas DMA
    # gather is unnecessary at these sizes.
    word_p = jnp.pad(params['word_emb'][p_idx], ((0, 0), (0, T - Tp), (0, 0)))
    word_h = jnp.pad(params['word_emb'][h_idx], ((0, 0), (0, T - Th), (0, 0)))
    word_all = jnp.pad(jnp.concatenate([word_p, word_h], axis=0),
                       ((0, BP - twoB), (0, 0), (0, 0)))          # (BP, T, wd)
    word_x = jnp.transpose(word_all, (1, 0, 2)).reshape(N, args.word_dim)

    char_all = jnp.pad(
        jnp.concatenate([jnp.pad(char_p, ((0, 0), (0, T - Tp), (0, 0))),
                         jnp.pad(char_h, ((0, 0), (0, T - Th), (0, 0)))], axis=0),
        ((0, BP - twoB), (0, 0), (0, 0)))                         # (BP, T, MW)
    char_ids = jnp.transpose(char_all, (1, 0, 2)).reshape(N, MW)
    char_x = params['char_emb'][char_ids].reshape(N, MW * CD).astype(jnp.bfloat16)

    len_all = jnp.pad(jnp.concatenate([p_len, h_len], axis=0), (0, BP - twoB))
    t_idx = jnp.arange(T)[:, None]
    lstm_mask = (t_idx < len_all[None, :]).astype(jnp.float32).reshape(N, 1)
    sent_max = jnp.where(jnp.arange(BP) < B, jnp.max(p_len), jnp.max(h_len))
    s2t_mask = (t_idx < sent_max[None, :]).astype(jnp.float32).reshape(N, 1)
    sel = jnp.tile(jnp.eye(twoB, BP, dtype=jnp.float32), (1, T))  # (2B, N)

    lstm_args = []
    for i, lw in enumerate(params['lstm']):
        if i == 0:
            lstm_args += [lw['wih'], lw['b'], lw['whh']]
        else:
            lstm_args += [lw['wihx'], lw['wihh'], lw['b'], lw['whh']]

    kernel = functools.partial(
        _nn4snli_kernel, T=T, BP=BP, B=B, H=H, num_layers=args.num_layers,
        filter_sizes=tuple(args.FILTER_SIZES), F=args.num_feature_maps,
        MW=MW, num_heads=args.num_heads)

    return pl.pallas_call(
        kernel,
        out_shape=jax.ShapeDtypeStruct((B, args.class_size), jnp.float32),
        scratch_shapes=[pltpu.VMEM((N, 2 * H), jnp.float32)
                        for _ in range(args.num_layers)],
    )(word_x, char_x, lstm_mask, s2t_mask, sel,
      params['w_toe'], params['b_toe'],
      *lstm_args,
      params['s2t_w1'], params['s2t_b1'], params['s2t_w2'], params['s2t_b2'],
      params['fc1_w'], params['fc1_b'],
      params['fc2_wa'], params['fc2_wb'], params['fc2_b'],
      params['fc_out_w'], params['fc_out_b'])


# ----------------------------------- main -------------------------------------
if __name__ == "__main__":
    args = Args()
    key = jax.random.PRNGKey(0)
    pkey, dkey = jax.random.split(key)
    params = init_params(pkey, args)

    k1, k2, k3, k4 = jax.random.split(dkey, 4)
    B, Tp, Th = 2, 6, 5
    p_idx = jax.random.randint(k1, (B, Tp), 1, args.word_vocab_size)
    h_idx = jax.random.randint(k2, (B, Th), 1, args.word_vocab_size)
    char_p = jax.random.randint(k3, (B, Tp, args.max_word_len), 0,
                                args.char_vocab_size)
    char_h = jax.random.randint(k4, (B, Th, args.max_word_len), 0,
                                args.char_vocab_size)
    p_len = jnp.array([Tp, 4], dtype=jnp.int32)   # max length == padded length
    h_len = jnp.array([Th, 3], dtype=jnp.int32)

    fwd = jax.jit(functools.partial(nn4snli_forward, args))
    out = fwd(params, p_idx, p_len, h_idx, h_len, char_p, char_h)
    out = jax.block_until_ready(out)
    assert out.shape == (B, args.class_size) and out.dtype == jnp.float32
    print("KERNEL_OK")
</pallas_src>

<mosaic_0001>
module attributes {stable_mosaic.version = 11 : i64} {
  func.func @_nn4snli_kernel(%arg0: memref<48x32xf32, #tpu.memory_space<vmem>>, %arg1: memref<48x64xbf16, #tpu.memory_space<vmem>>, %arg2: memref<48x1xf32, #tpu.memory_space<vmem>>, %arg3: memref<48x1xf32, #tpu.memory_space<vmem>>, %arg4: memref<4x48xf32, #tpu.memory_space<vmem>>, %arg5: memref<64x208xbf16, #tpu.memory_space<vmem>>, %arg6: memref<1x208xf32, #tpu.memory_space<vmem>>, %arg7: memref<64x512xbf16, #tpu.memory_space<vmem>>, %arg8: memref<1x512xf32, #tpu.memory_space<vmem>>, %arg9: memref<64x256xbf16, #tpu.memory_space<vmem>>, %arg10: memref<64x512xbf16, #tpu.memory_space<vmem>>, %arg11: memref<64x512xbf16, #tpu.memory_space<vmem>>, %arg12: memref<1x512xf32, #tpu.memory_space<vmem>>, %arg13: memref<64x256xbf16, #tpu.memory_space<vmem>>, %arg14: memref<64x64xbf16, #tpu.memory_space<vmem>>, %arg15: memref<1x64xf32, #tpu.memory_space<vmem>>, %arg16: memref<64x128xbf16, #tpu.memory_space<vmem>>, %arg17: memref<1x128xf32, #tpu.memory_space<vmem>>, %arg18: memref<512x32xbf16, #tpu.memory_space<vmem>>, %arg19: memref<1x32xf32, #tpu.memory_space<vmem>>, %arg20: memref<512x32xbf16, #tpu.memory_space<vmem>>, %arg21: memref<32x32xbf16, #tpu.memory_space<vmem>>, %arg22: memref<1x32xf32, #tpu.memory_space<vmem>>, %arg23: memref<32x3xbf16, #tpu.memory_space<vmem>>, %arg24: memref<1x3xf32, #tpu.memory_space<vmem>>, %arg25: memref<2x3xf32, #tpu.memory_space<vmem>>, %arg26: memref<48x64xf32, #tpu.memory_space<vmem>>, %arg27: memref<48x64xf32, #tpu.memory_space<vmem>>) attributes {dimension_semantics = [], scalar_prefetch = 0 : i64, scratch_operands = 2 : i64, tpu.core_type = #tpu.core_type<tc>} {
    %c0 = arith.constant 0 : index
    %c0_0 = arith.constant 0 : index
    %0 = vector.load %arg2[%c0, %c0_0] : memref<48x1xf32, #tpu.memory_space<vmem>>, vector<48x1xf32>
    %c0_1 = arith.constant 0 : index
    %c0_2 = arith.constant 0 : index
    %1 = vector.load %arg1[%c0_1, %c0_2] : memref<48x64xbf16, #tpu.memory_space<vmem>>, vector<48x64xbf16>
    %c0_3 = arith.constant 0 : index
    %c0_4 = arith.constant 0 : index
    %2 = vector.load %arg5[%c0_3, %c0_4] : memref<64x208xbf16, #tpu.memory_space<vmem>>, vector<64x208xbf16>
    %cst = arith.constant dense<0.000000e+00> : vector<48x208xf32>
    %3 = tpu.matmul %1, %2, %cst {dimension_numbers = #tpu.dot_dimension_numbers<[1], [0], [0], [1], [0, 0, 1, 1], [], []>} : vector<48x64xbf16>, vector<64x208xbf16>, vector<48x208xf32> -> vector<48x208xf32>
    %c0_5 = arith.constant 0 : index
    %c0_6 = arith.constant 0 : index
    %4 = vector.load %arg6[%c0_5, %c0_6] : memref<1x208xf32, #tpu.memory_space<vmem>>, vector<1x208xf32>
    %5 = vector.broadcast %4 : vector<1x208xf32> to vector<48x208xf32>
    %6 = arith.addf %3, %5 : vector<48x208xf32>
    %cst_7 = arith.constant 0.000000e+00 : f32
    %7 = vector.broadcast %cst_7 : f32 to vector<48x208xf32>
    %8 = arith.maximumf %6, %7 : vector<48x208xf32>
    %9 = vector.extract_strided_slice %8 {offsets = [0, 0], sizes = [48, 16], strides = [1, 1]} : vector<48x208xf32> to vector<48x16xf32>
    %10 = vector.extract_strided_slice %8 {offsets = [0, 16], sizes = [48, 16], strides = [1, 1]} : vector<48x208xf32> to vector<48x16xf32>
    %11 = arith.maximumf %9, %10 : vector<48x16xf32>
    %12 = vector.extract_strided_slice %8 {offsets = [0, 32], sizes = [48, 16], strides = [1, 1]} : vector<48x208xf32> to vector<48x16xf32>
    %13 = arith.maximumf %11, %12 : vector<48x16xf32>
    %14 = vector.extract_strided_slice %8 {offsets = [0, 48], sizes = [48, 16], strides = [1, 1]} : vector<48x208xf32> to vector<48x16xf32>
    %15 = arith.maximumf %13, %14 : vector<48x16xf32>
    %16 = vector.extract_strided_slice %8 {offsets = [0, 64], sizes = [48, 16], strides = [1, 1]} : vector<48x208xf32> to vector<48x16xf32>
    %17 = arith.maximumf %15, %16 : vector<48x16xf32>
    %18 = vector.extract_strided_slice %8 {offsets = [0, 80], sizes = [48, 16], strides = [1, 1]} : vector<48x208xf32> to vector<48x16xf32>
    %19 = arith.maximumf %17, %18 : vector<48x16xf32>
    %20 = vector.extract_strided_slice %8 {offsets = [0, 96], sizes = [48, 16], strides = [1, 1]} : vector<48x208xf32> to vector<48x16xf32>
    %21 = arith.maximumf %19, %20 : vector<48x16xf32>
    %22 = vector.extract_strided_slice %8 {offsets = [0, 112], sizes = [48, 16], strides = [1, 1]} : vector<48x208xf32> to vector<48x16xf32>
    %23 = vector.extract_strided_slice %8 {offsets = [0, 128], sizes = [48, 16], strides = [1, 1]} : vector<48x208xf32> to vector<48x16xf32>
    %24 = arith.maximumf %22, %23 : vector<48x16xf32>
    %25 = vector.extract_strided_slice %8 {offsets = [0, 144], sizes = [48, 16], strides = [1, 1]} : vector<48x208xf32> to vector<48x16xf32>
    %26 = arith.maximumf %24, %25 : vector<48x16xf32>
    %27 = vector.extract_strided_slice %8 {offsets = [0, 160], sizes = [48, 16], strides = [1, 1]} : vector<48x208xf32> to vector<48x16xf32>
    %28 = arith.maximumf %26, %27 : vector<48x16xf32>
    %29 = vector.extract_strided_slice %8 {offsets = [0, 176], sizes = [48, 16], strides = [1, 1]} : vector<48x208xf32> to vector<48x16xf32>
    %30 = arith.maximumf %28, %29 : vector<48x16xf32>
    %31 = vector.extract_strided_slice %8 {offsets = [0, 192], sizes = [48, 16], strides = [1, 1]} : vector<48x208xf32> to vector<48x16xf32>
    %32 = arith.maximumf %30, %31 : vector<48x16xf32>
    %c0_8 = arith.constant 0 : index
    %c0_9 = arith.constant 0 : index
    %33 = vector.load %arg0[%c0_8, %c0_9] : memref<48x32xf32, #tpu.memory_space<vmem>>, vector<48x32xf32>
    %34 = tpu.concatenate %33, %21, %32 in 1 : vector<48x32xf32>, vector<48x16xf32>, vector<48x16xf32> -> vector<48x64xf32>
    %35 = arith.truncf %34 : vector<48x64xf32> to vector<48x64xbf16>
    %36 = tpu.iota {dimensions = array<i32: 1>} : vector<1x256xi32>
    %c128_i32 = arith.constant 128 : i32
    %37 = vector.broadcast %c128_i32 : i32 to vector<1x256xi32>
    %38 = arith.cmpi sge, %36, %37 : vector<1x256xi32>
    %c192_i32 = arith.constant 192 : i32
    %39 = vector.broadcast %c192_i32 : i32 to vector<1x256xi32>
    %40 = arith.cmpi slt, %36, %39 : vector<1x256xi32>
    %41 = arith.andi %38, %40 : vector<1x256xi1>
    %42 = tpu.iota {dimensions = array<i32: 1>} : vector<1x64xi32>
    %c32_i32 = arith.constant 32 : i32
    %43 = vector.broadcast %c32_i32 : i32 to vector<1x64xi32>
    %44 = arith.cmpi slt, %42, %43 : vector<1x64xi32>
    %c0_10 = arith.constant 0 : index
    %c0_11 = arith.constant 0 : index
    %45 = vector.load %arg7[%c0_10, %c0_11] : memref<64x512xbf16, #tpu.memory_space<vmem>>, vector<64x512xbf16>
    %cst_12 = arith.constant dense<0.000000e+00> : vector<48x512xf32>
    %46 = tpu.matmul %35, %45, %cst_12 {dimension_numbers = #tpu.dot_dimension_numbers<[1], [0], [0], [1], [0, 0, 1, 1], [], []>} : vector<48x64xbf16>, vector<64x512xbf16>, vector<48x512xf32> -> vector<48x512xf32>
    %c0_13 = arith.constant 0 : index
    %c0_14 = arith.constant 0 : index
    %47 = vector.load %arg8[%c0_13, %c0_14] : memref<1x512xf32, #tpu.memory_space<vmem>>, vector<1x512xf32>
    %48 = vector.broadcast %47 : vector<1x512xf32> to vector<48x512xf32>
    %49 = arith.addf %46, %48 : vector<48x512xf32>
    %50 = vector.extract_strided_slice %49 {offsets = [0, 0], sizes = [48, 256], strides = [1, 1]} : vector<48x512xf32> to vector<48x256xf32>
    %51 = vector.extract_strided_slice %49 {offsets = [0, 256], sizes = [48, 256], strides = [1, 1]} : vector<48x512xf32> to vector<48x256xf32>
    %c0_15 = arith.constant 0 : index
    %c0_16 = arith.constant 0 : index
    %52 = vector.load %arg9[%c0_15, %c0_16] : memref<64x256xbf16, #tpu.memory_space<vmem>>, vector<64x256xbf16>
    %cst_17 = arith.constant 0.000000e+00 : f32
    %53 = vector.broadcast %cst_17 : f32 to vector<8x64xf32>
    %cst_18 = arith.constant 0.000000e+00 : f32
    %54 = vector.broadcast %cst_18 : f32 to vector<8x64xf32>
    %55 = vector.extract_strided_slice %50 {offsets = [0, 0], sizes = [8, 256], strides = [1, 1]} : vector<48x256xf32> to vector<8x256xf32>
    %56 = vector.extract_strided_slice %51 {offsets = [40, 0], sizes = [8, 256], strides = [1, 1]} : vector<48x256xf32> to vector<8x256xf32>
    %57 = arith.addf %55, %56 : vector<8x256xf32>
    %58 = arith.truncf %53 : vector<8x64xf32> to vector<8x64xbf16>
    %cst_19 = arith.constant dense<0.000000e+00> : vector<8x256xf32>
    %59 = tpu.matmul %58, %52, %cst_19 {dimension_numbers = #tpu.dot_dimension_numbers<[1], [0], [0], [1], [0, 0, 1, 1], [], []>} : vector<8x64xbf16>, vector<64x256xbf16>, vector<8x256xf32> -> vector<8x256xf32>
    %60 = arith.addf %57, %59 : vector<8x256xf32>
    %61 = math.tanh %60 : vector<8x256xf32>
    %62 = arith.negf %60 : vector<8x256xf32>
    %63 = math.exp %62 : vector<8x256xf32>
    %cst_20 = arith.constant 1.000000e+00 : f32
    %64 = vector.broadcast %cst_20 : f32 to vector<8x256xf32>
    %65 = arith.addf %64, %63 : vector<8x256xf32>
    %66 = arith.divf %64, %65 : vector<8x256xf32>
    %67 = vector.shape_cast %41 : vector<1x256xi1> to vector<1x256xi1>
    %68 = vector.broadcast %67 : vector<1x256xi1> to vector<8x256xi1>
    %69 = arith.select %68, %61, %66 : vector<8x256xi1>, vector<8x256xf32>
    %70 = vector.extract_strided_slice %69 {offsets = [0, 0], sizes = [8, 64], strides = [1, 1]} : vector<8x256xf32> to vector<8x64xf32>
    %71 = vector.extract_strided_slice %69 {offsets = [0, 64], sizes = [8, 64], strides = [1, 1]} : vector<8x256xf32> to vector<8x64xf32>
    %72 = vector.extract_strided_slice %69 {offsets = [0, 128], sizes = [8, 64], strides = [1, 1]} : vector<8x256xf32> to vector<8x64xf32>
    %73 = vector.extract_strided_slice %69 {offsets = [0, 192], sizes = [8, 64], strides = [1, 1]} : vector<8x256xf32> to vector<8x64xf32>
    %74 = arith.mulf %71, %54 : vector<8x64xf32>
    %75 = arith.mulf %70, %72 : vector<8x64xf32>
    %76 = arith.addf %74, %75 : vector<8x64xf32>
    %77 = math.tanh %76 : vector<8x64xf32>
    %78 = arith.mulf %73, %77 : vector<8x64xf32>
    %79 = vector.extract_strided_slice %0 {offsets = [0, 0], sizes = [8, 1], strides = [1, 1]} : vector<48x1xf32> to vector<8x1xf32>
    %80 = vector.extract_strided_slice %0 {offsets = [40, 0], sizes = [8, 1], strides = [1, 1]} : vector<48x1xf32> to vector<8x1xf32>
    %81 = vector.shape_cast %44 : vector<1x64xi1> to vector<1x64xi1>
    %82 = vector.broadcast %81 : vector<1x64xi1> to vector<8x64xi1>
    %83 = vector.shape_cast %79 : vector<8x1xf32> to vector<8x1xf32>
    %84 = vector.broadcast %83 : vector<8x1xf32> to vector<8x64xf32>
    %85 = vector.shape_cast %80 : vector<8x1xf32> to vector<8x1xf32>
    %86 = vector.broadcast %85 : vector<8x1xf32> to vector<8x64xf32>
    %87 = arith.select %82, %84, %86 : vector<8x64xi1>, vector<8x64xf32>
    %cst_21 = arith.constant 0.000000e+00 : f32
    %88 = vector.broadcast %cst_21 : f32 to vector<8x64xf32>
    %89 = arith.cmpf ogt, %87, %88 : vector<8x64xf32>
    %90 = arith.select %89, %78, %53 : vector<8x64xi1>, vector<8x64xf32>
    %91 = arith.select %89, %76, %54 : vector<8x64xi1>, vector<8x64xf32>
    %cst_22 = arith.constant 0.000000e+00 : f32
    %92 = vector.broadcast %cst_22 : f32 to vector<8x64xf32>
    %93 = arith.select %89, %78, %92 : vector<8x64xi1>, vector<8x64xf32>
    %94 = vector.extract_strided_slice %93 {offsets = [0, 0], sizes = [8, 32], strides = [1, 1]} : vector<8x64xf32> to vector<8x32xf32>
    %c0_23 = arith.constant 0 : index
    %c0_24 = arith.constant 0 : index
    %95 = vector.load %arg26[%c0_23, %c0_24] : memref<48x64xf32, #tpu.memory_space<vmem>>, vector<8x32xf32>
    tpu.vector_store %arg26[%c0_23, %c0_24], %94 {strides = array<i32>} : memref<48x64xf32, #tpu.memory_space<vmem>>, vector<8x32xf32>,
    %96 = vector.extract_strided_slice %93 {offsets = [0, 32], sizes = [8, 32], strides = [1, 1]} : vector<8x64xf32> to vector<8x32xf32>
    %c40 = arith.constant 40 : index
    %c32 = arith.constant 32 : index
    %97 = vector.load %arg26[%c40, %c32] : memref<48x64xf32, #tpu.memory_space<vmem>>, vector<8x32xf32>
    tpu.vector_store %arg26[%c40, %c32], %96 {strides = array<i32>} : memref<48x64xf32, #tpu.memory_space<vmem>>, vector<8x32xf32>,
    %98 = vector.extract_strided_slice %50 {offsets = [8, 0], sizes = [8, 256], strides = [1, 1]} : vector<48x256xf32> to vector<8x256xf32>
    %99 = vector.extract_strided_slice %51 {offsets = [32, 0], sizes = [8, 256], strides = [1, 1]} : vector<48x256xf32> to vector<8x256xf32>
    %100 = arith.addf %98, %99 : vector<8x256xf32>
    %101 = arith.truncf %90 : vector<8x64xf32> to vector<8x64xbf16>
    %cst_25 = arith.constant dense<0.000000e+00> : vector<8x256xf32>
    %102 = tpu.matmul %101, %52, %cst_25 {dimension_numbers = #tpu.dot_dimension_numbers<[1], [0], [0], [1], [0, 0, 1, 1], [], []>} : vector<8x64xbf16>, vector<64x256xbf16>, vector<8x256xf32> -> vector<8x256xf32>
    %103 = arith.addf %100, %102 : vector<8x256xf32>
    %104 = math.tanh %103 : vector<8x256xf32>
    %105 = arith.negf %103 : vector<8x256xf32>
    %106 = math.exp %105 : vector<8x256xf32>
    %cst_26 = arith.constant 1.000000e+00 : f32
    %107 = vector.broadcast %cst_26 : f32 to vector<8x256xf32>
    %108 = arith.addf %107, %106 : vector<8x256xf32>
    %109 = arith.divf %107, %108 : vector<8x256xf32>
    %110 = vector.shape_cast %41 : vector<1x256xi1> to vector<1x256xi1>
    %111 = vector.broadcast %110 : vector<1x256xi1> to vector<8x256xi1>
    %112 = arith.select %111, %104, %109 : vector<8x256xi1>, vector<8x256xf32>
    %113 = vector.extract_strided_slice %112 {offsets = [0, 0], sizes = [8, 64], strides = [1, 1]} : vector<8x256xf32> to vector<8x64xf32>
    %114 = vector.extract_strided_slice %112 {offsets = [0, 64], sizes = [8, 64], strides = [1, 1]} : vector<8x256xf32> to vector<8x64xf32>
    %115 = vector.extract_strided_slice %112 {offsets = [0, 128], sizes = [8, 64], strides = [1, 1]} : vector<8x256xf32> to vector<8x64xf32>
    %116 = vector.extract_strided_slice %112 {offsets = [0, 192], sizes = [8, 64], strides = [1, 1]} : vector<8x256xf32> to vector<8x64xf32>
    %117 = arith.mulf %114, %91 : vector<8x64xf32>
    %118 = arith.mulf %113, %115 : vector<8x64xf32>
    %119 = arith.addf %117, %118 : vector<8x64xf32>
    %120 = math.tanh %119 : vector<8x64xf32>
    %121 = arith.mulf %116, %120 : vector<8x64xf32>
    %122 = vector.extract_strided_slice %0 {offsets = [8, 0], sizes = [8, 1], strides = [1, 1]} : vector<48x1xf32> to vector<8x1xf32>
    %123 = vector.extract_strided_slice %0 {offsets = [32, 0], sizes = [8, 1], strides = [1, 1]} : vector<48x1xf32> to vector<8x1xf32>
    %124 = vector.shape_cast %44 : vector<1x64xi1> to vector<1x64xi1>
    %125 = vector.broadcast %124 : vector<1x64xi1> to vector<8x64xi1>
    %126 = vector.shape_cast %122 : vector<8x1xf32> to vector<8x1xf32>
    %127 = vector.broadcast %126 : vector<8x1xf32> to vector<8x64xf32>
    %128 = vector.shape_cast %123 : vector<8x1xf32> to vector<8x1xf32>
    %129 = vector.broadcast %128 : vector<8x1xf32> to vector<8x64xf32>
    %130 = arith.select %125, %127, %129 : vector<8x64xi1>, vector<8x64xf32>
    %cst_27 = arith.constant 0.000000e+00 : f32
    %131 = vector.broadcast %cst_27 : f32 to vector<8x64xf32>
    %132 = arith.cmpf ogt, %130, %131 : vector<8x64xf32>
    %133 = arith.select %132, %121, %90 : vector<8x64xi1>, vector<8x64xf32>
    %134 = arith.select %132, %119, %91 : vector<8x64xi1>, vector<8x64xf32>
    %cst_28 = arith.constant 0.000000e+00 : f32
    %135 = vector.broadcast %cst_28 : f32 to vector<8x64xf32>
    %136 = arith.select %132, %121, %135 : vector<8x64xi1>, vector<8x64xf32>
    %137 = vector.extract_strided_slice %136 {offsets = [0, 0], sizes = [8, 32], strides = [1, 1]} : vector<8x64xf32> to vector<8x32xf32>
    %c8 = arith.constant 8 : index
    %c0_29 = arith.constant 0 : index
    %138 = vector.load %arg26[%c8, %c0_29] : memref<48x64xf32, #tpu.memory_space<vmem>>, vector<8x32xf32>
    tpu.vector_store %arg26[%c8, %c0_29], %137 {strides = array<i32>} : memref<48x64xf32, #tpu.memory_space<vmem>>, vector<8x32xf32>,
    %139 = vector.extract_strided_slice %136 {offsets = [0, 32], sizes = [8, 32], strides = [1, 1]} : vector<8x64xf32> to vector<8x32xf32>
    %c32_30 = arith.constant 32 : index
    %c32_31 = arith.constant 32 : index
    %140 = vector.load %arg26[%c32_30, %c32_31] : memref<48x64xf32, #tpu.memory_space<vmem>>, vector<8x32xf32>
    tpu.vector_store %arg26[%c32_30, %c32_31], %139 {strides = array<i32>} : memref<48x64xf32, #tpu.memory_space<vmem>>, vector<8x32xf32>,
    %141 = vector.extract_strided_slice %50 {offsets = [16, 0], sizes = [8, 256], strides = [1, 1]} : vector<48x256xf32> to vector<8x256xf32>
    %142 = vector.extract_strided_slice %51 {offsets = [24, 0], sizes = [8, 256], strides = [1, 1]} : vector<48x256xf32> to vector<8x256xf32>
    %143 = arith.addf %141, %142 : vector<8x256xf32>
    %144 = arith.truncf %133 : vector<8x64xf32> to vector<8x64xbf16>
    %cst_32 = arith.constant dense<0.000000e+00> : vector<8x256xf32>
    %145 = tpu.matmul %144, %52, %cst_32 {dimension_numbers = #tpu.dot_dimension_numbers<[1], [0], [0], [1], [0, 0, 1, 1], [], []>} : vector<8x64xbf16>, vector<64x256xbf16>, vector<8x256xf32> -> vector<8x256xf32>
    %146 = arith.addf %143, %145 : vector<8x256xf32>
    %147 = math.tanh %146 : vector<8x256xf32>
    %148 = arith.negf %146 : vector<8x256xf32>
    %149 = math.exp %148 : vector<8x256xf32>
    %cst_33 = arith.constant 1.000000e+00 : f32
    %150 = vector.broadcast %cst_33 : f32 to vector<8x256xf32>
    %151 = arith.addf %150, %149 : vector<8x256xf32>
    %152 = arith.divf %150, %151 : vector<8x256xf32>
    %153 = vector.shape_cast %41 : vector<1x256xi1> to vector<1x256xi1>
    %154 = vector.broadcast %153 : vector<1x256xi1> to vector<8x256xi1>
    %155 = arith.select %154, %147, %152 : vector<8x256xi1>, vector<8x256xf32>
    %156 = vector.extract_strided_slice %155 {offsets = [0, 0], sizes = [8, 64], strides = [1, 1]} : vector<8x256xf32> to vector<8x64xf32>
    %157 = vector.extract_strided_slice %155 {offsets = [0, 64], sizes = [8, 64], strides = [1, 1]} : vector<8x256xf32> to vector<8x64xf32>
    %158 = vector.extract_strided_slice %155 {offsets = [0, 128], sizes = [8, 64], strides = [1, 1]} : vector<8x256xf32> to vector<8x64xf32>
    %159 = vector.extract_strided_slice %155 {offsets = [0, 192], sizes = [8, 64], strides = [1, 1]} : vector<8x256xf32> to vector<8x64xf32>
    %160 = arith.mulf %157, %134 : vector<8x64xf32>
    %161 = arith.mulf %156, %158 : vector<8x64xf32>
    %162 = arith.addf %160, %161 : vector<8x64xf32>
    %163 = math.tanh %162 : vector<8x64xf32>
    %164 = arith.mulf %159, %163 : vector<8x64xf32>
    %165 = vector.extract_strided_slice %0 {offsets = [16, 0], sizes = [8, 1], strides = [1, 1]} : vector<48x1xf32> to vector<8x1xf32>
    %166 = vector.extract_strided_slice %0 {offsets = [24, 0], sizes = [8, 1], strides = [1, 1]} : vector<48x1xf32> to vector<8x1xf32>
    %167 = vector.shape_cast %44 : vector<1x64xi1> to vector<1x64xi1>
    %168 = vector.broadcast %167 : vector<1x64xi1> to vector<8x64xi1>
    %169 = vector.shape_cast %165 : vector<8x1xf32> to vector<8x1xf32>
    %170 = vector.broadcast %169 : vector<8x1xf32> to vector<8x64xf32>
    %171 = vector.shape_cast %166 : vector<8x1xf32> to vector<8x1xf32>
    %172 = vector.broadcast %171 : vector<8x1xf32> to vector<8x64xf32>
    %173 = arith.select %168, %170, %172 : vector<8x64xi1>, vector<8x64xf32>
    %cst_34 = arith.constant 0.000000e+00 : f32
    %174 = vector.broadcast %cst_34 : f32 to vector<8x64xf32>
    %175 = arith.cmpf ogt, %173, %174 : vector<8x64xf32>
    %176 = arith.select %175, %164, %133 : vector<8x64xi1>, vector<8x64xf32>
    %177 = arith.select %175, %162, %134 : vector<8x64xi1>, vector<8x64xf32>
    %cst_35 = arith.constant 0.000000e+00 : f32
    %178 = vector.broadcast %cst_35 : f32 to vector<8x64xf32>
    %179 = arith.select %175, %164, %178 : vector<8x64xi1>, vector<8x64xf32>
    %180 = vector.extract_strided_slice %179 {offsets = [0, 0], sizes = [8, 32], strides = [1, 1]} : vector<8x64xf32> to vector<8x32xf32>
    %c16 = arith.constant 16 : index
    %c0_36 = arith.constant 0 : index
    %181 = vector.load %arg26[%c16, %c0_36] : memref<48x64xf32, #tpu.memory_space<vmem>>, vector<8x32xf32>
    tpu.vector_store %arg26[%c16, %c0_36], %180 {strides = array<i32>} : memref<48x64xf32, #tpu.memory_space<vmem>>, vector<8x32xf32>,
    %182 = vector.extract_strided_slice %179 {offsets = [0, 32], sizes = [8, 32], strides = [1, 1]} : vector<8x64xf32> to vector<8x32xf32>
    %c24 = arith.constant 24 : index
    %c32_37 = arith.constant 32 : index
    %183 = vector.load %arg26[%c24, %c32_37] : memref<48x64xf32, #tpu.memory_space<vmem>>, vector<8x32xf32>
    tpu.vector_store %arg26[%c24, %c32_37], %182 {strides = array<i32>} : memref<48x64xf32, #tpu.memory_space<vmem>>, vector<8x32xf32>,
    %184 = vector.extract_strided_slice %50 {offsets = [24, 0], sizes = [8, 256], strides = [1, 1]} : vector<48x256xf32> to vector<8x256xf32>
    %185 = vector.extract_strided_slice %51 {offsets = [16, 0], sizes = [8, 256], strides = [1, 1]} : vector<48x256xf32> to vector<8x256xf32>
    %186 = arith.addf %184, %185 : vector<8x256xf32>
    %187 = arith.truncf %176 : vector<8x64xf32> to vector<8x64xbf16>
    %cst_38 = arith.constant dense<0.000000e+00> : vector<8x256xf32>
    %188 = tpu.matmul %187, %52, %cst_38 {dimension_numbers = #tpu.dot_dimension_numbers<[1], [0], [0], [1], [0, 0, 1, 1], [], []>} : vector<8x64xbf16>, vector<64x256xbf16>, vector<8x256xf32> -> vector<8x256xf32>
    %189 = arith.addf %186, %188 : vector<8x256xf32>
    %190 = math.tanh %189 : vector<8x256xf32>
    %191 = arith.negf %189 : vector<8x256xf32>
    %192 = math.exp %191 : vector<8x256xf32>
    %cst_39 = arith.constant 1.000000e+00 : f32
    %193 = vector.broadcast %cst_39 : f32 to vector<8x256xf32>
    %194 = arith.addf %193, %192 : vector<8x256xf32>
    %195 = arith.divf %193, %194 : vector<8x256xf32>
    %196 = vector.shape_cast %41 : vector<1x256xi1> to vector<1x256xi1>
    %197 = vector.broadcast %196 : vector<1x256xi1> to vector<8x256xi1>
    %198 = arith.select %197, %190, %195 : vector<8x256xi1>, vector<8x256xf32>
    %199 = vector.extract_strided_slice %198 {offsets = [0, 0], sizes = [8, 64], strides = [1, 1]} : vector<8x256xf32> to vector<8x64xf32>
    %200 = vector.extract_strided_slice %198 {offsets = [0, 64], sizes = [8, 64], strides = [1, 1]} : vector<8x256xf32> to vector<8x64xf32>
    %201 = vector.extract_strided_slice %198 {offsets = [0, 128], sizes = [8, 64], strides = [1, 1]} : vector<8x256xf32> to vector<8x64xf32>
    %202 = vector.extract_strided_slice %198 {offsets = [0, 192], sizes = [8, 64], strides = [1, 1]} : vector<8x256xf32> to vector<8x64xf32>
    %203 = arith.mulf %200, %177 : vector<8x64xf32>
    %204 = arith.mulf %199, %201 : vector<8x64xf32>
    %205 = arith.addf %203, %204 : vector<8x64xf32>
    %206 = math.tanh %205 : vector<8x64xf32>
    %207 = arith.mulf %202, %206 : vector<8x64xf32>
    %208 = vector.extract_strided_slice %0 {offsets = [24, 0], sizes = [8, 1], strides = [1, 1]} : vector<48x1xf32> to vector<8x1xf32>
    %209 = vector.extract_strided_slice %0 {offsets = [16, 0], sizes = [8, 1], strides = [1, 1]} : vector<48x1xf32> to vector<8x1xf32>
    %210 = vector.shape_cast %44 : vector<1x64xi1> to vector<1x64xi1>
    %211 = vector.broadcast %210 : vector<1x64xi1> to vector<8x64xi1>
    %212 = vector.shape_cast %208 : vector<8x1xf32> to vector<8x1xf32>
    %213 = vector.broadcast %212 : vector<8x1xf32> to vector<8x64xf32>
    %214 = vector.shape_cast %209 : vector<8x1xf32> to vector<8x1xf32>
    %215 = vector.broadcast %214 : vector<8x1xf32> to vector<8x64xf32>
    %216 = arith.select %211, %213, %215 : vector<8x64xi1>, vector<8x64xf32>
    %cst_40 = arith.constant 0.000000e+00 : f32
    %217 = vector.broadcast %cst_40 : f32 to vector<8x64xf32>
    %218 = arith.cmpf ogt, %216, %217 : vector<8x64xf32>
    %219 = arith.select %218, %207, %176 : vector<8x64xi1>, vector<8x64xf32>
    %220 = arith.select %218, %205, %177 : vector<8x64xi1>, vector<8x64xf32>
    %cst_41 = arith.constant 0.000000e+00 : f32
    %221 = vector.broadcast %cst_41 : f32 to vector<8x64xf32>
    %222 = arith.select %218, %207, %221 : vector<8x64xi1>, vector<8x64xf32>
    %223 = vector.extract_strided_slice %222 {offsets = [0, 0], sizes = [8, 32], strides = [1, 1]} : vector<8x64xf32> to vector<8x32xf32>
    %c24_42 = arith.constant 24 : index
    %c0_43 = arith.constant 0 : index
    %224 = vector.load %arg26[%c24_42, %c0_43] : memref<48x64xf32, #tpu.memory_space<vmem>>, vector<8x32xf32>
    tpu.vector_store %arg26[%c24_42, %c0_43], %223 {strides = array<i32>} : memref<48x64xf32, #tpu.memory_space<vmem>>, vector<8x32xf32>,
    %225 = vector.extract_strided_slice %222 {offsets = [0, 32], sizes = [8, 32], strides = [1, 1]} : vector<8x64xf32> to vector<8x32xf32>
    %c16_44 = arith.constant 16 : index
    %c32_45 = arith.constant 32 : index
    %226 = vector.load %arg26[%c16_44, %c32_45] : memref<48x64xf32, #tpu.memory_space<vmem>>, vector<8x32xf32>
    tpu.vector_store %arg26[%c16_44, %c32_45], %225 {strides = array<i32>} : memref<48x64xf32, #tpu.memory_space<vmem>>, vector<8x32xf32>,
    %227 = vector.extract_strided_slice %50 {offsets = [32, 0], sizes = [8, 256], strides = [1, 1]} : vector<48x256xf32> to vector<8x256xf32>
    %228 = vector.extract_strided_slice %51 {offsets = [8, 0], sizes = [8, 256], strides = [1, 1]} : vector<48x256xf32> to vector<8x256xf32>
    %229 = arith.addf %227, %228 : vector<8x256xf32>
    %230 = arith.truncf %219 : vector<8x64xf32> to vector<8x64xbf16>
    %cst_46 = arith.constant dense<0.000000e+00> : vector<8x256xf32>
    %231 = tpu.matmul %230, %52, %cst_46 {dimension_numbers = #tpu.dot_dimension_numbers<[1], [0], [0], [1], [0, 0, 1, 1], [], []>} : vector<8x64xbf16>, vector<64x256xbf16>, vector<8x256xf32> -> vector<8x256xf32>
    %232 = arith.addf %229, %231 : vector<8x256xf32>
    %233 = math.tanh %232 : vector<8x256xf32>
    %234 = arith.negf %232 : vector<8x256xf32>
    %235 = math.exp %234 : vector<8x256xf32>
    %cst_47 = arith.constant 1.000000e+00 : f32
    %236 = vector.broadcast %cst_47 : f32 to vector<8x256xf32>
    %237 = arith.addf %236, %235 : vector<8x256xf32>
    %238 = arith.divf %236, %237 : vector<8x256xf32>
    %239 = vector.shape_cast %41 : vector<1x256xi1> to vector<1x256xi1>
    %240 = vector.broadcast %239 : vector<1x256xi1> to vector<8x256xi1>
    %241 = arith.select %240, %233, %238 : vector<8x256xi1>, vector<8x256xf32>
    %242 = vector.extract_strided_slice %241 {offsets = [0, 0], sizes = [8, 64], strides = [1, 1]} : vector<8x256xf32> to vector<8x64xf32>
    %243 = vector.extract_strided_slice %241 {offsets = [0, 64], sizes = [8, 64], strides = [1, 1]} : vector<8x256xf32> to vector<8x64xf32>
    %244 = vector.extract_strided_slice %241 {offsets = [0, 128], sizes = [8, 64], strides = [1, 1]} : vector<8x256xf32> to vector<8x64xf32>
    %245 = vector.extract_strided_slice %241 {offsets = [0, 192], sizes = [8, 64], strides = [1, 1]} : vector<8x256xf32> to vector<8x64xf32>
    %246 = arith.mulf %243, %220 : vector<8x64xf32>
    %247 = arith.mulf %242, %244 : vector<8x64xf32>
    %248 = arith.addf %246, %247 : vector<8x64xf32>
    %249 = math.tanh %248 : vector<8x64xf32>
    %250 = arith.mulf %245, %249 : vector<8x64xf32>
    %251 = vector.extract_strided_slice %0 {offsets = [32, 0], sizes = [8, 1], strides = [1, 1]} : vector<48x1xf32> to vector<8x1xf32>
    %252 = vector.extract_strided_slice %0 {offsets = [8, 0], sizes = [8, 1], strides = [1, 1]} : vector<48x1xf32> to vector<8x1xf32>
    %253 = vector.shape_cast %44 : vector<1x64xi1> to vector<1x64xi1>
    %254 = vector.broadcast %253 : vector<1x64xi1> to vector<8x64xi1>
    %255 = vector.shape_cast %251 : vector<8x1xf32> to vector<8x1xf32>
    %256 = vector.broadcast %255 : vector<8x1xf32> to vector<8x64xf32>
    %257 = vector.shape_cast %252 : vector<8x1xf32> to vector<8x1xf32>
    %258 = vector.broadcast %257 : vector<8x1xf32> to vector<8x64xf32>
    %259 = arith.select %254, %256, %258 : vector<8x64xi1>, vector<8x64xf32>
    %cst_48 = arith.constant 0.000000e+00 : f32
    %260 = vector.broadcast %cst_48 : f32 to vector<8x64xf32>
    %261 = arith.cmpf ogt, %259, %260 : vector<8x64xf32>
    %262 = arith.select %261, %250, %219 : vector<8x64xi1>, vector<8x64xf32>
    %263 = arith.select %261, %248, %220 : vector<8x64xi1>, vector<8x64xf32>
    %cst_49 = arith.constant 0.000000e+00 : f32
    %264 = vector.broadcast %cst_49 : f32 to vector<8x64xf32>
    %265 = arith.select %261, %250, %264 : vector<8x64xi1>, vector<8x64xf32>
    %266 = vector.extract_strided_slice %265 {offsets = [0, 0], sizes = [8, 32], strides = [1, 1]} : vector<8x64xf32> to vector<8x32xf32>
    %c32_50 = arith.constant 32 : index
    %c0_51 = arith.constant 0 : index
    %267 = vector.load %arg26[%c32_50, %c0_51] : memref<48x64xf32, #tpu.memory_space<vmem>>, vector<8x32xf32>
    tpu.vector_store %arg26[%c32_50, %c0_51], %266 {strides = array<i32>} : memref<48x64xf32, #tpu.memory_space<vmem>>, vector<8x32xf32>,
    %268 = vector.extract_strided_slice %265 {offsets = [0, 32], sizes = [8, 32], strides = [1, 1]} : vector<8x64xf32> to vector<8x32xf32>
    %c8_52 = arith.constant 8 : index
    %c32_53 = arith.constant 32 : index
    %269 = vector.load %arg26[%c8_52, %c32_53] : memref<48x64xf32, #tpu.memory_space<vmem>>, vector<8x32xf32>
    tpu.vector_store %arg26[%c8_52, %c32_53], %268 {strides = array<i32>} : memref<48x64xf32, #tpu.memory_space<vmem>>, vector<8x32xf32>,
    %270 = vector.extract_strided_slice %50 {offsets = [40, 0], sizes = [8, 256], strides = [1, 1]} : vector<48x256xf32> to vector<8x256xf32>
    %271 = vector.extract_strided_slice %51 {offsets = [0, 0], sizes = [8, 256], strides = [1, 1]} : vector<48x256xf32> to vector<8x256xf32>
    %272 = arith.addf %270, %271 : vector<8x256xf32>
    %273 = arith.truncf %262 : vector<8x64xf32> to vector<8x64xbf16>
    %cst_54 = arith.constant dense<0.000000e+00> : vector<8x256xf32>
    %274 = tpu.matmul %273, %52, %cst_54 {dimension_numbers = #tpu.dot_dimension_numbers<[1], [0], [0], [1], [0, 0, 1, 1], [], []>} : vector<8x64xbf16>, vector<64x256xbf16>, vector<8x256xf32> -> vector<8x256xf32>
    %275 = arith.addf %272, %274 : vector<8x256xf32>
    %276 = math.tanh %275 : vector<8x256xf32>
    %277 = arith.negf %275 : vector<8x256xf32>
    %278 = math.exp %277 : vector<8x256xf32>
    %cst_55 = arith.constant 1.000000e+00 : f32
    %279 = vector.broadcast %cst_55 : f32 to vector<8x256xf32>
    %280 = arith.addf %279, %278 : vector<8x256xf32>
    %281 = arith.divf %279, %280 : vector<8x256xf32>
    %282 = vector.shape_cast %41 : vector<1x256xi1> to vector<1x256xi1>
    %283 = vector.broadcast %282 : vector<1x256xi1> to vector<8x256xi1>
    %284 = arith.select %283, %276, %281 : vector<8x256xi1>, vector<8x256xf32>
    %285 = vector.extract_strided_slice %284 {offsets = [0, 0], sizes = [8, 64], strides = [1, 1]} : vector<8x256xf32> to vector<8x64xf32>
    %286 = vector.extract_strided_slice %284 {offsets = [0, 64], sizes = [8, 64], strides = [1, 1]} : vector<8x256xf32> to vector<8x64xf32>
    %287 = vector.extract_strided_slice %284 {offsets = [0, 128], sizes = [8, 64], strides = [1, 1]} : vector<8x256xf32> to vector<8x64xf32>
    %288 = vector.extract_strided_slice %284 {offsets = [0, 192], sizes = [8, 64], strides = [1, 1]} : vector<8x256xf32> to vector<8x64xf32>
    %289 = arith.mulf %286, %263 : vector<8x64xf32>
    %290 = arith.mulf %285, %287 : vector<8x64xf32>
    %291 = arith.addf %289, %290 : vector<8x64xf32>
    %292 = math.tanh %291 : vector<8x64xf32>
    %293 = arith.mulf %288, %292 : vector<8x64xf32>
    %294 = vector.extract_strided_slice %0 {offsets = [40, 0], sizes = [8, 1], strides = [1, 1]} : vector<48x1xf32> to vector<8x1xf32>
    %295 = vector.extract_strided_slice %0 {offsets = [0, 0], sizes = [8, 1], strides = [1, 1]} : vector<48x1xf32> to vector<8x1xf32>
    %296 = vector.shape_cast %44 : vector<1x64xi1> to vector<1x64xi1>
    %297 = vector.broadcast %296 : vector<1x64xi1> to vector<8x64xi1>
    %298 = vector.shape_cast %294 : vector<8x1xf32> to vector<8x1xf32>
    %299 = vector.broadcast %298 : vector<8x1xf32> to vector<8x64xf32>
    %300 = vector.shape_cast %295 : vector<8x1xf32> to vector<8x1xf32>
    %301 = vector.broadcast %300 : vector<8x1xf32> to vector<8x64xf32>
    %302 = arith.select %297, %299, %301 : vector<8x64xi1>, vector<8x64xf32>
    %cst_56 = arith.constant 0.000000e+00 : f32
    %303 = vector.broadcast %cst_56 : f32 to vector<8x64xf32>
    %304 = arith.cmpf ogt, %302, %303 : vector<8x64xf32>
    %cst_57 = arith.constant 0.000000e+00 : f32
    %305 = vector.broadcast %cst_57 : f32 to vector<8x64xf32>
    %306 = arith.select %304, %293, %305 : vector<8x64xi1>, vector<8x64xf32>
    %307 = vector.extract_strided_slice %306 {offsets = [0, 0], sizes = [8, 32], strides = [1, 1]} : vector<8x64xf32> to vector<8x32xf32>
    %c40_58 = arith.constant 40 : index
    %c0_59 = arith.constant 0 : index
    %308 = vector.load %arg26[%c40_58, %c0_59] : memref<48x64xf32, #tpu.memory_space<vmem>>, vector<8x32xf32>
    tpu.vector_store %arg26[%c40_58, %c0_59], %307 {strides = array<i32>} : memref<48x64xf32, #tpu.memory_space<vmem>>, vector<8x32xf32>,
    %309 = vector.extract_strided_slice %306 {offsets = [0, 32], sizes = [8, 32], strides = [1, 1]} : vector<8x64xf32> to vector<8x32xf32>
    %c0_60 = arith.constant 0 : index
    %c32_61 = arith.constant 32 : index
    %310 = vector.load %arg26[%c0_60, %c32_61] : memref<48x64xf32, #tpu.memory_space<vmem>>, vector<8x32xf32>
    tpu.vector_store %arg26[%c0_60, %c32_61], %309 {strides = array<i32>} : memref<48x64xf32, #tpu.memory_space<vmem>>, vector<8x32xf32>,
    %c0_62 = arith.constant 0 : index
    %c0_63 = arith.constant 0 : index
    %311 = vector.load %arg26[%c0_62, %c0_63] : memref<48x64xf32, #tpu.memory_space<vmem>>, vector<48x64xf32>
    %312 = arith.truncf %311 : vector<48x64xf32> to vector<48x64xbf16>
    %c0_64 = arith.constant 0 : index
    %c0_65 = arith.constant 0 : index
    %313 = vector.load %arg10[%c0_64, %c0_65] : memref<64x512xbf16, #tpu.memory_space<vmem>>, vector<64x512xbf16>
    %cst_66 = arith.constant dense<0.000000e+00> : vector<48x512xf32>
    %314 = tpu.matmul %35, %313, %cst_66 {dimension_numbers = #tpu.dot_dimension_numbers<[1], [0], [0], [1], [0, 0, 1, 1], [], []>} : vector<48x64xbf16>, vector<64x512xbf16>, vector<48x512xf32> -> vector<48x512xf32>
    %c0_67 = arith.constant 0 : index
    %c0_68 = arith.constant 0 : index
    %315 = vector.load %arg12[%c0_67, %c0_68] : memref<1x512xf32, #tpu.memory_space<vmem>>, vector<1x512xf32>
    %316 = vector.broadcast %315 : vector<1x512xf32> to vector<48x512xf32>
    %317 = arith.addf %314, %316 : vector<48x512xf32>
    %c0_69 = arith.constant 0 : index
    %c0_70 = arith.constant 0 : index
    %318 = vector.load %arg11[%c0_69, %c0_70] : memref<64x512xbf16, #tpu.memory_space<vmem>>, vector<64x512xbf16>
    %cst_71 = arith.constant dense<0.000000e+00> : vector<48x512xf32>
    %319 = tpu.matmul %312, %318, %cst_71 {dimension_numbers = #tpu.dot_dimension_numbers<[1], [0], [0], [1], [0, 0, 1, 1], [], []>} : vector<48x64xbf16>, vector<64x512xbf16>, vector<48x512xf32> -> vector<48x512xf32>
    %320 = arith.addf %317, %319 : vector<48x512xf32>
    %321 = vector.extract_strided_slice %320 {offsets = [0, 0], sizes = [48, 256], strides = [1, 1]} : vector<48x512xf32> to vector<48x256xf32>
    %322 = vector.extract_strided_slice %320 {offsets = [0, 256], sizes = [48, 256], strides = [1, 1]} : vector<48x512xf32> to vector<48x256xf32>
    %c0_72 = arith.constant 0 : index
    %c0_73 = arith.constant 0 : index
    %323 = vector.load %arg13[%c0_72, %c0_73] : memref<64x256xbf16, #tpu.memory_space<vmem>>, vector<64x256xbf16>
    %cst_74 = arith.constant 0.000000e+00 : f32
    %324 = vector.broadcast %cst_74 : f32 to vector<8x64xf32>
    %cst_75 = arith.constant 0.000000e+00 : f32
    %325 = vector.broadcast %cst_75 : f32 to vector<8x64xf32>
    %326 = vector.extract_strided_slice %321 {offsets = [0, 0], sizes = [8, 256], strides = [1, 1]} : vector<48x256xf32> to vector<8x256xf32>
    %327 = vector.extract_strided_slice %322 {offsets = [40, 0], sizes = [8, 256], strides = [1, 1]} : vector<48x256xf32> to vector<8x256xf32>
    %328 = arith.addf %326, %327 : vector<8x256xf32>
    %329 = arith.truncf %324 : vector<8x64xf32> to vector<8x64xbf16>
    %cst_76 = arith.constant dense<0.000000e+00> : vector<8x256xf32>
    %330 = tpu.matmul %329, %323, %cst_76 {dimension_numbers = #tpu.dot_dimension_numbers<[1], [0], [0], [1], [0, 0, 1, 1], [], []>} : vector<8x64xbf16>, vector<64x256xbf16>, vector<8x256xf32> -> vector<8x256xf32>
    %331 = arith.addf %328, %330 : vector<8x256xf32>
    %332 = math.tanh %331 : vector<8x256xf32>
    %333 = arith.negf %331 : vector<8x256xf32>
    %334 = math.exp %333 : vector<8x256xf32>
    %cst_77 = arith.constant 1.000000e+00 : f32
    %335 = vector.broadcast %cst_77 : f32 to vector<8x256xf32>
    %336 = arith.addf %335, %334 : vector<8x256xf32>
    %337 = arith.divf %335, %336 : vector<8x256xf32>
    %338 = vector.shape_cast %41 : vector<1x256xi1> to vector<1x256xi1>
    %339 = vector.broadcast %338 : vector<1x256xi1> to vector<8x256xi1>
    %340 = arith.select %339, %332, %337 : vector<8x256xi1>, vector<8x256xf32>
    %341 = vector.extract_strided_slice %340 {offsets = [0, 0], sizes = [8, 64], strides = [1, 1]} : vector<8x256xf32> to vector<8x64xf32>
    %342 = vector.extract_strided_slice %340 {offsets = [0, 64], sizes = [8, 64], strides = [1, 1]} : vector<8x256xf32> to vector<8x64xf32>
    %343 = vector.extract_strided_slice %340 {offsets = [0, 128], sizes = [8, 64], strides = [1, 1]} : vector<8x256xf32> to vector<8x64xf32>
    %344 = vector.extract_strided_slice %340 {offsets = [0, 192], sizes = [8, 64], strides = [1, 1]} : vector<8x256xf32> to vector<8x64xf32>
    %345 = arith.mulf %342, %325 : vector<8x64xf32>
    %346 = arith.mulf %341, %343 : vector<8x64xf32>
    %347 = arith.addf %345, %346 : vector<8x64xf32>
    %348 = math.tanh %347 : vector<8x64xf32>
    %349 = arith.mulf %344, %348 : vector<8x64xf32>
    %350 = vector.extract_strided_slice %0 {offsets = [0, 0], sizes = [8, 1], strides = [1, 1]} : vector<48x1xf32> to vector<8x1xf32>
    %351 = vector.extract_strided_slice %0 {offsets = [40, 0], sizes = [8, 1], strides = [1, 1]} : vector<48x1xf32> to vector<8x1xf32>
    %352 = vector.shape_cast %44 : vector<1x64xi1> to vector<1x64xi1>
    %353 = vector.broadcast %352 : vector<1x64xi1> to vector<8x64xi1>
    %354 = vector.shape_cast %350 : vector<8x1xf32> to vector<8x1xf32>
    %355 = vector.broadcast %354 : vector<8x1xf32> to vector<8x64xf32>
    %356 = vector.shape_cast %351 : vector<8x1xf32> to vector<8x1xf32>
    %357 = vector.broadcast %356 : vector<8x1xf32> to vector<8x64xf32>
    %358 = arith.select %353, %355, %357 : vector<8x64xi1>, vector<8x64xf32>
    %cst_78 = arith.constant 0.000000e+00 : f32
    %359 = vector.broadcast %cst_78 : f32 to vector<8x64xf32>
    %360 = arith.cmpf ogt, %358, %359 : vector<8x64xf32>
    %361 = arith.select %360, %349, %324 : vector<8x64xi1>, vector<8x64xf32>
    %362 = arith.select %360, %347, %325 : vector<8x64xi1>, vector<8x64xf32>
    %cst_79 = arith.constant 0.000000e+00 : f32
    %363 = vector.broadcast %cst_79 : f32 to vector<8x64xf32>
    %364 = arith.select %360, %349, %363 : vector<8x64xi1>, vector<8x64xf32>
    %365 = vector.extract_strided_slice %364 {offsets = [0, 0], sizes = [8, 32], strides = [1, 1]} : vector<8x64xf32> to vector<8x32xf32>
    %c0_80 = arith.constant 0 : index
    %c0_81 = arith.constant 0 : index
    %366 = vector.load %arg27[%c0_80, %c0_81] : memref<48x64xf32, #tpu.memory_space<vmem>>, vector<8x32xf32>
    tpu.vector_store %arg27[%c0_80, %c0_81], %365 {strides = array<i32>} : memref<48x64xf32, #tpu.memory_space<vmem>>, vector<8x32xf32>,
    %367 = vector.extract_strided_slice %364 {offsets = [0, 32], sizes = [8, 32], strides = [1, 1]} : vector<8x64xf32> to vector<8x32xf32>
    %c40_82 = arith.constant 40 : index
    %c32_83 = arith.constant 32 : index
    %368 = vector.load %arg27[%c40_82, %c32_83] : memref<48x64xf32, #tpu.memory_space<vmem>>, vector<8x32xf32>
    tpu.vector_store %arg27[%c40_82, %c32_83], %367 {strides = array<i32>} : memref<48x64xf32, #tpu.memory_space<vmem>>, vector<8x32xf32>,
    %369 = vector.extract_strided_slice %321 {offsets = [8, 0], sizes = [8, 256], strides = [1, 1]} : vector<48x256xf32> to vector<8x256xf32>
    %370 = vector.extract_strided_slice %322 {offsets = [32, 0], sizes = [8, 256], strides = [1, 1]} : vector<48x256xf32> to vector<8x256xf32>
    %371 = arith.addf %369, %370 : vector<8x256xf32>
    %372 = arith.truncf %361 : vector<8x64xf32> to vector<8x64xbf16>
    %cst_84 = arith.constant dense<0.000000e+00> : vector<8x256xf32>
    %373 = tpu.matmul %372, %323, %cst_84 {dimension_numbers = #tpu.dot_dimension_numbers<[1], [0], [0], [1], [0, 0, 1, 1], [], []>} : vector<8x64xbf16>, vector<64x256xbf16>, vector<8x256xf32> -> vector<8x256xf32>
    %374 = arith.addf %371, %373 : vector<8x256xf32>
    %375 = math.tanh %374 : vector<8x256xf32>
    %376 = arith.negf %374 : vector<8x256xf32>
    %377 = math.exp %376 : vector<8x256xf32>
    %cst_85 = arith.constant 1.000000e+00 : f32
    %378 = vector.broadcast %cst_85 : f32 to vector<8x256xf32>
    %379 = arith.addf %378, %377 : vector<8x256xf32>
    %380 = arith.divf %378, %379 : vector<8x256xf32>
    %381 = vector.shape_cast %41 : vector<1x256xi1> to vector<1x256xi1>
    %382 = vector.broadcast %381 : vector<1x256xi1> to vector<8x256xi1>
    %383 = arith.select %382, %375, %380 : vector<8x256xi1>, vector<8x256xf32>
    %384 = vector.extract_strided_slice %383 {offsets = [0, 0], sizes = [8, 64], strides = [1, 1]} : vector<8x256xf32> to vector<8x64xf32>
    %385 = vector.extract_strided_slice %383 {offsets = [0, 64], sizes = [8, 64], strides = [1, 1]} : vector<8x256xf32> to vector<8x64xf32>
    %386 = vector.extract_strided_slice %383 {offsets = [0, 128], sizes = [8, 64], strides = [1, 1]} : vector<8x256xf32> to vector<8x64xf32>
    %387 = vector.extract_strided_slice %383 {offsets = [0, 192], sizes = [8, 64], strides = [1, 1]} : vector<8x256xf32> to vector<8x64xf32>
    %388 = arith.mulf %385, %362 : vector<8x64xf32>
    %389 = arith.mulf %384, %386 : vector<8x64xf32>
    %390 = arith.addf %388, %389 : vector<8x64xf32>
    %391 = math.tanh %390 : vector<8x64xf32>
    %392 = arith.mulf %387, %391 : vector<8x64xf32>
    %393 = vector.extract_strided_slice %0 {offsets = [8, 0], sizes = [8, 1], strides = [1, 1]} : vector<48x1xf32> to vector<8x1xf32>
    %394 = vector.extract_strided_slice %0 {offsets = [32, 0], sizes = [8, 1], strides = [1, 1]} : vector<48x1xf32> to vector<8x1xf32>
    %395 = vector.shape_cast %44 : vector<1x64xi1> to vector<1x64xi1>
    %396 = vector.broadcast %395 : vector<1x64xi1> to vector<8x64xi1>
    %397 = vector.shape_cast %393 : vector<8x1xf32> to vector<8x1xf32>
    %398 = vector.broadcast %397 : vector<8x1xf32> to vector<8x64xf32>
    %399 = vector.shape_cast %394 : vector<8x1xf32> to vector<8x1xf32>
    %400 = vector.broadcast %399 : vector<8x1xf32> to vector<8x64xf32>
    %401 = arith.select %396, %398, %400 : vector<8x64xi1>, vector<8x64xf32>
    %cst_86 = arith.constant 0.000000e+00 : f32
    %402 = vector.broadcast %cst_86 : f32 to vector<8x64xf32>
    %403 = arith.cmpf ogt, %401, %402 : vector<8x64xf32>
    %404 = arith.select %403, %392, %361 : vector<8x64xi1>, vector<8x64xf32>
    %405 = arith.select %403, %390, %362 : vector<8x64xi1>, vector<8x64xf32>
    %cst_87 = arith.constant 0.000000e+00 : f32
    %406 = vector.broadcast %cst_87 : f32 to vector<8x64xf32>
    %407 = arith.select %403, %392, %406 : vector<8x64xi1>, vector<8x64xf32>
    %408 = vector.extract_strided_slice %407 {offsets = [0, 0], sizes = [8, 32], strides = [1, 1]} : vector<8x64xf32> to vector<8x32xf32>
    %c8_88 = arith.constant 8 : index
    %c0_89 = arith.constant 0 : index
    %409 = vector.load %arg27[%c8_88, %c0_89] : memref<48x64xf32, #tpu.memory_space<vmem>>, vector<8x32xf32>
    tpu.vector_store %arg27[%c8_88, %c0_89], %408 {strides = array<i32>} : memref<48x64xf32, #tpu.memory_space<vmem>>, vector<8x32xf32>,
    %410 = vector.extract_strided_slice %407 {offsets = [0, 32], sizes = [8, 32], strides = [1, 1]} : vector<8x64xf32> to vector<8x32xf32>
    %c32_90 = arith.constant 32 : index
    %c32_91 = arith.constant 32 : index
    %411 = vector.load %arg27[%c32_90, %c32_91] : memref<48x64xf32, #tpu.memory_space<vmem>>, vector<8x32xf32>
    tpu.vector_store %arg27[%c32_90, %c32_91], %410 {strides = array<i32>} : memref<48x64xf32, #tpu.memory_space<vmem>>, vector<8x32xf32>,
    %412 = vector.extract_strided_slice %321 {offsets = [16, 0], sizes = [8, 256], strides = [1, 1]} : vector<48x256xf32> to vector<8x256xf32>
    %413 = vector.extract_strided_slice %322 {offsets = [24, 0], sizes = [8, 256], strides = [1, 1]} : vector<48x256xf32> to vector<8x256xf32>
    %414 = arith.addf %412, %413 : vector<8x256xf32>
    %415 = arith.truncf %404 : vector<8x64xf32> to vector<8x64xbf16>
    %cst_92 = arith.constant dense<0.000000e+00> : vector<8x256xf32>
    %416 = tpu.matmul %415, %323, %cst_92 {dimension_numbers = #tpu.dot_dimension_numbers<[1], [0], [0], [1], [0, 0, 1, 1], [], []>} : vector<8x64xbf16>, vector<64x256xbf16>, vector<8x256xf32> -> vector<8x256xf32>
    %417 = arith.addf %414, %416 : vector<8x256xf32>
    %418 = math.tanh %417 : vector<8x256xf32>
    %419 = arith.negf %417 : vector<8x256xf32>
    %420 = math.exp %419 : vector<8x256xf32>
    %cst_93 = arith.constant 1.000000e+00 : f32
    %421 = vector.broadcast %cst_93 : f32 to vector<8x256xf32>
    %422 = arith.addf %421, %420 : vector<8x256xf32>
    %423 = arith.divf %421, %422 : vector<8x256xf32>
    %424 = vector.shape_cast %41 : vector<1x256xi1> to vector<1x256xi1>
    %425 = vector.broadcast %424 : vector<1x256xi1> to vector<8x256xi1>
    %426 = arith.select %425, %418, %423 : vector<8x256xi1>, vector<8x256xf32>
    %427 = vector.extract_strided_slice %426 {offsets = [0, 0], sizes = [8, 64], strides = [1, 1]} : vector<8x256xf32> to vector<8x64xf32>
    %428 = vector.extract_strided_slice %426 {offsets = [0, 64], sizes = [8, 64], strides = [1, 1]} : vector<8x256xf32> to vector<8x64xf32>
    %429 = vector.extract_strided_slice %426 {offsets = [0, 128], sizes = [8, 64], strides = [1, 1]} : vector<8x256xf32> to vector<8x64xf32>
    %430 = vector.extract_strided_slice %426 {offsets = [0, 192], sizes = [8, 64], strides = [1, 1]} : vector<8x256xf32> to vector<8x64xf32>
    %431 = arith.mulf %428, %405 : vector<8x64xf32>
    %432 = arith.mulf %427, %429 : vector<8x64xf32>
    %433 = arith.addf %431, %432 : vector<8x64xf32>
    %434 = math.tanh %433 : vector<8x64xf32>
    %435 = arith.mulf %430, %434 : vector<8x64xf32>
    %436 = vector.extract_strided_slice %0 {offsets = [16, 0], sizes = [8, 1], strides = [1, 1]} : vector<48x1xf32> to vector<8x1xf32>
    %437 = vector.extract_strided_slice %0 {offsets = [24, 0], sizes = [8, 1], strides = [1, 1]} : vector<48x1xf32> to vector<8x1xf32>
    %438 = vector.shape_cast %44 : vector<1x64xi1> to vector<1x64xi1>
    %439 = vector.broadcast %438 : vector<1x64xi1> to vector<8x64xi1>
    %440 = vector.shape_cast %436 : vector<8x1xf32> to vector<8x1xf32>
    %441 = vector.broadcast %440 : vector<8x1xf32> to vector<8x64xf32>
    %442 = vector.shape_cast %437 : vector<8x1xf32> to vector<8x1xf32>
    %443 = vector.broadcast %442 : vector<8x1xf32> to vector<8x64xf32>
    %444 = arith.select %439, %441, %443 : vector<8x64xi1>, vector<8x64xf32>
    %cst_94 = arith.constant 0.000000e+00 : f32
    %445 = vector.broadcast %cst_94 : f32 to vector<8x64xf32>
    %446 = arith.cmpf ogt, %444, %445 : vector<8x64xf32>
    %447 = arith.select %446, %435, %404 : vector<8x64xi1>, vector<8x64xf32>
    %448 = arith.select %446, %433, %405 : vector<8x64xi1>, vector<8x64xf32>
    %cst_95 = arith.constant 0.000000e+00 : f32
    %449 = vector.broadcast %cst_95 : f32 to vector<8x64xf32>
    %450 = arith.select %446, %435, %449 : vector<8x64xi1>, vector<8x64xf32>
    %451 = vector.extract_strided_slice %450 {offsets = [0, 0], sizes = [8, 32], strides = [1, 1]} : vector<8x64xf32> to vector<8x32xf32>
    %c16_96 = arith.constant 16 : index
    %c0_97 = arith.constant 0 : index
    %452 = vector.load %arg27[%c16_96, %c0_97] : memref<48x64xf32, #tpu.memory_space<vmem>>, vector<8x32xf32>
    tpu.vector_store %arg27[%c16_96, %c0_97], %451 {strides = array<i32>} : memref<48x64xf32, #tpu.memory_space<vmem>>, vector<8x32xf32>,
    %453 = vector.extract_strided_slice %450 {offsets = [0, 32], sizes = [8, 32], strides = [1, 1]} : vector<8x64xf32> to vector<8x32xf32>
    %c24_98 = arith.constant 24 : index
    %c32_99 = arith.constant 32 : index
    %454 = vector.load %arg27[%c24_98, %c32_99] : memref<48x64xf32, #tpu.memory_space<vmem>>, vector<8x32xf32>
    tpu.vector_store %arg27[%c24_98, %c32_99], %453 {strides = array<i32>} : memref<48x64xf32, #tpu.memory_space<vmem>>, vector<8x32xf32>,
    %455 = vector.extract_strided_slice %321 {offsets = [24, 0], sizes = [8, 256], strides = [1, 1]} : vector<48x256xf32> to vector<8x256xf32>
    %456 = vector.extract_strided_slice %322 {offsets = [16, 0], sizes = [8, 256], strides = [1, 1]} : vector<48x256xf32> to vector<8x256xf32>
    %457 = arith.addf %455, %456 : vector<8x256xf32>
    %458 = arith.truncf %447 : vector<8x64xf32> to vector<8x64xbf16>
    %cst_100 = arith.constant dense<0.000000e+00> : vector<8x256xf32>
    %459 = tpu.matmul %458, %323, %cst_100 {dimension_numbers = #tpu.dot_dimension_numbers<[1], [0], [0], [1], [0, 0, 1, 1], [], []>} : vector<8x64xbf16>, vector<64x256xbf16>, vector<8x256xf32> -> vector<8x256xf32>
    %460 = arith.addf %457, %459 : vector<8x256xf32>
    %461 = math.tanh %460 : vector<8x256xf32>
    %462 = arith.negf %460 : vector<8x256xf32>
    %463 = math.exp %462 : vector<8x256xf32>
    %cst_101 = arith.constant 1.000000e+00 : f32
    %464 = vector.broadcast %cst_101 : f32 to vector<8x256xf32>
    %465 = arith.addf %464, %463 : vector<8x256xf32>
    %466 = arith.divf %464, %465 : vector<8x256xf32>
    %467 = vector.shape_cast %41 : vector<1x256xi1> to vector<1x256xi1>
    %468 = vector.broadcast %467 : vector<1x256xi1> to vector<8x256xi1>
    %469 = arith.select %468, %461, %466 : vector<8x256xi1>, vector<8x256xf32>
    %470 = vector.extract_strided_slice %469 {offsets = [0, 0], sizes = [8, 64], strides = [1, 1]} : vector<8x256xf32> to vector<8x64xf32>
    %471 = vector.extract_strided_slice %469 {offsets = [0, 64], sizes = [8, 64], strides = [1, 1]} : vector<8x256xf32> to vector<8x64xf32>
    %472 = vector.extract_strided_slice %469 {offsets = [0, 128], sizes = [8, 64], strides = [1, 1]} : vector<8x256xf32> to vector<8x64xf32>
    %473 = vector.extract_strided_slice %469 {offsets = [0, 192], sizes = [8, 64], strides = [1, 1]} : vector<8x256xf32> to vector<8x64xf32>
    %474 = arith.mulf %471, %448 : vector<8x64xf32>
    %475 = arith.mulf %470, %472 : vector<8x64xf32>
    %476 = arith.addf %474, %475 : vector<8x64xf32>
    %477 = math.tanh %476 : vector<8x64xf32>
    %478 = arith.mulf %473, %477 : vector<8x64xf32>
    %479 = vector.extract_strided_slice %0 {offsets = [24, 0], sizes = [8, 1], strides = [1, 1]} : vector<48x1xf32> to vector<8x1xf32>
    %480 = vector.extract_strided_slice %0 {offsets = [16, 0], sizes = [8, 1], strides = [1, 1]} : vector<48x1xf32> to vector<8x1xf32>
    %481 = vector.shape_cast %44 : vector<1x64xi1> to vector<1x64xi1>
    %482 = vector.broadcast %481 : vector<1x64xi1> to vector<8x64xi1>
    %483 = vector.shape_cast %479 : vector<8x1xf32> to vector<8x1xf32>
    %484 = vector.broadcast %483 : vector<8x1xf32> to vector<8x64xf32>
    %485 = vector.shape_cast %480 : vector<8x1xf32> to vector<8x1xf32>
    %486 = vector.broadcast %485 : vector<8x1xf32> to vector<8x64xf32>
    %487 = arith.select %482, %484, %486 : vector<8x64xi1>, vector<8x64xf32>
    %cst_102 = arith.constant 0.000000e+00 : f32
    %488 = vector.broadcast %cst_102 : f32 to vector<8x64xf32>
    %489 = arith.cmpf ogt, %487, %488 : vector<8x64xf32>
    %490 = arith.select %489, %478, %447 : vector<8x64xi1>, vector<8x64xf32>
    %491 = arith.select %489, %476, %448 : vector<8x64xi1>, vector<8x64xf32>
    %cst_103 = arith.constant 0.000000e+00 : f32
    %492 = vector.broadcast %cst_103 : f32 to vector<8x64xf32>
    %493 = arith.select %489, %478, %492 : vector<8x64xi1>, vector<8x64xf32>
    %494 = vector.extract_strided_slice %493 {offsets = [0, 0], sizes = [8, 32], strides = [1, 1]} : vector<8x64xf32> to vector<8x32xf32>
    %c24_104 = arith.constant 24 : index
    %c0_105 = arith.constant 0 : index
    %495 = vector.load %arg27[%c24_104, %c0_105] : memref<48x64xf32, #tpu.memory_space<vmem>>, vector<8x32xf32>
    tpu.vector_store %arg27[%c24_104, %c0_105], %494 {strides = array<i32>} : memref<48x64xf32, #tpu.memory_space<vmem>>, vector<8x32xf32>,
    %496 = vector.extract_strided_slice %493 {offsets = [0, 32], sizes = [8, 32], strides = [1, 1]} : vector<8x64xf32> to vector<8x32xf32>
    %c16_106 = arith.constant 16 : index
    %c32_107 = arith.constant 32 : index
    %497 = vector.load %arg27[%c16_106, %c32_107] : memref<48x64xf32, #tpu.memory_space<vmem>>, vector<8x32xf32>
    tpu.vector_store %arg27[%c16_106, %c32_107], %496 {strides = array<i32>} : memref<48x64xf32, #tpu.memory_space<vmem>>, vector<8x32xf32>,
    %498 = vector.extract_strided_slice %321 {offsets = [32, 0], sizes = [8, 256], strides = [1, 1]} : vector<48x256xf32> to vector<8x256xf32>
    %499 = vector.extract_strided_slice %322 {offsets = [8, 0], sizes = [8, 256], strides = [1, 1]} : vector<48x256xf32> to vector<8x256xf32>
    %500 = arith.addf %498, %499 : vector<8x256xf32>
    %501 = arith.truncf %490 : vector<8x64xf32> to vector<8x64xbf16>
    %cst_108 = arith.constant dense<0.000000e+00> : vector<8x256xf32>
    %502 = tpu.matmul %501, %323, %cst_108 {dimension_numbers = #tpu.dot_dimension_numbers<[1], [0], [0], [1], [0, 0, 1, 1], [], []>} : vector<8x64xbf16>, vector<64x256xbf16>, vector<8x256xf32> -> vector<8x256xf32>
    %503 = arith.addf %500, %502 : vector<8x256xf32>
    %504 = math.tanh %503 : vector<8x256xf32>
    %505 = arith.negf %503 : vector<8x256xf32>
    %506 = math.exp %505 : vector<8x256xf32>
    %cst_109 = arith.constant 1.000000e+00 : f32
    %507 = vector.broadcast %cst_109 : f32 to vector<8x256xf32>
    %508 = arith.addf %507, %506 : vector<8x256xf32>
    %509 = arith.divf %507, %508 : vector<8x256xf32>
    %510 = vector.shape_cast %41 : vector<1x256xi1> to vector<1x256xi1>
    %511 = vector.broadcast %510 : vector<1x256xi1> to vector<8x256xi1>
    %512 = arith.select %511, %504, %509 : vector<8x256xi1>, vector<8x256xf32>
    %513 = vector.extract_strided_slice %512 {offsets = [0, 0], sizes = [8, 64], strides = [1, 1]} : vector<8x256xf32> to vector<8x64xf32>
    %514 = vector.extract_strided_slice %512 {offsets = [0, 64], sizes = [8, 64], strides = [1, 1]} : vector<8x256xf32> to vector<8x64xf32>
    %515 = vector.extract_strided_slice %512 {offsets = [0, 128], sizes = [8, 64], strides = [1, 1]} : vector<8x256xf32> to vector<8x64xf32>
    %516 = vector.extract_strided_slice %512 {offsets = [0, 192], sizes = [8, 64], strides = [1, 1]} : vector<8x256xf32> to vector<8x64xf32>
    %517 = arith.mulf %514, %491 : vector<8x64xf32>
    %518 = arith.mulf %513, %515 : vector<8x64xf32>
    %519 = arith.addf %517, %518 : vector<8x64xf32>
    %520 = math.tanh %519 : vector<8x64xf32>
    %521 = arith.mulf %516, %520 : vector<8x64xf32>
    %522 = vector.extract_strided_slice %0 {offsets = [32, 0], sizes = [8, 1], strides = [1, 1]} : vector<48x1xf32> to vector<8x1xf32>
    %523 = vector.extract_strided_slice %0 {offsets = [8, 0], sizes = [8, 1], strides = [1, 1]} : vector<48x1xf32> to vector<8x1xf32>
    %524 = vector.shape_cast %44 : vector<1x64xi1> to vector<1x64xi1>
    %525 = vector.broadcast %524 : vector<1x64xi1> to vector<8x64xi1>
    %526 = vector.shape_cast %522 : vector<8x1xf32> to vector<8x1xf32>
    %527 = vector.broadcast %526 : vector<8x1xf32> to vector<8x64xf32>
    %528 = vector.shape_cast %523 : vector<8x1xf32> to vector<8x1xf32>
    %529 = vector.broadcast %528 : vector<8x1xf32> to vector<8x64xf32>
    %530 = arith.select %525, %527, %529 : vector<8x64xi1>, vector<8x64xf32>
    %cst_110 = arith.constant 0.000000e+00 : f32
    %531 = vector.broadcast %cst_110 : f32 to vector<8x64xf32>
    %532 = arith.cmpf ogt, %530, %531 : vector<8x64xf32>
    %533 = arith.select %532, %521, %490 : vector<8x64xi1>, vector<8x64xf32>
    %534 = arith.select %532, %519, %491 : vector<8x64xi1>, vector<8x64xf32>
    %cst_111 = arith.constant 0.000000e+00 : f32
    %535 = vector.broadcast %cst_111 : f32 to vector<8x64xf32>
    %536 = arith.select %532, %521, %535 : vector<8x64xi1>, vector<8x64xf32>
    %537 = vector.extract_strided_slice %536 {offsets = [0, 0], sizes = [8, 32], strides = [1, 1]} : vector<8x64xf32> to vector<8x32xf32>
    %c32_112 = arith.constant 32 : index
    %c0_113 = arith.constant 0 : index
    %538 = vector.load %arg27[%c32_112, %c0_113] : memref<48x64xf32, #tpu.memory_space<vmem>>, vector<8x32xf32>
    tpu.vector_store %arg27[%c32_112, %c0_113], %537 {strides = array<i32>} : memref<48x64xf32, #tpu.memory_space<vmem>>, vector<8x32xf32>,
    %539 = vector.extract_strided_slice %536 {offsets = [0, 32], sizes = [8, 32], strides = [1, 1]} : vector<8x64xf32> to vector<8x32xf32>
    %c8_114 = arith.constant 8 : index
    %c32_115 = arith.constant 32 : index
    %540 = vector.load %arg27[%c8_114, %c32_115] : memref<48x64xf32, #tpu.memory_space<vmem>>, vector<8x32xf32>
    tpu.vector_store %arg27[%c8_114, %c32_115], %539 {strides = array<i32>} : memref<48x64xf32, #tpu.memory_space<vmem>>, vector<8x32xf32>,
    %541 = vector.extract_strided_slice %321 {offsets = [40, 0], sizes = [8, 256], strides = [1, 1]} : vector<48x256xf32> to vector<8x256xf32>
    %542 = vector.extract_strided_slice %322 {offsets = [0, 0], sizes = [8, 256], strides = [1, 1]} : vector<48x256xf32> to vector<8x256xf32>
    %543 = arith.addf %541, %542 : vector<8x256xf32>
    %544 = arith.truncf %533 : vector<8x64xf32> to vector<8x64xbf16>
    %cst_116 = arith.constant dense<0.000000e+00> : vector<8x256xf32>
    %545 = tpu.matmul %544, %323, %cst_116 {dimension_numbers = #tpu.dot_dimension_numbers<[1], [0], [0], [1], [0, 0, 1, 1], [], []>} : vector<8x64xbf16>, vector<64x256xbf16>, vector<8x256xf32> -> vector<8x256xf32>
    %546 = arith.addf %543, %545 : vector<8x256xf32>
    %547 = math.tanh %546 : vector<8x256xf32>
    %548 = arith.negf %546 : vector<8x256xf32>
    %549 = math.exp %548 : vector<8x256xf32>
    %cst_117 = arith.constant 1.000000e+00 : f32
    %550 = vector.broadcast %cst_117 : f32 to vector<8x256xf32>
    %551 = arith.addf %550, %549 : vector<8x256xf32>
    %552 = arith.divf %550, %551 : vector<8x256xf32>
    %553 = vector.shape_cast %41 : vector<1x256xi1> to vector<1x256xi1>
    %554 = vector.broadcast %553 : vector<1x256xi1> to vector<8x256xi1>
    %555 = arith.select %554, %547, %552 : vector<8x256xi1>, vector<8x256xf32>
    %556 = vector.extract_strided_slice %555 {offsets = [0, 0], sizes = [8, 64], strides = [1, 1]} : vector<8x256xf32> to vector<8x64xf32>
    %557 = vector.extract_strided_slice %555 {offsets = [0, 64], sizes = [8, 64], strides = [1, 1]} : vector<8x256xf32> to vector<8x64xf32>
    %558 = vector.extract_strided_slice %555 {offsets = [0, 128], sizes = [8, 64], strides = [1, 1]} : vector<8x256xf32> to vector<8x64xf32>
    %559 = vector.extract_strided_slice %555 {offsets = [0, 192], sizes = [8, 64], strides = [1, 1]} : vector<8x256xf32> to vector<8x64xf32>
    %560 = arith.mulf %557, %534 : vector<8x64xf32>
    %561 = arith.mulf %556, %558 : vector<8x64xf32>
    %562 = arith.addf %560, %561 : vector<8x64xf32>
    %563 = math.tanh %562 : vector<8x64xf32>
    %564 = arith.mulf %559, %563 : vector<8x64xf32>
    %565 = vector.extract_strided_slice %0 {offsets = [40, 0], sizes = [8, 1], strides = [1, 1]} : vector<48x1xf32> to vector<8x1xf32>
    %566 = vector.extract_strided_slice %0 {offsets = [0, 0], sizes = [8, 1], strides = [1, 1]} : vector<48x1xf32> to vector<8x1xf32>
    %567 = vector.shape_cast %44 : vector<1x64xi1> to vector<1x64xi1>
    %568 = vector.broadcast %567 : vector<1x64xi1> to vector<8x64xi1>
    %569 = vector.shape_cast %565 : vector<8x1xf32> to vector<8x1xf32>
    %570 = vector.broadcast %569 : vector<8x1xf32> to vector<8x64xf32>
    %571 = vector.shape_cast %566 : vector<8x1xf32> to vector<8x1xf32>
    %572 = vector.broadcast %571 : vector<8x1xf32> to vector<8x64xf32>
    %573 = arith.select %568, %570, %572 : vector<8x64xi1>, vector<8x64xf32>
    %cst_118 = arith.constant 0.000000e+00 : f32
    %574 = vector.broadcast %cst_118 : f32 to vector<8x64xf32>
    %575 = arith.cmpf ogt, %573, %574 : vector<8x64xf32>
    %cst_119 = arith.constant 0.000000e+00 : f32
    %576 = vector.broadcast %cst_119 : f32 to vector<8x64xf32>
    %577 = arith.select %575, %564, %576 : vector<8x64xi1>, vector<8x64xf32>
    %578 = vector.extract_strided_slice %577 {offsets = [0, 0], sizes = [8, 32], strides = [1, 1]} : vector<8x64xf32> to vector<8x32xf32>
    %c40_120 = arith.constant 40 : index
    %c0_121 = arith.constant 0 : index
    %579 = vector.load %arg27[%c40_120, %c0_121] : memref<48x64xf32, #tpu.memory_space<vmem>>, vector<8x32xf32>
    tpu.vector_store %arg27[%c40_120, %c0_121], %578 {strides = array<i32>} : memref<48x64xf32, #tpu.memory_space<vmem>>, vector<8x32xf32>,
    %580 = vector.extract_strided_slice %577 {offsets = [0, 32], sizes = [8, 32], strides = [1, 1]} : vector<8x64xf32> to vector<8x32xf32>
    %c0_122 = arith.constant 0 : index
    %c32_123 = arith.constant 32 : index
    %581 = vector.load %arg27[%c0_122, %c32_123] : memref<48x64xf32, #tpu.memory_space<vmem>>, vector<8x32xf32>
    tpu.vector_store %arg27[%c0_122, %c32_123], %580 {strides = array<i32>} : memref<48x64xf32, #tpu.memory_space<vmem>>, vector<8x32xf32>,
    %c0_124 = arith.constant 0 : index
    %c0_125 = arith.constant 0 : index
    %582 = vector.load %arg27[%c0_124, %c0_125] : memref<48x64xf32, #tpu.memory_space<vmem>>, vector<48x64xf32>
    %583 = arith.truncf %582 : vector<48x64xf32> to vector<48x64xbf16>
    %c0_126 = arith.constant 0 : index
    %c0_127 = arith.constant 0 : index
    %584 = vector.load %arg14[%c0_126, %c0_127] : memref<64x64xbf16, #tpu.memory_space<vmem>>, vector<64x64xbf16>
    %cst_128 = arith.constant dense<0.000000e+00> : vector<48x64xf32>
    %585 = tpu.matmul %583, %584, %cst_128 {dimension_numbers = #tpu.dot_dimension_numbers<[1], [0], [0], [1], [0, 0, 1, 1], [], []>} : vector<48x64xbf16>, vector<64x64xbf16>, vector<48x64xf32> -> vector<48x64xf32>
    %c0_129 = arith.constant 0 : index
    %c0_130 = arith.constant 0 : index
    %586 = vector.load %arg15[%c0_129, %c0_130] : memref<1x64xf32, #tpu.memory_space<vmem>>, vector<1x64xf32>
    %587 = vector.broadcast %586 : vector<1x64xf32> to vector<48x64xf32>
    %588 = arith.addf %585, %587 : vector<48x64xf32>
    %cst_131 = arith.constant 0.000000e+00 : f32
    %589 = vector.broadcast %cst_131 : f32 to vector<48x64xf32>
    %590 = arith.maximumf %588, %589 : vector<48x64xf32>
    %591 = arith.truncf %590 : vector<48x64xf32> to vector<48x64xbf16>
    %c0_132 = arith.constant 0 : index
    %c0_133 = arith.constant 0 : index
    %592 = vector.load %arg16[%c0_132, %c0_133] : memref<64x128xbf16, #tpu.memory_space<vmem>>, vector<64x128xbf16>
    %cst_134 = arith.constant dense<0.000000e+00> : vector<48x128xf32>
    %593 = tpu.matmul %591, %592, %cst_134 {dimension_numbers = #tpu.dot_dimension_numbers<[1], [0], [0], [1], [0, 0, 1, 1], [], []>} : vector<48x64xbf16>, vector<64x128xbf16>, vector<48x128xf32> -> vector<48x128xf32>
    %c0_135 = arith.constant 0 : index
    %c0_136 = arith.constant 0 : index
    %594 = vector.load %arg17[%c0_135, %c0_136] : memref<1x128xf32, #tpu.memory_space<vmem>>, vector<1x128xf32>
    %595 = vector.broadcast %594 : vector<1x128xf32> to vector<48x128xf32>
    %596 = arith.addf %593, %595 : vector<48x128xf32>
    %cst_137 = arith.constant dense<0xFF800000> : vector<128xf32>
    %597 = vector.multi_reduction <maximumf>, %596, %cst_137 [0] : vector<48x128xf32> to vector<128xf32>
    %598 = vector.shape_cast %597 : vector<128xf32> to vector<1x128xf32>
    %599 = vector.broadcast %598 : vector<1x128xf32> to vector<48x128xf32>
    %600 = arith.subf %596, %599 : vector<48x128xf32>
    %601 = math.exp %600 : vector<48x128xf32>
    %c0_138 = arith.constant 0 : index
    %c0_139 = arith.constant 0 : index
    %602 = vector.load %arg3[%c0_138, %c0_139] : memref<48x1xf32, #tpu.memory_space<vmem>>, vector<48x1xf32>
    %603 = vector.broadcast %602 : vector<48x1xf32> to vector<48x128xf32>
    %604 = arith.mulf %601, %603 : vector<48x128xf32>
    %605 = tpu.concatenate %582, %582 in 1 : vector<48x64xf32>, vector<48x64xf32> -> vector<48x128xf32>
    %c0_140 = arith.constant 0 : index
    %c0_141 = arith.constant 0 : index
    %606 = vector.load %arg4[%c0_140, %c0_141] : memref<4x48xf32, #tpu.memory_space<vmem>>, vector<4x48xf32>
    %cst_142 = arith.constant dense<0.000000e+00> : vector<4x128xf32>
    %607 = tpu.matmul %606, %604, %cst_142 {dimension_numbers = #tpu.dot_dimension_numbers<[1], [0], [0], [1], [0, 0, 1, 1], [], []>} : vector<4x48xf32>, vector<48x128xf32>, vector<4x128xf32> -> vector<4x128xf32>
    %608 = arith.mulf %604, %605 : vector<48x128xf32>
    %cst_143 = arith.constant dense<0.000000e+00> : vector<4x128xf32>
    %609 = tpu.matmul %606, %608, %cst_143 {dimension_numbers = #tpu.dot_dimension_numbers<[1], [0], [0], [1], [0, 0, 1, 1], [], []>} : vector<4x48xf32>, vector<48x128xf32>, vector<4x128xf32> -> vector<4x128xf32>
    %610 = arith.divf %609, %607 : vector<4x128xf32>
    %611 = vector.extract_strided_slice %610 {offsets = [0, 0], sizes = [2, 128], strides = [1, 1]} : vector<4x128xf32> to vector<2x128xf32>
    %612 = vector.extract_strided_slice %610 {offsets = [2, 0], sizes = [2, 128], strides = [1, 1]} : vector<4x128xf32> to vector<2x128xf32>
    %613 = arith.subf %611, %612 : vector<2x128xf32>
    %614 = math.absf %613 : vector<2x128xf32>
    %615 = arith.mulf %611, %612 : vector<2x128xf32>
    %616 = tpu.concatenate %611, %612, %614, %615 in 1 : vector<2x128xf32>, vector<2x128xf32>, vector<2x128xf32>, vector<2x128xf32> -> vector<2x512xf32>
    %617 = arith.truncf %616 : vector<2x512xf32> to vector<2x512xbf16>
    %c0_144 = arith.constant 0 : index
    %c0_145 = arith.constant 0 : index
    %618 = vector.load %arg18[%c0_144, %c0_145] : memref<512x32xbf16, #tpu.memory_space<vmem>>, vector<512x32xbf16>
    %cst_146 = arith.constant dense<0.000000e+00> : vector<2x32xf32>
    %619 = tpu.matmul %617, %618, %cst_146 {dimension_numbers = #tpu.dot_dimension_numbers<[1], [0], [0], [1], [0, 0, 1, 1], [], []>} : vector<2x512xbf16>, vector<512x32xbf16>, vector<2x32xf32> -> vector<2x32xf32>
    %c0_147 = arith.constant 0 : index
    %c0_148 = arith.constant 0 : index
    %620 = vector.load %arg19[%c0_147, %c0_148] : memref<1x32xf32, #tpu.memory_space<vmem>>, vector<1x32xf32>
    %621 = vector.broadcast %620 : vector<1x32xf32> to vector<2x32xf32>
    %622 = arith.addf %619, %621 : vector<2x32xf32>
    %cst_149 = arith.constant 0.000000e+00 : f32
    %623 = vector.broadcast %cst_149 : f32 to vector<2x32xf32>
    %624 = arith.maximumf %622, %623 : vector<2x32xf32>
    %c0_150 = arith.constant 0 : index
    %c0_151 = arith.constant 0 : index
    %625 = vector.load %arg20[%c0_150, %c0_151] : memref<512x32xbf16, #tpu.memory_space<vmem>>, vector<512x32xbf16>
    %cst_152 = arith.constant dense<0.000000e+00> : vector<2x32xf32>
    %626 = tpu.matmul %617, %625, %cst_152 {dimension_numbers = #tpu.dot_dimension_numbers<[1], [0], [0], [1], [0, 0, 1, 1], [], []>} : vector<2x512xbf16>, vector<512x32xbf16>, vector<2x32xf32> -> vector<2x32xf32>
    %627 = arith.truncf %624 : vector<2x32xf32> to vector<2x32xbf16>
    %c0_153 = arith.constant 0 : index
    %c0_154 = arith.constant 0 : index
    %628 = vector.load %arg21[%c0_153, %c0_154] : memref<32x32xbf16, #tpu.memory_space<vmem>>, vector<32x32xbf16>
    %cst_155 = arith.constant dense<0.000000e+00> : vector<2x32xf32>
    %629 = tpu.matmul %627, %628, %cst_155 {dimension_numbers = #tpu.dot_dimension_numbers<[1], [0], [0], [1], [0, 0, 1, 1], [], []>} : vector<2x32xbf16>, vector<32x32xbf16>, vector<2x32xf32> -> vector<2x32xf32>
    %630 = arith.addf %626, %629 : vector<2x32xf32>
    %c0_156 = arith.constant 0 : index
    %c0_157 = arith.constant 0 : index
    %631 = vector.load %arg22[%c0_156, %c0_157] : memref<1x32xf32, #tpu.memory_space<vmem>>, vector<1x32xf32>
    %632 = vector.broadcast %631 : vector<1x32xf32> to vector<2x32xf32>
    %633 = arith.addf %630, %632 : vector<2x32xf32>
    %cst_158 = arith.constant 0.000000e+00 : f32
    %634 = vector.broadcast %cst_158 : f32 to vector<2x32xf32>
    %635 = arith.maximumf %633, %634 : vector<2x32xf32>
    %636 = arith.truncf %635 : vector<2x32xf32> to vector<2x32xbf16>
    %c0_159 = arith.constant 0 : index
    %c0_160 = arith.constant 0 : index
    %637 = vector.load %arg23[%c0_159, %c0_160] : memref<32x3xbf16, #tpu.memory_space<vmem>>, vector<32x3xbf16>
    %cst_161 = arith.constant dense<0.000000e+00> : vector<2x3xf32>
    %638 = tpu.matmul %636, %637, %cst_161 {dimension_numbers = #tpu.dot_dimension_numbers<[1], [0], [0], [1], [0, 0, 1, 1], [], []>} : vector<2x32xbf16>, vector<32x3xbf16>, vector<2x3xf32> -> vector<2x3xf32>
    %c0_162 = arith.constant 0 : index
    %c0_163 = arith.constant 0 : index
    %639 = vector.load %arg24[%c0_162, %c0_163] : memref<1x3xf32, #tpu.memory_space<vmem>>, vector<1x3xf32>
    %640 = vector.broadcast %639 : vector<1x3xf32> to vector<2x3xf32>
    %641 = arith.addf %638, %640 : vector<2x3xf32>
    %c0_164 = arith.constant 0 : index
    %c0_165 = arith.constant 0 : index
    %642 = vector.load %arg25[%c0_164, %c0_165] : memref<2x3xf32, #tpu.memory_space<vmem>>, vector<2x3xf32>
    tpu.vector_store %arg25[%c0_164, %c0_165], %641 {strides = array<i32>} : memref<2x3xf32, #tpu.memory_space<vmem>>, vector<2x3xf32>,
    return
  }
}

</mosaic_0001>

<llo_original>
// kernel: tile.9
$region0: #{tile.9}
  %s0 = inlined_call_operand.vmem [shape: f32[4,6,8], index: 0, kind: input, shape index: {}]
  %s1 = inlined_call_operand.vmem [shape: f32[4,48], index: 1, kind: output, shape index: {}]
  $region1: #{tile.9} parent=0
    #allocation0 [shape = 'u8[4096]{0}', space=vmem, size = 0x1000, scoped, tag = 'scoped mem for output reshape']
    %v2 = vld [vmem:[%s0] ss:$8 sm:$0xf]
    %vm3 = vcmask 64512
    %4 = vst.msk [vmem:[#allocation0] sm:$0xf] %vm3, %v2
    %s5 = scalar_lea.vmem %s0, 5
    %v6 = vld [vmem:[%s5] ss:$8 sm:$0xf]
    %7 = vrot.lane.b32.xlu0 %v6, 40
    %v8 = vpop.permute.xlu0 %7
    %vm9 = vcmask 392512
    %10 = vst.msk [vmem:[#allocation0] sm:$0xf] %vm9, %v8
    %s11 = scalar_lea.vmem %s0, 4
    %v12 = vld [vmem:[%s11] ss:$8 sm:$0xf]
    %13 = vrot.lane.b32.xlu0 %v12, 32
    %v14 = vpop.permute.xlu0 %13
    %vm15 = vcmask 326912
    %16 = vst.msk [vmem:[#allocation0] sm:$0xf] %vm15, %v14
    %s17 = scalar_lea.vmem %s0, 3
    %v18 = vld [vmem:[%s17] ss:$8 sm:$0xf]
    %19 = vrot.lane.b32.xlu0 %v18, 24
    %v20 = vpop.permute.xlu0 %19
    %vm21 = vcmask 261312
    %22 = vst.msk [vmem:[#allocation0] sm:$0xf] %vm21, %v20
    %s23 = scalar_lea.vmem %s0, 2
    %v24 = vld [vmem:[%s23] ss:$8 sm:$0xf]
    %25 = vrot.lane.b32.xlu0 %v24, 16
    %v26 = vpop.permute.xlu0 %25
    %vm27 = vcmask 195712
    %28 = vst.msk [vmem:[#allocation0] sm:$0xf] %vm27, %v26
    %s29 = scalar_lea.vmem %s0, 1
    %v30 = vld [vmem:[%s29] ss:$8 sm:$0xf]
    %31 = vrot.lane.b32.xlu0 %v30, 8
    %v32 = vpop.permute.xlu0 %31
    %vm33 = vcmask 130112
    %34 = vst.msk [vmem:[#allocation0] sm:$0xf] %vm33, %v32
    %s36 = sshllo.u32 0, 4
    %v38 = vld [vmem:[#allocation0] sm:%s36]
    %s39 = sshllo.u32 0, 4
    %40 = vst [vmem:[%s1] sm:%s39] %v38

// kernel: nn4snli_forward.1
$region0: #{nn4snli_forward.1}
  #allocation0 [shape = 'u32[]', space=smem, size = 0x4, offset = 0x4, fixed_abs, tag = 'smem constant byte address 0x4 - core index']
  #allocation1 [shape = 'u32[144,128]{1,0:T(1,128)}', space=vmem, size = 0x12000, scoped, tag = 'internal scratch']
  #allocation2 [shape = 'f32[48,64]{1,0:T(8,128)}', space=vmem, size = 0x6000, scoped, tag = 'scratch operand']
  #allocation3 [shape = 'f32[48,64]{1,0:T(8,128)}', space=vmem, size = 0x6000, scoped, tag = 'scratch operand']
  %s0 = inlined_call_operand.vmem [shape: f32[48,32], index: 0, kind: input, shape index: {}]
  %s1 = inlined_call_operand.vmem [shape: bf16[48,64], index: 1, kind: input, shape index: {}]
  %s2 = inlined_call_operand.vmem [shape: f32[48,1], index: 2, kind: input, shape index: {}]
  %s3 = inlined_call_operand.vmem [shape: f32[48,1], index: 3, kind: input, shape index: {}]
  %s4 = inlined_call_operand.vmem [shape: f32[4,48], index: 4, kind: input, shape index: {}]
  %s5 = inlined_call_operand.vmem [shape: bf16[64,208], index: 5, kind: input, shape index: {}]
  %s6 = inlined_call_operand.vmem [shape: f32[1,208], index: 6, kind: input, shape index: {}]
  %s7 = inlined_call_operand.vmem [shape: bf16[64,512], index: 7, kind: input, shape index: {}]
  %s8 = inlined_call_operand.vmem [shape: f32[1,512], index: 8, kind: input, shape index: {}]
  %s9 = inlined_call_operand.vmem [shape: bf16[64,256], index: 9, kind: input, shape index: {}]
  %s10 = inlined_call_operand.vmem [shape: bf16[64,512], index: 10, kind: input, shape index: {}]
  %s11 = inlined_call_operand.vmem [shape: bf16[64,512], index: 11, kind: input, shape index: {}]
  %s12 = inlined_call_operand.vmem [shape: f32[1,512], index: 12, kind: input, shape index: {}]
  %s13 = inlined_call_operand.vmem [shape: bf16[64,256], index: 13, kind: input, shape index: {}]
  %s14 = inlined_call_operand.vmem [shape: bf16[64,64], index: 14, kind: input, shape index: {}]
  %s15 = inlined_call_operand.vmem [shape: f32[1,64], index: 15, kind: input, shape index: {}]
  %s16 = inlined_call_operand.vmem [shape: bf16[64,128], index: 16, kind: input, shape index: {}]
  %s17 = inlined_call_operand.vmem [shape: f32[1,128], index: 17, kind: input, shape index: {}]
  %s18 = inlined_call_operand.vmem [shape: bf16[512,32], index: 18, kind: input, shape index: {}]
  %s19 = inlined_call_operand.vmem [shape: f32[1,32], index: 19, kind: input, shape index: {}]
  %s20 = inlined_call_operand.vmem [shape: bf16[512,32], index: 20, kind: input, shape index: {}]
  %s21 = inlined_call_operand.vmem [shape: bf16[32,32], index: 21, kind: input, shape index: {}]
  %s22 = inlined_call_operand.vmem [shape: f32[1,32], index: 22, kind: input, shape index: {}]
  %s23 = inlined_call_operand.vmem [shape: bf16[32,3], index: 23, kind: input, shape index: {}]
  %s24 = inlined_call_operand.vmem [shape: f32[1,3], index: 24, kind: input, shape index: {}]
  %s25 = inlined_call_operand.hbm [shape: f32[2,3], index: 25, kind: output, shape index: {}]
  %s26 = sld [smem:[#allocation0]]
  $region110: #{nn4snli_forward.1} parent=0
    _
  %s28 = ssub.s32 1, %s26
  %s29 = scalar_select 0, %s28, %s26
  $region1: #{nn4snli_forward.1} parent=0
    #allocation4 [shape = 'u8[1024]{0}', space=vmem, size = 0x400, scoped, tag = 'output window, operand 0, single buffered']
    #allocation5 [shape = 's32[1]{0}', space=sflag, size = 0x4, scoped, tag = 'scoped memory for nn4snli_forward.1']
    %30 = vsyncpa [#allocation5], 0
    // Predicated region
    $region2: #{nn4snli_forward.1} parent=1 // pred_check
      _
    $region3: #{nn4snli_forward.1} parent=1 // pred_check_branch
      %32 = sbr.rel (0) target = $region5
    $region4: #{nn4snli_forward.1} parent=1 // pred_region
      _
    $region5: #{nn4snli_forward.1} parent=1 // pred_fallthru
      _
    // Predicated region
    $region6: #{nn4snli_forward.1} parent=1 // pred_check
      _
    $region7: #{nn4snli_forward.1} parent=1 // pred_check_branch
      %34 = sbr.rel (0) target = $region9
    $region8: #{nn4snli_forward.1} parent=1 // pred_region
      _
    $region9: #{nn4snli_forward.1} parent=1 // pred_fallthru
      _
    // Predicated region
    $region10: #{nn4snli_forward.1} parent=1 // pred_check
      _
    $region11: #{nn4snli_forward.1} parent=1 // pred_check_branch
      %36 = sbr.rel (0) target = $region13
    $region12: #{nn4snli_forward.1} parent=1 // pred_region
      _
    $region13: #{nn4snli_forward.1} parent=1 // pred_fallthru
      _
    // Predicated region
    $region14: #{nn4snli_forward.1} parent=1 // pred_check
      _
    $region15: #{nn4snli_forward.1} parent=1 // pred_check_branch
      %38 = sbr.rel (0) target = $region17
    $region16: #{nn4snli_forward.1} parent=1 // pred_region
      _
    $region17: #{nn4snli_forward.1} parent=1 // pred_fallthru
      _
    // Predicated region
    $region18: #{nn4snli_forward.1} parent=1 // pred_check
      _
    $region19: #{nn4snli_forward.1} parent=1 // pred_check_branch
      %40 = sbr.rel (0) target = $region21
    $region20: #{nn4snli_forward.1} parent=1 // pred_region
      _
    $region21: #{nn4snli_forward.1} parent=1 // pred_fallthru
      _
    // Predicated region
    $region22: #{nn4snli_forward.1} parent=1 // pred_check
      _
    $region23: #{nn4snli_forward.1} parent=1 // pred_check_branch
      %42 = sbr.rel (0) target = $region25
    $region24: #{nn4snli_forward.1} parent=1 // pred_region
      _
    $region25: #{nn4snli_forward.1} parent=1 // pred_fallthru
      _
    // Predicated region
    $region26: #{nn4snli_forward.1} parent=1 // pred_check
      _
    $region27: #{nn4snli_forward.1} parent=1 // pred_check_branch
      %44 = sbr.rel (0) target = $region29
    $region28: #{nn4snli_forward.1} parent=1 // pred_region
      _
    $region29: #{nn4snli_forward.1} parent=1 // pred_fallthru
      _
    // Predicated region
    $region30: #{nn4snli_forward.1} parent=1 // pred_check
      _
    $region31: #{nn4snli_forward.1} parent=1 // pred_check_branch
      %46 = sbr.rel (0) target = $region33
    $region32: #{nn4snli_forward.1} parent=1 // pred_region
      _
    $region33: #{nn4snli_forward.1} parent=1 // pred_fallthru
      _
    // Predicated region
    $region34: #{nn4snli_forward.1} parent=1 // pred_check
      _
    $region35: #{nn4snli_forward.1} parent=1 // pred_check_branch
      %48 = sbr.rel (0) target = $region37
    $region36: #{nn4snli_forward.1} parent=1 // pred_region
      _
    $region37: #{nn4snli_forward.1} parent=1 // pred_fallthru
      _
    // Predicated region
    $region38: #{nn4snli_forward.1} parent=1 // pred_check
      _
    $region39: #{nn4snli_forward.1} parent=1 // pred_check_branch
      %50 = sbr.rel (0) target = $region41
    $region40: #{nn4snli_forward.1} parent=1 // pred_region
      _
    $region41: #{nn4snli_forward.1} parent=1 // pred_fallthru
      _
    // Predicated region
    $region42: #{nn4snli_forward.1} parent=1 // pred_check
      _
    $region43: #{nn4snli_forward.1} parent=1 // pred_check_branch
      %52 = sbr.rel (0) target = $region45
    $region44: #{nn4snli_forward.1} parent=1 // pred_region
      _
    $region45: #{nn4snli_forward.1} parent=1 // pred_fallthru
      _
    // Predicated region
    $region46: #{nn4snli_forward.1} parent=1 // pred_check
      _
    $region47: #{nn4snli_forward.1} parent=1 // pred_check_branch
      %54 = sbr.rel (0) target = $region49
    $region48: #{nn4snli_forward.1} parent=1 // pred_region
      _
    $region49: #{nn4snli_forward.1} parent=1 // pred_fallthru
      _
    // Predicated region
    $region50: #{nn4snli_forward.1} parent=1 // pred_check
      _
    $region51: #{nn4snli_forward.1} parent=1 // pred_check_branch
      %56 = sbr.rel (0) target = $region53
    $region52: #{nn4snli_forward.1} parent=1 // pred_region
      _
    $region53: #{nn4snli_forward.1} parent=1 // pred_fallthru
      _
    // Predicated region
    $region54: #{nn4snli_forward.1} parent=1 // pred_check
      _
    $region55: #{nn4snli_forward.1} parent=1 // pred_check_branch
      %58 = sbr.rel (0) target = $region57
    $region56: #{nn4snli_forward.1} parent=1 // pred_region
      _
    $region57: #{nn4snli_forward.1} parent=1 // pred_fallthru
      _
    // Predicated region
    $region58: #{nn4snli_forward.1} parent=1 // pred_check
      _
    $region59: #{nn4snli_forward.1} parent=1 // pred_check_branch
      %60 = sbr.rel (0) target = $region61
    $region60: #{nn4snli_forward.1} parent=1 // pred_region
      _
    $region61: #{nn4snli_forward.1} parent=1 // pred_fallthru
      _
    // Predicated region
    $region62: #{nn4snli_forward.1} parent=1 // pred_check
      _
    $region63: #{nn4snli_forward.1} parent=1 // pred_check_branch
      %62 = sbr.rel (0) target = $region65
    $region64: #{nn4snli_forward.1} parent=1 // pred_region
      _
    $region65: #{nn4snli_forward.1} parent=1 // pred_fallthru
      _
    // Predicated region
    $region66: #{nn4snli_forward.1} parent=1 // pred_check
      _
    $region67: #{nn4snli_forward.1} parent=1 // pred_check_branch
      %64 = sbr.rel (0) target = $region69
    $region68: #{nn4snli_forward.1} parent=1 // pred_region
      _
    $region69: #{nn4snli_forward.1} parent=1 // pred_fallthru
      _
    // Predicated region
    $region70: #{nn4snli_forward.1} parent=1 // pred_check
      _
    $region71: #{nn4snli_forward.1} parent=1 // pred_check_branch
      %66 = sbr.rel (0) target = $region73
    $region72: #{nn4snli_forward.1} parent=1 // pred_region
      _
    $region73: #{nn4snli_forward.1} parent=1 // pred_fallthru
      _
    // Predicated region
    $region74: #{nn4snli_forward.1} parent=1 // pred_check
      _
    $region75: #{nn4snli_forward.1} parent=1 // pred_check_branch
      %68 = sbr.rel (0) target = $region77
    $region76: #{nn4snli_forward.1} parent=1 // pred_region
      _
    $region77: #{nn4snli_forward.1} parent=1 // pred_fallthru
      _
    // Predicated region
    $region78: #{nn4snli_forward.1} parent=1 // pred_check
      _
    $region79: #{nn4snli_forward.1} parent=1 // pred_check_branch
      %70 = sbr.rel (0) target = $region81
    $region80: #{nn4snli_forward.1} parent=1 // pred_region
      _
    $region81: #{nn4snli_forward.1} parent=1 // pred_fallthru
      _
    // Predicated region
    $region82: #{nn4snli_forward.1} parent=1 // pred_check
      _
    $region83: #{nn4snli_forward.1} parent=1 // pred_check_branch
      %72 = sbr.rel (0) target = $region85
    $region84: #{nn4snli_forward.1} parent=1 // pred_region
      _
    $region85: #{nn4snli_forward.1} parent=1 // pred_fallthru
      _
    // Predicated region
    $region86: #{nn4snli_forward.1} parent=1 // pred_check
      _
    $region87: #{nn4snli_forward.1} parent=1 // pred_check_branch
      %74 = sbr.rel (0) target = $region89
    $region88: #{nn4snli_forward.1} parent=1 // pred_region
      _
    $region89: #{nn4snli_forward.1} parent=1 // pred_fallthru
      _
    // Predicated region
    $region90: #{nn4snli_forward.1} parent=1 // pred_check
      _
    $region91: #{nn4snli_forward.1} parent=1 // pred_check_branch
      %76 = sbr.rel (0) target = $region93
    $region92: #{nn4snli_forward.1} parent=1 // pred_region
      _
    $region93: #{nn4snli_forward.1} parent=1 // pred_fallthru
      _
    // Predicated region
    $region94: #{nn4snli_forward.1} parent=1 // pred_check
      _
    $region95: #{nn4snli_forward.1} parent=1 // pred_check_branch
      %78 = sbr.rel (0) target = $region97
    $region96: #{nn4snli_forward.1} parent=1 // pred_region
      _
    $region97: #{nn4snli_forward.1} parent=1 // pred_fallthru
      _
    // Predicated region
    $region98: #{nn4snli_forward.1} parent=1 // pred_check
      _
    $region99: #{nn4snli_forward.1} parent=1 // pred_check_branch
      %80 = sbr.rel (0) target = $region101
    $region100: #{nn4snli_forward.1} parent=1 // pred_region
      _
    $region101: #{nn4snli_forward.1} parent=1 // pred_fallthru
      _
    %v82 = vld [vmem:[%s2] sm:$0xff]
    %v83 = vld [vmem:[%s2 + $0x8] sm:$0xff]
    %v84 = vld [vmem:[%s2 + $0x10] sm:$0xff]
    %v85 = vld [vmem:[%s2 + $0x18] sm:$0xff]
    %v86 = vld [vmem:[%s2 + $0x20] sm:$0xff]
    %v87 = vld [vmem:[%s2 + $0x28] sm:$0xff]
    %v88 = vld [vmem:[%s1] sm:$0xf]
    %v89 = vld [vmem:[%s1 + $0x4] sm:$0xf]
    %v90 = vld [vmem:[%s1 + $0x8] sm:$0xf]
    %v91 = vld [vmem:[%s1 + $0xc] sm:$0xf]
    %v92 = vld [vmem:[%s1 + $0x10] sm:$0xf]
    %v93 = vld [vmem:[%s1 + $0x14] sm:$0xf]
    %v94 = vld [vmem:[%s5] sm:$0xff]
    %v95 = vld [vmem:[%s5 + $0x8] sm:$0xff]
    %v96 = vld [vmem:[%s5 + $0x10] sm:$0xff]
    %v97 = vld [vmem:[%s5 + $0x18] sm:$0xff]
    %v98 = vld [vmem:[%s5 + $0x20] sm:$0xff]
    %v99 = vld [vmem:[%s5 + $0x28] sm:$0xff]
    %v100 = vld [vmem:[%s5 + $0x30] sm:$0xff]
    %v101 = vld [vmem:[%s5 + $0x38] sm:$0xff]
    %v102 = vld [vmem:[%s6] sm:$0x3]
    %v104 = vlaneseq
    %v105 = vshrl.u32 %v104, 7
    %v106 = vsub.s32 0, %v105
    %v107 = vrot.slane %v102, %v106
    %v108 = vlaneseq
    %v109 = vshrl.u32 %v108, 7
    %v110 = vsub.s32 1, %v109
    %v111 = vrot.slane %v102, %v110
    %v120 = vunpack.c.l.b16 %v88
    %v121 = vunpack.c.l.b16 %v89
    %v122 = vunpack.c.l.b16 %v90
    %v123 = vunpack.c.l.b16 %v91
    %v124 = vunpack.c.l.b16 %v92
    %v125 = vunpack.c.l.b16 %v93
    %v126 = vpack.c.b16 %v121, %v120
    %v127 = vpack.c.b16 %v123, %v122
    %v128 = vpack.c.b16 %v125, %v124
    %v137 = vunpack.c.l.b16 %v94
    %v138 = vunpack.c.h.b16 %v94
    %v139 = vunpack.c.l.b16 %v95
    %v140 = vunpack.c.h.b16 %v95
    %v141 = vunpack.c.l.b16 %v96
    %v142 = vunpack.c.h.b16 %v96
    %v143 = vunpack.c.l.b16 %v97
    %v144 = vunpack.c.h.b16 %v97
    %v145 = vunpack.c.l.b16 %v98
    %v146 = vunpack.c.h.b16 %v98
    %v147 = vunpack.c.l.b16 %v99
    %v148 = vunpack.c.h.b16 %v99
    %v149 = vunpack.c.l.b16 %v100
    %v150 = vunpack.c.h.b16 %v100
    %v151 = vunpack.c.l.b16 %v101
    %v152 = vunpack.c.h.b16 %v101
    %v153 = vpack.c.b16 %v139, %v137
    %v154 = vpack.c.b16 %v140, %v138
    %v155 = vpack.c.b16 %v143, %v141
    %v156 = vpack.c.b16 %v144, %v142
    %v157 = vpack.c.b16 %v147, %v145
    %v158 = vpack.c.b16 %v148, %v146
    %v159 = vpack.c.b16 %v151, %v149
    %v160 = vpack.c.b16 %v152, %v150
    %vm169 = vcmask 523264
    %v171 = vsel %vm169, %v126, 0
    %v174 = vsel %vm169, %v127, 0
    %v177 = vsel %vm169, %v128, 0
    %179 = vmatprep.subr.bf16.mxu0 %v154
    %180 = vmatpush1.bf16.msra.mxu0 %v153
    %181 = vmatprep.subr.bf16.mxu0 %v156
    %182 = vmatpush1.bf16.msra.mxu0 %v155
    %183 = vmatprep.subr.bf16.mxu0 %v158
    %184 = vmatpush1.bf16.msra.mxu0 %v157
    %185 = vmatprep.subr.bf16.mxu0 %v160
    %186 = vmatpush1.bf16.msra.mxu0 %v159
    %187 = vmatprep.subr.bf16.mxu0 0
    %188 = vmatpush1.bf16.msra.mxu0 0
    %189 = vmatprep.subr.bf16.mxu0 0
    %190 = vmatpush1.bf16.msra.mxu0 0
    %191 = vmatprep.subr.bf16.mxu0 0
    %192 = vmatpush1.bf16.msra.mxu0 0
    %193 = vmatprep.subr.bf16.mxu0 0
    %194 = vmatpush1.bf16.msra.mxu0 0
    %195 = vmatprep.subr.bf16.mxu0 0
    %196 = vmatpush1.bf16.msra.mxu0 0
    %197 = vmatprep.subr.bf16.mxu0 0
    %198 = vmatpush1.bf16.msra.mxu0 0
    %199 = vmatprep.subr.bf16.mxu0 0
    %200 = vmatpush1.bf16.msra.mxu0 0
    %201 = vmatprep.subr.bf16.mxu0 0
    %202 = vmatpush1.bf16.msra.mxu0 0
    %203 = vmatprep.subr.bf16.mxu0 0
    %204 = vmatpush1.bf16.msra.mxu0 0
    %205 = vmatprep.subr.bf16.mxu0 0
    %206 = vmatpush1.bf16.msra.mxu0 0
    %207 = vmatprep.subr.bf16.mxu0 0
    %208 = vmatpush1.bf16.msra.mxu0 0
    %209 = vmatprep.subr.bf16.mxu0 0
    %210 = vmatpush1.bf16.msra.mxu0 0
    %211 = vmatprep.mubr.bf16.mxu0 0
    %212 = vmatmul.mubr.bf16.gmra.mrb[0].mxu0 %v171
    %v213 = vpop.f32.mrb[0].mxu0
    %v214 = vadd.f32 %v107, %v213
    %v215 = vpop.f32.mrb[0].mxu0
    %v216 = vadd.f32 %v111, %v215
    %v217 = vpop.f32.mrb[0].mxu0
    %v218 = vadd.f32 %v107, %v217
    %v219 = vpop.f32.mrb[0].mxu0
    %v220 = vadd.f32 %v111, %v219
    %221 = vmatprep.mubr.bf16.mxu0 0
    %222 = vmatmul.mubr.bf16.gmra.mrb[0].mxu0 %v174
    %v223 = vpop.f32.mrb[0].mxu0
    %v224 = vadd.f32 %v107, %v223
    %v225 = vpop.f32.mrb[0].mxu0
    %v226 = vadd.f32 %v111, %v225
    %v227 = vpop.f32.mrb[0].mxu0
    %v228 = vadd.f32 %v107, %v227
    %v229 = vpop.f32.mrb[0].mxu0
    %v230 = vadd.f32 %v111, %v229
    %231 = vmatprep.mubr.bf16.mxu0 0
    %232 = vmatmul.mubr.bf16.gmra.mrb[0].mxu0 %v177
    %v233 = vpop.f32.mrb[0].mxu0
    %v234 = vadd.f32 %v107, %v233
    %v235 = vpop.f32.mrb[0].mxu0
    %v236 = vadd.f32 %v111, %v235
    %v237 = vpop.f32.mrb[0].mxu0
    %v238 = vadd.f32 %v107, %v237
    %v239 = vpop.f32.mrb[0].mxu0
    %v240 = vadd.f32 %v111, %v239
    %241 = vdwg.mxu0
    %v242 = vmax.f32 %v214, 0.0
    %v243 = vmax.f32 %v216, 0.0
    %v244 = vmax.f32 %v218, 0.0
    %v245 = vmax.f32 %v220, 0.0
    %v246 = vmax.f32 %v224, 0.0
    %v247 = vmax.f32 %v226, 0.0
    %v248 = vmax.f32 %v228, 0.0
    %v249 = vmax.f32 %v230, 0.0
    %v250 = vmax.f32 %v234, 0.0
    %v251 = vmax.f32 %v236, 0.0
    %v252 = vmax.f32 %v238, 0.0
    %v253 = vmax.f32 %v240, 0.0
    %260 = vrot.lane.b32.xlu0 %v242, 112
    %v261 = vpop.permute.xlu0 %260
    %262 = vrot.lane.b32.xlu0 %v244, 112
    %v263 = vpop.permute.xlu0 %262
    %264 = vrot.lane.b32.xlu0 %v246, 112
    %v265 = vpop.permute.xlu0 %264
    %266 = vrot.lane.b32.xlu0 %v248, 112
    %v267 = vpop.permute.xlu0 %266
    %268 = vrot.lane.b32.xlu0 %v250, 112
    %v269 = vpop.permute.xlu0 %268
    %270 = vrot.lane.b32.xlu0 %v252, 112
    %v271 = vpop.permute.xlu0 %270
    %v278 = vmax.f32 %v242, %v261
    %v279 = vmax.f32 %v244, %v263
    %v280 = vmax.f32 %v246, %v265
    %v281 = vmax.f32 %v248, %v267
    %v282 = vmax.f32 %v250, %v269
    %v283 = vmax.f32 %v252, %v271
    %284 = vrot.lane.b32.xlu0 %v242, 96
    %v285 = vpop.permute.xlu0 %284
    %286 = vrot.lane.b32.xlu0 %v244, 96
    %v287 = vpop.permute.xlu0 %286
    %288 = vrot.lane.b32.xlu0 %v246, 96
    %v289 = vpop.permute.xlu0 %288
    %290 = vrot.lane.b32.xlu0 %v248, 96
    %v291 = vpop.permute.xlu0 %290
    %292 = vrot.lane.b32.xlu0 %v250, 96
    %v293 = vpop.permute.xlu0 %292
    %294 = vrot.lane.b32.xlu0 %v252, 96
    %v295 = vpop.permute.xlu0 %294
    %v302 = vmax.f32 %v278, %v285
    %v303 = vmax.f32 %v279, %v287
    %v304 = vmax.f32 %v280, %v289
    %v305 = vmax.f32 %v281, %v291
    %v306 = vmax.f32 %v282, %v293
    %v307 = vmax.f32 %v283, %v295
    %308 = vrot.lane.b32.xlu0 %v242, 80
    %v309 = vpop.permute.xlu0 %308
    %310 = vrot.lane.b32.xlu0 %v244, 80
    %v311 = vpop.permute.xlu0 %310
    %312 = vrot.lane.b32.xlu0 %v246, 80
    %v313 = vpop.permute.xlu0 %312
    %314 = vrot.lane.b32.xlu0 %v248, 80
    %v315 = vpop.permute.xlu0 %314
    %316 = vrot.lane.b32.xlu0 %v250, 80
    %v317 = vpop.permute.xlu0 %316
    %318 = vrot.lane.b32.xlu0 %v252, 80
    %v319 = vpop.permute.xlu0 %318
    %v326 = vmax.f32 %v302, %v309
    %v327 = vmax.f32 %v303, %v311
    %v328 = vmax.f32 %v304, %v313
    %v329 = vmax.f32 %v305, %v315
    %v330 = vmax.f32 %v306, %v317
    %v331 = vmax.f32 %v307, %v319
    %332 = vrot.lane.b32.xlu0 %v242, 64
    %v333 = vpop.permute.xlu0 %332
    %334 = vrot.lane.b32.xlu0 %v244, 64
    %v335 = vpop.permute.xlu0 %334
    %336 = vrot.lane.b32.xlu0 %v246, 64
    %v337 = vpop.permute.xlu0 %336
    %338 = vrot.lane.b32.xlu0 %v248, 64
    %v339 = vpop.permute.xlu0 %338
    %340 = vrot.lane.b32.xlu0 %v250, 64
    %v341 = vpop.permute.xlu0 %340
    %342 = vrot.lane.b32.xlu0 %v252, 64
    %v343 = vpop.permute.xlu0 %342
    %v350 = vmax.f32 %v326, %v333
    %v351 = vmax.f32 %v327, %v335
    %v352 = vmax.f32 %v328, %v337
    %v353 = vmax.f32 %v329, %v339
    %v354 = vmax.f32 %v330, %v341
    %v355 = vmax.f32 %v331, %v343
    %356 = vrot.lane.b32.xlu0 %v242, 48
    %v357 = vpop.permute.xlu0 %356
    %358 = vrot.lane.b32.xlu0 %v244, 48
    %v359 = vpop.permute.xlu0 %358
    %360 = vrot.lane.b32.xlu0 %v246, 48
    %v361 = vpop.permute.xlu0 %360
    %362 = vrot.lane.b32.xlu0 %v248, 48
    %v363 = vpop.permute.xlu0 %362
    %364 = vrot.lane.b32.xlu0 %v250, 48
    %v365 = vpop.permute.xlu0 %364
    %366 = vrot.lane.b32.xlu0 %v252, 48
    %v367 = vpop.permute.xlu0 %366
    %v374 = vmax.f32 %v350, %v357
    %v375 = vmax.f32 %v351, %v359
    %v376 = vmax.f32 %v352, %v361
    %v377 = vmax.f32 %v353, %v363
    %v378 = vmax.f32 %v354, %v365
    %v379 = vmax.f32 %v355, %v367
    %380 = vrot.lane.b32.xlu0 %v242, 32
    %v381 = vpop.permute.xlu0 %380
    %382 = vrot.lane.b32.xlu0 %v244, 32
    %v383 = vpop.permute.xlu0 %382
    %384 = vrot.lane.b32.xlu0 %v246, 32
    %v385 = vpop.permute.xlu0 %384
    %386 = vrot.lane.b32.xlu0 %v248, 32
    %v387 = vpop.permute.xlu0 %386
    %388 = vrot.lane.b32.xlu0 %v250, 32
    %v389 = vpop.permute.xlu0 %388
    %390 = vrot.lane.b32.xlu0 %v252, 32
    %v391 = vpop.permute.xlu0 %390
    %v398 = vmax.f32 %v374, %v381
    %v399 = vmax.f32 %v375, %v383
    %v400 = vmax.f32 %v376, %v385
    %v401 = vmax.f32 %v377, %v387
    %v402 = vmax.f32 %v378, %v389
    %v403 = vmax.f32 %v379, %v391
    %410 = vrot.lane.b32.xlu0 %v243, 112
    %v411 = vpop.permute.xlu0 %410
    %412 = vrot.lane.b32.xlu0 %v245, 112
    %v413 = vpop.permute.xlu0 %412
    %414 = vrot.lane.b32.xlu0 %v247, 112
    %v415 = vpop.permute.xlu0 %414
    %416 = vrot.lane.b32.xlu0 %v249, 112
    %v417 = vpop.permute.xlu0 %416
    %418 = vrot.lane.b32.xlu0 %v251, 112
    %v419 = vpop.permute.xlu0 %418
    %420 = vrot.lane.b32.xlu0 %v253, 112
    %v421 = vpop.permute.xlu0 %420
    %v428 = vmax.f32 %v242, %v411
    %v429 = vmax.f32 %v244, %v413
    %v430 = vmax.f32 %v246, %v415
    %v431 = vmax.f32 %v248, %v417
    %v432 = vmax.f32 %v250, %v419
    %v433 = vmax.f32 %v252, %v421
    %434 = vrot.lane.b32.xlu0 %v243, 96
    %v435 = vpop.permute.xlu0 %434
    %436 = vrot.lane.b32.xlu0 %v245, 96
    %v437 = vpop.permute.xlu0 %436
    %438 = vrot.lane.b32.xlu0 %v247, 96
    %v439 = vpop.permute.xlu0 %438
    %440 = vrot.lane.b32.xlu0 %v249, 96
    %v441 = vpop.permute.xlu0 %440
    %442 = vrot.lane.b32.xlu0 %v251, 96
    %v443 = vpop.permute.xlu0 %442
    %444 = vrot.lane.b32.xlu0 %v253, 96
    %v445 = vpop.permute.xlu0 %444
    %v452 = vmax.f32 %v428, %v435
    %v453 = vmax.f32 %v429, %v437
    %v454 = vmax.f32 %v430, %v439
    %v455 = vmax.f32 %v431, %v441
    %v456 = vmax.f32 %v432, %v443
    %v457 = vmax.f32 %v433, %v445
    %458 = vrot.lane.b32.xlu0 %v243, 80
    %v459 = vpop.permute.xlu0 %458
    %460 = vrot.lane.b32.xlu0 %v245, 80
    %v461 = vpop.permute.xlu0 %460
    %462 = vrot.lane.b32.xlu0 %v247, 80
    %v463 = vpop.permute.xlu0 %462
    %464 = vrot.lane.b32.xlu0 %v249, 80
    %v465 = vpop.permute.xlu0 %464
    %466 = vrot.lane.b32.xlu0 %v251, 80
    %v467 = vpop.permute.xlu0 %466
    %468 = vrot.lane.b32.xlu0 %v253, 80
    %v469 = vpop.permute.xlu0 %468
    %v476 = vmax.f32 %v452, %v459
    %v477 = vmax.f32 %v453, %v461
    %v478 = vmax.f32 %v454, %v463
    %v479 = vmax.f32 %v455, %v465
    %v480 = vmax.f32 %v456, %v467
    %v481 = vmax.f32 %v457, %v469
    %482 = vrot.lane.b32.xlu0 %v243, 64
    %v483 = vpop.permute.xlu0 %482
    %484 = vrot.lane.b32.xlu0 %v245, 64
    %v485 = vpop.permute.xlu0 %484
    %486 = vrot.lane.b32.xlu0 %v247, 64
    %v487 = vpop.permute.xlu0 %486
    %488 = vrot.lane.b32.xlu0 %v249, 64
    %v489 = vpop.permute.xlu0 %488
    %490 = vrot.lane.b32.xlu0 %v251, 64
    %v491 = vpop.permute.xlu0 %490
    %492 = vrot.lane.b32.xlu0 %v253, 64
    %v493 = vpop.permute.xlu0 %492
    %v500 = vmax.f32 %v476, %v483
    %v501 = vmax.f32 %v477, %v485
    %v502 = vmax.f32 %v478, %v487
    %v503 = vmax.f32 %v479, %v489
    %v504 = vmax.f32 %v480, %v491
    %v505 = vmax.f32 %v481, %v493
    %506 = vrot.lane.b32.xlu0 %v243, 48
    %v507 = vpop.permute.xlu0 %506
    %508 = vrot.lane.b32.xlu0 %v245, 48
    %v509 = vpop.permute.xlu0 %508
    %510 = vrot.lane.b32.xlu0 %v247, 48
    %v511 = vpop.permute.xlu0 %510
    %512 = vrot.lane.b32.xlu0 %v249, 48
    %v513 = vpop.permute.xlu0 %512
    %514 = vrot.lane.b32.xlu0 %v251, 48
    %v515 = vpop.permute.xlu0 %514
    %516 = vrot.lane.b32.xlu0 %v253, 48
    %v517 = vpop.permute.xlu0 %516
    %v524 = vmax.f32 %v500, %v507
    %v525 = vmax.f32 %v501, %v509
    %v526 = vmax.f32 %v502, %v511
    %v527 = vmax.f32 %v503, %v513
    %v528 = vmax.f32 %v504, %v515
    %v529 = vmax.f32 %v505, %v517
    %v530 = vld [vmem:[%s0] sm:$0xff]
    %v531 = vld [vmem:[%s0 + $0x8] sm:$0xff]
    %v532 = vld [vmem:[%s0 + $0x10] sm:$0xff]
    %v533 = vld [vmem:[%s0 + $0x18] sm:$0xff]
    %v534 = vld [vmem:[%s0 + $0x20] sm:$0xff]
    %v535 = vld [vmem:[%s0 + $0x28] sm:$0xff]
    %542 = vrot.lane.b32.xlu0 %v398, 32
    %v543 = vpop.permute.xlu0 %542
    %544 = vrot.lane.b32.xlu0 %v399, 32
    %v545 = vpop.permute.xlu0 %544
    %546 = vrot.lane.b32.xlu0 %v400, 32
    %v547 = vpop.permute.xlu0 %546
    %548 = vrot.lane.b32.xlu0 %v401, 32
    %v549 = vpop.permute.xlu0 %548
    %550 = vrot.lane.b32.xlu0 %v402, 32
    %v551 = vpop.permute.xlu0 %550
    %552 = vrot.lane.b32.xlu0 %v403, 32
    %v553 = vpop.permute.xlu0 %552
    %566 = vrot.lane.b32.xlu0 %v524, 64
    %v567 = vpop.permute.xlu0 %566
    %568 = vrot.lane.b32.xlu0 %v525, 64
    %v569 = vpop.permute.xlu0 %568
    %570 = vrot.lane.b32.xlu0 %v526, 64
    %v571 = vpop.permute.xlu0 %570
    %572 = vrot.lane.b32.xlu0 %v527, 64
    %v573 = vpop.permute.xlu0 %572
    %574 = vrot.lane.b32.xlu0 %v528, 64
    %v575 = vpop.permute.xlu0 %574
    %576 = vrot.lane.b32.xlu0 %v529, 64
    %v577 = vpop.permute.xlu0 %576
    %vm584 = vcmask 261120
    %v585 = vsel %vm584, %v530, %v543
    %v586 = vsel %vm584, %v531, %v545
    %v587 = vsel %vm584, %v532, %v547
    %v588 = vsel %vm584, %v533, %v549
    %v589 = vsel %vm584, %v534, %v551
    %v590 = vsel %vm584, %v535, %v553
    %vm591 = vcmask 392192
    %v592 = vsel %vm591, %v585, %v567
    %v593 = vsel %vm591, %v586, %v569
    %v594 = vsel %vm591, %v587, %v571
    %v595 = vsel %vm591, %v588, %v573
    %v596 = vsel %vm591, %v589, %v575
    %v597 = vsel %vm591, %v590, %v577
    %v598 = vpack.c.bf16 %v593, %v592
    %v599 = vpack.c.bf16 %v595, %v594
    %v600 = vpack.c.bf16 %v597, %v596
    %v601 = vlaneseq
    %v602 = vand.u32 %v601, 127
    %v603 = vadd.s32 %v602, 128
    %vm604 = vcmp.ge.s32.totalorder %v602, 128
    %vm605 = vcmp.ge.s32.totalorder %v603, 128
    %vm606 = vcmp.lt.s32.totalorder %v602, 192
    %vm607 = vcmp.lt.s32.totalorder %v603, 192
    %vm608 = vmand %vm604, %vm606
    %vm609 = vmand %vm605, %vm607
    %vm610 = vcmp.lt.s32.totalorder %v602, 32
    %v611 = vld [vmem:[%s7] sm:$0xff]
    %v612 = vld [vmem:[%s7 + $0x8] sm:$0xff]
    %v613 = vld [vmem:[%s7 + $0x10] sm:$0xff]
    %v614 = vld [vmem:[%s7 + $0x18] sm:$0xff]
    %v615 = vld [vmem:[%s7 + $0x20] sm:$0xff]
    %v616 = vld [vmem:[%s7 + $0x28] sm:$0xff]
    %v617 = vld [vmem:[%s7 + $0x30] sm:$0xff]
    %v618 = vld [vmem:[%s7 + $0x38] sm:$0xff]
    %v619 = vld [vmem:[%s7 + $0x40] sm:$0xff]
    %v620 = vld [vmem:[%s7 + $0x48] sm:$0xff]
    %v621 = vld [vmem:[%s7 + $0x50] sm:$0xff]
    %v622 = vld [vmem:[%s7 + $0x58] sm:$0xff]
    %v623 = vld [vmem:[%s7 + $0x60] sm:$0xff]
    %v624 = vld [vmem:[%s7 + $0x68] sm:$0xff]
    %v625 = vld [vmem:[%s7 + $0x70] sm:$0xff]
    %v626 = vld [vmem:[%s7 + $0x78] sm:$0xff]
    %v627 = vld [vmem:[%s8] sm:$0xf]
    %v629 = vlaneseq
    %v630 = vshrl.u32 %v629, 7
    %v631 = vsub.s32 0, %v630
    %v632 = vrot.slane %v627, %v631
    %v633 = vlaneseq
    %v634 = vshrl.u32 %v633, 7
    %v635 = vsub.s32 1, %v634
    %v636 = vrot.slane %v627, %v635
    %v637 = vlaneseq
    %v638 = vshrl.u32 %v637, 7
    %v639 = vsub.s32 2, %v638
    %v640 = vrot.slane %v627, %v639
    %v641 = vlaneseq
    %v642 = vshrl.u32 %v641, 7
    %v643 = vsub.s32 3, %v642
    %v644 = vrot.slane %v627, %v643
    %v665 = vunpack.c.l.b16 %v611
    %v666 = vunpack.c.h.b16 %v611
    %v667 = vunpack.c.l.b16 %v612
    %v668 = vunpack.c.h.b16 %v612
    %v669 = vunpack.c.l.b16 %v613
    %v670 = vunpack.c.h.b16 %v613
    %v671 = vunpack.c.l.b16 %v614
    %v672 = vunpack.c.h.b16 %v614
    %v673 = vunpack.c.l.b16 %v615
    %v674 = vunpack.c.h.b16 %v615
    %v675 = vunpack.c.l.b16 %v616
    %v676 = vunpack.c.h.b16 %v616
    %v677 = vunpack.c.l.b16 %v617
    %v678 = vunpack.c.h.b16 %v617
    %v679 = vunpack.c.l.b16 %v618
    %v680 = vunpack.c.h.b16 %v618
    %v681 = vunpack.c.l.b16 %v619
    %v682 = vunpack.c.h.b16 %v619
    %v683 = vunpack.c.l.b16 %v620
    %v684 = vunpack.c.h.b16 %v620
    %v685 = vunpack.c.l.b16 %v621
    %v686 = vunpack.c.h.b16 %v621
    %v687 = vunpack.c.l.b16 %v622
    %v688 = vunpack.c.h.b16 %v622
    %v689 = vunpack.c.l.b16 %v623
    %v690 = vunpack.c.h.b16 %v623
    %v691 = vunpack.c.l.b16 %v624
    %v692 = vunpack.c.h.b16 %v624
    %v693 = vunpack.c.l.b16 %v625
    %v694 = vunpack.c.h.b16 %v625
    %v695 = vunpack.c.l.b16 %v626
    %v696 = vunpack.c.h.b16 %v626
    %v697 = vpack.c.b16 %v669, %v665
    %v698 = vpack.c.b16 %v670, %v666
    %v699 = vpack.c.b16 %v671, %v667
    %v700 = vpack.c.b16 %v672, %v668
    %v701 = vpack.c.b16 %v677, %v673
    %v702 = vpack.c.b16 %v678, %v674
    %v703 = vpack.c.b16 %v679, %v675
    %v704 = vpack.c.b16 %v680, %v676
    %v705 = vpack.c.b16 %v685, %v681
    %v706 = vpack.c.b16 %v686, %v682
    %v707 = vpack.c.b16 %v687, %v683
    %v708 = vpack.c.b16 %v688, %v684
    %v709 = vpack.c.b16 %v693, %v689
    %v710 = vpack.c.b16 %v694, %v690
    %v711 = vpack.c.b16 %v695, %v691
    %v712 = vpack.c.b16 %v696, %v692
    %v730 = vsel %vm169, %v598, 0
    %v733 = vsel %vm169, %v599, 0
    %v736 = vsel %vm169, %v600, 0
    %738 = vmatprep.subr.bf16.mxu0 %v698
    %739 = vmatpush1.bf16.msra.mxu0 %v697
    %740 = vmatprep.subr.bf16.mxu0 %v702
    %741 = vmatpush1.bf16.msra.mxu0 %v701
    %742 = vmatprep.subr.bf16.mxu0 %v706
    %743 = vmatpush1.bf16.msra.mxu0 %v705
    %744 = vmatprep.subr.bf16.mxu0 %v710
    %745 = vmatpush1.bf16.msra.mxu0 %v709
    %746 = vmatprep.subr.bf16.mxu0 0
    %747 = vmatpush1.bf16.msra.mxu0 0
    %748 = vmatprep.subr.bf16.mxu0 0
    %749 = vmatpush1.bf16.msra.mxu0 0
    %750 = vmatprep.subr.bf16.mxu0 0
    %751 = vmatpush1.bf16.msra.mxu0 0
    %752 = vmatprep.subr.bf16.mxu0 0
    %753 = vmatpush1.bf16.msra.mxu0 0
    %754 = vmatprep.subr.bf16.mxu0 0
    %755 = vmatpush1.bf16.msra.mxu0 0
    %756 = vmatprep.subr.bf16.mxu0 0
    %757 = vmatpush1.bf16.msra.mxu0 0
    %758 = vmatprep.subr.bf16.mxu0 0
    %759 = vmatpush1.bf16.msra.mxu0 0
    %760 = vmatprep.subr.bf16.mxu0 0
    %761 = vmatpush1.bf16.msra.mxu0 0
    %762 = vmatprep.subr.bf16.mxu0 0
    %763 = vmatpush1.bf16.msra.mxu0 0
    %764 = vmatprep.subr.bf16.mxu0 0
    %765 = vmatpush1.bf16.msra.mxu0 0
    %766 = vmatprep.subr.bf16.mxu0 0
    %767 = vmatpush1.bf16.msra.mxu0 0
    %768 = vmatprep.subr.bf16.mxu0 0
    %769 = vmatpush1.bf16.msra.mxu0 0
    %770 = vmatprep.mubr.bf16.mxu0 0
    %771 = vmatmul.mubr.bf16.gmra.mrb[0].mxu0 %v730
    %v772 = vpop.f32.mrb[0].mxu0
    %v773 = vadd.f32 %v632, %v772
    %v774 = vpop.f32.mrb[0].mxu0
    %v775 = vadd.f32 %v636, %v774
    %v776 = vpop.f32.mrb[0].mxu0
    %v777 = vadd.f32 %v632, %v776
    %v778 = vpop.f32.mrb[0].mxu0
    %v779 = vadd.f32 %v636, %v778
    %780 = vmatprep.mubr.bf16.mxu0 0
    %781 = vmatmul.mubr.bf16.gmra.mrb[0].mxu0 %v733
    %v782 = vpop.f32.mrb[0].mxu0
    %v783 = vadd.f32 %v632, %v782
    %v784 = vpop.f32.mrb[0].mxu0
    %v785 = vadd.f32 %v636, %v784
    %v786 = vpop.f32.mrb[0].mxu0
    %v787 = vadd.f32 %v632, %v786
    %v788 = vpop.f32.mrb[0].mxu0
    %v789 = vadd.f32 %v636, %v788
    %790 = vmatprep.mubr.bf16.mxu0 0
    %791 = vmatmul.mubr.bf16.gmra.mrb[0].mxu0 %v736
    %v792 = vpop.f32.mrb[0].mxu0
    %v793 = vadd.f32 %v632, %v792
    %v794 = vpop.f32.mrb[0].mxu0
    %v795 = vadd.f32 %v636, %v794
    %v796 = vpop.f32.mrb[0].mxu0
    %v797 = vadd.f32 %v632, %v796
    %v798 = vpop.f32.mrb[0].mxu0
    %v799 = vadd.f32 %v636, %v798
    %800 = vdwg.mxu0
    %801 = vmatprep.subr.bf16.mxu0 %v700
    %802 = vmatpush1.bf16.msra.mxu0 %v699
    %803 = vmatprep.subr.bf16.mxu0 %v704
    %804 = vmatpush1.bf16.msra.mxu0 %v703
    %805 = vmatprep.subr.bf16.mxu0 %v708
    %806 = vmatpush1.bf16.msra.mxu0 %v707
    %807 = vmatprep.subr.bf16.mxu0 %v712
    %808 = vmatpush1.bf16.msra.mxu0 %v711
    %809 = vmatprep.subr.bf16.mxu0 0
    %810 = vmatpush1.bf16.msra.mxu0 0
    %811 = vmatprep.subr.bf16.mxu0 0
    %812 = vmatpush1.bf16.msra.mxu0 0
    %813 = vmatprep.subr.bf16.mxu0 0
    %814 = vmatpush1.bf16.msra.mxu0 0
    %815 = vmatprep.subr.bf16.mxu0 0
    %816 = vmatpush1.bf16.msra.mxu0 0
    %817 = vmatprep.subr.bf16.mxu0 0
    %818 = vmatpush1.bf16.msra.mxu0 0
    %819 = vmatprep.subr.bf16.mxu0 0
    %820 = vmatpush1.bf16.msra.mxu0 0
    %821 = vmatprep.subr.bf16.mxu0 0
    %822 = vmatpush1.bf16.msra.mxu0 0
    %823 = vmatprep.subr.bf16.mxu0 0
    %824 = vmatpush1.bf16.msra.mxu0 0
    %825 = vmatprep.subr.bf16.mxu0 0
    %826 = vmatpush1.bf16.msra.mxu0 0
    %827 = vmatprep.subr.bf16.mxu0 0
    %828 = vmatpush1.bf16.msra.mxu0 0
    %829 = vmatprep.subr.bf16.mxu0 0
    %830 = vmatpush1.bf16.msra.mxu0 0
    %831 = vmatprep.subr.bf16.mxu0 0
    %832 = vmatpush1.bf16.msra.mxu0 0
    %833 = vmatprep.mubr.bf16.mxu0 0
    %834 = vmatmul.mubr.bf16.gmra.mrb[0].mxu0 %v730
    %v835 = vpop.f32.mrb[0].mxu0
    %v836 = vadd.f32 %v640, %v835
    %v837 = vpop.f32.mrb[0].mxu0
    %v838 = vadd.f32 %v644, %v837
    %v839 = vpop.f32.mrb[0].mxu0
    %v840 = vadd.f32 %v640, %v839
    %v841 = vpop.f32.mrb[0].mxu0
    %v842 = vadd.f32 %v644, %v841
    %843 = vmatprep.mubr.bf16.mxu0 0
    %844 = vmatmul.mubr.bf16.gmra.mrb[0].mxu0 %v733
    %v845 = vpop.f32.mrb[0].mxu0
    %v846 = vadd.f32 %v640, %v845
    %v847 = vpop.f32.mrb[0].mxu0
    %v848 = vadd.f32 %v644, %v847
    %v849 = vpop.f32.mrb[0].mxu0
    %v850 = vadd.f32 %v640, %v849
    %v851 = vpop.f32.mrb[0].mxu0
    %v852 = vadd.f32 %v644, %v851
    %853 = vmatprep.mubr.bf16.mxu0 0
    %854 = vmatmul.mubr.bf16.gmra.mrb[0].mxu0 %v736
    %v855 = vpop.f32.mrb[0].mxu0
    %v856 = vadd.f32 %v640, %v855
    %v857 = vpop.f32.mrb[0].mxu0
    %v858 = vadd.f32 %v644, %v857
    %v859 = vpop.f32.mrb[0].mxu0
    %v860 = vadd.f32 %v640, %v859
    %v861 = vpop.f32.mrb[0].mxu0
    %v862 = vadd.f32 %v644, %v861
    %863 = vdwg.mxu0
    %v864 = vld [vmem:[%s9] sm:$0xff]
    %v865 = vld [vmem:[%s9 + $0x8] sm:$0xff]
    %v866 = vld [vmem:[%s9 + $0x10] sm:$0xff]
    %v867 = vld [vmem:[%s9 + $0x18] sm:$0xff]
    %v868 = vld [vmem:[%s9 + $0x20] sm:$0xff]
    %v869 = vld [vmem:[%s9 + $0x28] sm:$0xff]
    %v870 = vld [vmem:[%s9 + $0x30] sm:$0xff]
    %v871 = vld [vmem:[%s9 + $0x38] sm:$0xff]
    %v872 = vadd.f32 %v773, %v860
    %v873 = vadd.f32 %v775, %v862
    %v882 = vunpack.c.l.b16 %v864
    %v883 = vunpack.c.h.b16 %v864
    %v884 = vunpack.c.l.b16 %v865
    %v885 = vunpack.c.h.b16 %v865
    %v886 = vunpack.c.l.b16 %v866
    %v887 = vunpack.c.h.b16 %v866
    %v888 = vunpack.c.l.b16 %v867
    %v889 = vunpack.c.h.b16 %v867
    %v890 = vunpack.c.l.b16 %v868
    %v891 = vunpack.c.h.b16 %v868
    %v892 = vunpack.c.l.b16 %v869
    %v893 = vunpack.c.h.b16 %v869
    %v894 = vunpack.c.l.b16 %v870
    %v895 = vunpack.c.h.b16 %v870
    %v896 = vunpack.c.l.b16 %v871
    %v897 = vunpack.c.h.b16 %v871
    %v898 = vpack.c.b16 %v884, %v882
    %v899 = vpack.c.b16 %v885, %v883
    %v900 = vpack.c.b16 %v888, %v886
    %v901 = vpack.c.b16 %v889, %v887
    %v902 = vpack.c.b16 %v892, %v890
    %v903 = vpack.c.b16 %v893, %v891
    %v904 = vpack.c.b16 %v896, %v894
    %v905 = vpack.c.b16 %v897, %v895
    %v915 = vsel %vm169, 0, 0
    %917 = vmatprep.subr.bf16.mxu0 %v899
    %918 = vmatpush1.bf16.msra.mxu0 %v898
    %919 = vmatprep.subr.bf16.mxu0 %v901
    %920 = vmatpush1.bf16.msra.mxu0 %v900
    %921 = vmatprep.subr.bf16.mxu0 %v903
    %922 = vmatpush1.bf16.msra.mxu0 %v902
    %923 = vmatprep.subr.bf16.mxu0 %v905
    %924 = vmatpush1.bf16.msra.mxu0 %v904
    %925 = vmatprep.subr.bf16.mxu0 0
    %926 = vmatpush1.bf16.msra.mxu0 0
    %927 = vmatprep.subr.bf16.mxu0 0
    %928 = vmatpush1.bf16.msra.mxu0 0
    %929 = vmatprep.subr.bf16.mxu0 0
    %930 = vmatpush1.bf16.msra.mxu0 0
    %931 = vmatprep.subr.bf16.mxu0 0
    %932 = vmatpush1.bf16.msra.mxu0 0
    %933 = vmatprep.subr.bf16.mxu0 0
    %934 = vmatpush1.bf16.msra.mxu0 0
    %935 = vmatprep.subr.bf16.mxu0 0
    %936 = vmatpush1.bf16.msra.mxu0 0
    %937 = vmatprep.subr.bf16.mxu0 0
    %938 = vmatpush1.bf16.msra.mxu0 0
    %939 = vmatprep.subr.bf16.mxu0 0
    %940 = vmatpush1.bf16.msra.mxu0 0
    %941 = vmatprep.subr.bf16.mxu0 0
    %942 = vmatpush1.bf16.msra.mxu0 0
    %943 = vmatprep.subr.bf16.mxu0 0
    %944 = vmatpush1.bf16.msra.mxu0 0
    %945 = vmatprep.subr.bf16.mxu0 0
    %946 = vmatpush1.bf16.msra.mxu0 0
    %947 = vmatprep.subr.bf16.mxu0 0
    %948 = vmatpush1.bf16.msra.mxu0 0
    %949 = vmatprep.mubr.bf16.mxu0 0
    %950 = vmatmul.mubr.bf16.gmra.mrb[0].mxu0 %v915
    %v951 = vpop.f32.mrb[0].mxu0
    %v952 = vadd.f32 0.0, %v951
    %v953 = vpop.f32.mrb[0].mxu0
    %v954 = vadd.f32 0.0, %v953
    %v955 = vpop.f32.mrb[0].mxu0
    %v956 = vpop.f32.mrb[0].mxu0
    %957 = vdwg.mxu0
    %v958 = vadd.f32 %v872, %v952
    %v959 = vadd.f32 %v873, %v954
    %v960 = vtanh.pop %v958
    %v961 = vtanh.pop %v959
    %v962 = vxor.u32 %v958, 2147483648
    %v963 = vxor.u32 %v959, 2147483648
    %v964 = vmul.f32 %v962, 1.442695
    %v965 = vpow.pop %v964
    %v966 = vmul.f32 %v963, 1.442695
    %v967 = vpow.pop %v966
    %v968 = vadd.f32 %v965, 1.0
    %v969 = vadd.f32 %v967, 1.0
    %v970 = vrcp.pop %v968
    %v971 = vmul.f32 1.0, %v970
    %v972 = vrcp.pop %v969
    %v973 = vmul.f32 1.0, %v972
    %v974 = vsel %vm608, 1, 0
    %v975 = vsel %vm609, 1, 0
    %vm976 = vcmp.eq.s32.totalorder %v974, 1
    %vm977 = vcmp.eq.s32.totalorder %v975, 1
    %v978 = vsel %vm976, %v960, %v971
    %v979 = vsel %vm977, %v961, %v973
    %v980 = vmul.f32 %v978, 0.0
    %v981 = vmul.f32 %v978, %v979
    %983 = vrot.lane.b32.xlu0 %v981, 64
    %v984 = vpop.permute.xlu0 %983
    %v986 = vadd.f32 %v980, %v984
    %v987 = vtanh.pop %v986
    %v988 = vmul.f32 %v979, %v987
    %v989 = vsel %vm610, 1, 0
    %vm990 = vcmp.eq.s32.totalorder %v989, 1
    %992 = vset.pattern.permute.xlu0 0
    %993 = vperm.xlu0 %992, %v82
    %v994 = vpop.permute.xlu0 %993
    %997 = vset.pattern.permute.xlu0 0
    %998 = vperm.xlu0 %997, %v87
    %v999 = vpop.permute.xlu0 %998
    %v1001 = vsel %vm990, %v994, %v999
    %vm1002 = vcmp.gt.f32.partialorder %v1001, 0.0
    %1004 = vrot.lane.b32.xlu0 %v988, 64
    %v1005 = vpop.permute.xlu0 %1004
    %v1007 = vsel %vm1002, %v1005, 0.0
    %1009 = vrot.lane.b32.xlu0 %v986, 64
    %v1010 = vpop.permute.xlu0 %1009
    %v1012 = vsel %vm1002, %v1010, 0.0
    %1013 = vst.msk [vmem:[#allocation2] sm:$0xff] %vm584, %v1007
    %vm1014 = vcmask 523520
    %1015 = vst.msk [vmem:[#allocation2 + $0x28] sm:$0xff] %vm1014, %v1007
    %v1016 = vadd.f32 %v777, %v856
    %v1017 = vadd.f32 %v779, %v858
    %v1018 = vpack.c.bf16 %v1007, %v1007
    %v1020 = vsel %vm169, %v1018, 0
    %1022 = vmatprep.subr.bf16.mxu0 %v899
    %1023 = vmatpush1.bf16.msra.mxu0 %v898
    %1024 = vmatprep.subr.bf16.mxu0 %v901
    %1025 = vmatpush1.bf16.msra.mxu0 %v900
    %1026 = vmatprep.subr.bf16.mxu0 %v903
    %1027 = vmatpush1.bf16.msra.mxu0 %v902
    %1028 = vmatprep.subr.bf16.mxu0 %v905
    %1029 = vmatpush1.bf16.msra.mxu0 %v904
    %1030 = vmatprep.subr.bf16.mxu0 0
    %1031 = vmatpush1.bf16.msra.mxu0 0
    %1032 = vmatprep.subr.bf16.mxu0 0
    %1033 = vmatpush1.bf16.msra.mxu0 0
    %1034 = vmatprep.subr.bf16.mxu0 0
    %1035 = vmatpush1.bf16.msra.mxu0 0
    %1036 = vmatprep.subr.bf16.mxu0 0
    %1037 = vmatpush1.bf16.msra.mxu0 0
    %1038 = vmatprep.subr.bf16.mxu0 0
    %1039 = vmatpush1.bf16.msra.mxu0 0
    %1040 = vmatprep.subr.bf16.mxu0 0
    %1041 = vmatpush1.bf16.msra.mxu0 0
    %1042 = vmatprep.subr.bf16.mxu0 0
    %1043 = vmatpush1.bf16.msra.mxu0 0
    %1044 = vmatprep.subr.bf16.mxu0 0
    %1045 = vmatpush1.bf16.msra.mxu0 0
    %1046 = vmatprep.subr.bf16.mxu0 0
    %1047 = vmatpush1.bf16.msra.mxu0 0
    %1048 = vmatprep.subr.bf16.mxu0 0
    %1049 = vmatpush1.bf16.msra.mxu0 0
    %1050 = vmatprep.subr.bf16.mxu0 0
    %1051 = vmatpush1.bf16.msra.mxu0 0
    %1052 = vmatprep.subr.bf16.mxu0 0
    %1053 = vmatpush1.bf16.msra.mxu0 0
    %1054 = vmatprep.mubr.bf16.mxu0 0
    %1055 = vmatmul.mubr.bf16.gmra.mrb[0].mxu0 %v1020
    %v1056 = vpop.f32.mrb[0].mxu0
    %v1057 = vadd.f32 0.0, %v1056
    %v1058 = vpop.f32.mrb[0].mxu0
    %v1059 = vadd.f32 0.0, %v1058
    %v1060 = vpop.f32.mrb[0].mxu0
    %v1061 = vpop.f32.mrb[0].mxu0
    %1062 = vdwg.mxu0
    %v1063 = vadd.f32 %v1016, %v1057
    %v1064 = vadd.f32 %v1017, %v1059
    %v1065 = vtanh.pop %v1063
    %v1066 = vtanh.pop %v1064
    %v1067 = vxor.u32 %v1063, 2147483648
    %v1068 = vxor.u32 %v1064, 2147483648
    %v1069 = vmul.f32 %v1067, 1.442695
    %v1070 = vpow.pop %v1069
    %v1071 = vmul.f32 %v1068, 1.442695
    %v1072 = vpow.pop %v1071
    %v1073 = vadd.f32 %v1070, 1.0
    %v1074 = vadd.f32 %v1072, 1.0
    %v1075 = vrcp.pop %v1073
    %v1076 = vmul.f32 1.0, %v1075
    %v1077 = vrcp.pop %v1074
    %v1078 = vmul.f32 1.0, %v1077
    %v1079 = vsel %vm976, %v1065, %v1076
    %v1080 = vsel %vm977, %v1066, %v1078
    %1082 = vrot.lane.b32.xlu0 %v1012, 64
    %v1083 = vpop.permute.xlu0 %1082
    %v1085 = vmul.f32 %v1079, %v1083
    %v1086 = vmul.f32 %v1079, %v1080
    %1088 = vrot.lane.b32.xlu0 %v1086, 64
    %v1089 = vpop.permute.xlu0 %1088
    %v1091 = vadd.f32 %v1085, %v1089
    %v1092 = vtanh.pop %v1091
    %v1093 = vmul.f32 %v1080, %v1092
    %1095 = vset.pattern.permute.xlu0 0
    %1096 = vperm.xlu0 %1095, %v83
    %v1097 = vpop.permute.xlu0 %1096
    %1100 = vset.pattern.permute.xlu0 0
    %1101 = vperm.xlu0 %1100, %v86
    %v1102 = vpop.permute.xlu0 %1101
    %v1104 = vsel %vm990, %v1097, %v1102
    %vm1105 = vcmp.gt.f32.partialorder %v1104, 0.0
    %1107 = vrot.lane.b32.xlu0 %v1093, 64
    %v1108 = vpop.permute.xlu0 %1107
    %v1110 = vsel %vm1105, %v1108, %v1007
    %1112 = vrot.lane.b32.xlu0 %v1091, 64
    %v1113 = vpop.permute.xlu0 %1112
    %v1115 = vsel %vm1105, %v1113, %v1012
    %v1116 = vsel %vm1105, %v1108, 0.0
    %1117 = vst.msk [vmem:[#allocation2 + $0x8] sm:$0xff] %vm584, %v1116
    %1118 = vst.msk [vmem:[#allocation2 + $0x20] sm:$0xff] %vm1014, %v1116
    %v1119 = vadd.f32 %v783, %v850
    %v1120 = vadd.f32 %v785, %v852
    %v1121 = vpack.c.bf16 %v1110, %v1110
    %v1123 = vsel %vm169, %v1121, 0
    %1125 = vmatprep.subr.bf16.mxu0 %v899
    %1126 = vmatpush1.bf16.msra.mxu0 %v898
    %1127 = vmatprep.subr.bf16.mxu0 %v901
    %1128 = vmatpush1.bf16.msra.mxu0 %v900
    %1129 = vmatprep.subr.bf16.mxu0 %v903
    %1130 = vmatpush1.bf16.msra.mxu0 %v902
    %1131 = vmatprep.subr.bf16.mxu0 %v905
    %1132 = vmatpush1.bf16.msra.mxu0 %v904
    %1133 = vmatprep.subr.bf16.mxu0 0
    %1134 = vmatpush1.bf16.msra.mxu0 0
    %1135 = vmatprep.subr.bf16.mxu0 0
    %1136 = vmatpush1.bf16.msra.mxu0 0
    %1137 = vmatprep.subr.bf16.mxu0 0
    %1138 = vmatpush1.bf16.msra.mxu0 0
    %1139 = vmatprep.subr.bf16.mxu0 0
    %1140 = vmatpush1.bf16.msra.mxu0 0
    %1141 = vmatprep.subr.bf16.mxu0 0
    %1142 = vmatpush1.bf16.msra.mxu0 0
    %1143 = vmatprep.subr.bf16.mxu0 0
    %1144 = vmatpush1.bf16.msra.mxu0 0
    %1145 = vmatprep.subr.bf16.mxu0 0
    %1146 = vmatpush1.bf16.msra.mxu0 0
    %1147 = vmatprep.subr.bf16.mxu0 0
    %1148 = vmatpush1.bf16.msra.mxu0 0
    %1149 = vmatprep.subr.bf16.mxu0 0
    %1150 = vmatpush1.bf16.msra.mxu0 0
    %1151 = vmatprep.subr.bf16.mxu0 0
    %1152 = vmatpush1.bf16.msra.mxu0 0
    %1153 = vmatprep.subr.bf16.mxu0 0
    %1154 = vmatpush1.bf16.msra.mxu0 0
    %1155 = vmatprep.subr.bf16.mxu0 0
    %1156 = vmatpush1.bf16.msra.mxu0 0
    %1157 = vmatprep.mubr.bf16.mxu0 0
    %1158 = vmatmul.mubr.bf16.gmra.mrb[0].mxu0 %v1123
    %v1159 = vpop.f32.mrb[0].mxu0
    %v1160 = vadd.f32 0.0, %v1159
    %v1161 = vpop.f32.mrb[0].mxu0
    %v1162 = vadd.f32 0.0, %v1161
    %v1163 = vpop.f32.mrb[0].mxu0
    %v1164 = vpop.f32.mrb[0].mxu0
    %1165 = vdwg.mxu0
    %v1166 = vadd.f32 %v1119, %v1160
    %v1167 = vadd.f32 %v1120, %v1162
    %v1168 = vtanh.pop %v1166
    %v1169 = vtanh.pop %v1167
    %v1170 = vxor.u32 %v1166, 2147483648
    %v1171 = vxor.u32 %v1167, 2147483648
    %v1172 = vmul.f32 %v1170, 1.442695
    %v1173 = vpow.pop %v1172
    %v1174 = vmul.f32 %v1171, 1.442695
    %v1175 = vpow.pop %v1174
    %v1176 = vadd.f32 %v1173, 1.0
    %v1177 = vadd.f32 %v1175, 1.0
    %v1178 = vrcp.pop %v1176
    %v1179 = vmul.f32 1.0, %v1178
    %v1180 = vrcp.pop %v1177
    %v1181 = vmul.f32 1.0, %v1180
    %v1182 = vsel %vm976, %v1168, %v1179
    %v1183 = vsel %vm977, %v1169, %v1181
    %1185 = vrot.lane.b32.xlu0 %v1115, 64
    %v1186 = vpop.permute.xlu0 %1185
    %v1188 = vmul.f32 %v1182, %v1186
    %v1189 = vmul.f32 %v1182, %v1183
    %1191 = vrot.lane.b32.xlu0 %v1189, 64
    %v1192 = vpop.permute.xlu0 %1191
    %v1194 = vadd.f32 %v1188, %v1192
    %v1195 = vtanh.pop %v1194
    %v1196 = vmul.f32 %v1183, %v1195
    %1198 = vset.pattern.permute.xlu0 0
    %1199 = vperm.xlu0 %1198, %v84
    %v1200 = vpop.permute.xlu0 %1199
    %1203 = vset.pattern.permute.xlu0 0
    %1204 = vperm.xlu0 %1203, %v85
    %v1205 = vpop.permute.xlu0 %1204
    %v1207 = vsel %vm990, %v1200, %v1205
    %vm1208 = vcmp.gt.f32.partialorder %v1207, 0.0
    %1210 = vrot.lane.b32.xlu0 %v1196, 64
    %v1211 = vpop.permute.xlu0 %1210
    %v1213 = vsel %vm1208, %v1211, %v1110
    %1215 = vrot.lane.b32.xlu0 %v1194, 64
    %v1216 = vpop.permute.xlu0 %1215
    %v1218 = vsel %vm1208, %v1216, %v1115
    %v1219 = vsel %vm1208, %v1211, 0.0
    %1220 = vst.msk [vmem:[#allocation2 + $0x10] sm:$0xff] %vm584, %v1219
    %1221 = vst.msk [vmem:[#allocation2 + $0x18] sm:$0xff] %vm1014, %v1219
    %v1222 = vadd.f32 %v787, %v846
    %v1223 = vadd.f32 %v789, %v848
    %v1224 = vpack.c.bf16 %v1213, %v1213
    %v1226 = vsel %vm169, %v1224, 0
    %1228 = vmatprep.subr.bf16.mxu0 %v899
    %1229 = vmatpush1.bf16.msra.mxu0 %v898
    %1230 = vmatprep.subr.bf16.mxu0 %v901
    %1231 = vmatpush1.bf16.msra.mxu0 %v900
    %1232 = vmatprep.subr.bf16.mxu0 %v903
    %1233 = vmatpush1.bf16.msra.mxu0 %v902
    %1234 = vmatprep.subr.bf16.mxu0 %v905
    %1235 = vmatpush1.bf16.msra.mxu0 %v904
    %1236 = vmatprep.subr.bf16.mxu0 0
    %1237 = vmatpush1.bf16.msra.mxu0 0
    %1238 = vmatprep.subr.bf16.mxu0 0
    %1239 = vmatpush1.bf16.msra.mxu0 0
    %1240 = vmatprep.subr.bf16.mxu0 0
    %1241 = vmatpush1.bf16.msra.mxu0 0
    %1242 = vmatprep.subr.bf16.mxu0 0
    %1243 = vmatpush1.bf16.msra.mxu0 0
    %1244 = vmatprep.subr.bf16.mxu0 0
    %1245 = vmatpush1.bf16.msra.mxu0 0
    %1246 = vmatprep.subr.bf16.mxu0 0
    %1247 = vmatpush1.bf16.msra.mxu0 0
    %1248 = vmatprep.subr.bf16.mxu0 0
    %1249 = vmatpush1.bf16.msra.mxu0 0
    %1250 = vmatprep.subr.bf16.mxu0 0
    %1251 = vmatpush1.bf16.msra.mxu0 0
    %1252 = vmatprep.subr.bf16.mxu0 0
    %1253 = vmatpush1.bf16.msra.mxu0 0
    %1254 = vmatprep.subr.bf16.mxu0 0
    %1255 = vmatpush1.bf16.msra.mxu0 0
    %1256 = vmatprep.subr.bf16.mxu0 0
    %1257 = vmatpush1.bf16.msra.mxu0 0
    %1258 = vmatprep.subr.bf16.mxu0 0
    %1259 = vmatpush1.bf16.msra.mxu0 0
    %1260 = vmatprep.mubr.bf16.mxu0 0
    %1261 = vmatmul.mubr.bf16.gmra.mrb[0].mxu0 %v1226
    %v1262 = vpop.f32.mrb[0].mxu0
    %v1263 = vadd.f32 0.0, %v1262
    %v1264 = vpop.f32.mrb[0].mxu0
    %v1265 = vadd.f32 0.0, %v1264
    %v1266 = vpop.f32.mrb[0].mxu0
    %v1267 = vpop.f32.mrb[0].mxu0
    %1268 = vdwg.mxu0
    %v1269 = vadd.f32 %v1222, %v1263
    %v1270 = vadd.f32 %v1223, %v1265
    %v1271 = vtanh.pop %v1269
    %v1272 = vtanh.pop %v1270
    %v1273 = vxor.u32 %v1269, 2147483648
    %v1274 = vxor.u32 %v1270, 2147483648
    %v1275 = vmul.f32 %v1273, 1.442695
    %v1276 = vpow.pop %v1275
    %v1277 = vmul.f32 %v1274, 1.442695
    %v1278 = vpow.pop %v1277
    %v1279 = vadd.f32 %v1276, 1.0
    %v1280 = vadd.f32 %v1278, 1.0
    %v1281 = vrcp.pop %v1279
    %v1282 = vmul.f32 1.0, %v1281
    %v1283 = vrcp.pop %v1280
    %v1284 = vmul.f32 1.0, %v1283
    %v1285 = vsel %vm976, %v1271, %v1282
    %v1286 = vsel %vm977, %v1272, %v1284
    %1288 = vrot.lane.b32.xlu0 %v1218, 64
    %v1289 = vpop.permute.xlu0 %1288
    %v1291 = vmul.f32 %v1285, %v1289
    %v1292 = vmul.f32 %v1285, %v1286
    %1294 = vrot.lane.b32.xlu0 %v1292, 64
    %v1295 = vpop.permute.xlu0 %1294
    %v1297 = vadd.f32 %v1291, %v1295
    %v1298 = vtanh.pop %v1297
    %v1299 = vmul.f32 %v1286, %v1298
    %v1300 = vsel %vm990, %v1205, %v1200
    %vm1301 = vcmp.gt.f32.partialorder %v1300, 0.0
    %1303 = vrot.lane.b32.xlu0 %v1299, 64
    %v1304 = vpop.permute.xlu0 %1303
    %v1306 = vsel %vm1301, %v1304, %v1213
    %1308 = vrot.lane.b32.xlu0 %v1297, 64
    %v1309 = vpop.permute.xlu0 %1308
    %v1311 = vsel %vm1301, %v1309, %v1218
    %v1312 = vsel %vm1301, %v1304, 0.0
    %1313 = vst.msk [vmem:[#allocation2 + $0x18] sm:$0xff] %vm584, %v1312
    %1314 = vst.msk [vmem:[#allocation2 + $0x10] sm:$0xff] %vm1014, %v1312
    %v1315 = vadd.f32 %v793, %v840
    %v1316 = vadd.f32 %v795, %v842
    %v1317 = vpack.c.bf16 %v1306, %v1306
    %v1319 = vsel %vm169, %v1317, 0
    %1321 = vmatprep.subr.bf16.mxu0 %v899
    %1322 = vmatpush1.bf16.msra.mxu0 %v898
    %1323 = vmatprep.subr.bf16.mxu0 %v901
    %1324 = vmatpush1.bf16.msra.mxu0 %v900
    %1325 = vmatprep.subr.bf16.mxu0 %v903
    %1326 = vmatpush1.bf16.msra.mxu0 %v902
    %1327 = vmatprep.subr.bf16.mxu0 %v905
    %1328 = vmatpush1.bf16.msra.mxu0 %v904
    %1329 = vmatprep.subr.bf16.mxu0 0
    %1330 = vmatpush1.bf16.msra.mxu0 0
    %1331 = vmatprep.subr.bf16.mxu0 0
    %1332 = vmatpush1.bf16.msra.mxu0 0
    %1333 = vmatprep.subr.bf16.mxu0 0
    %1334 = vmatpush1.bf16.msra.mxu0 0
    %1335 = vmatprep.subr.bf16.mxu0 0
    %1336 = vmatpush1.bf16.msra.mxu0 0
    %1337 = vmatprep.subr.bf16.mxu0 0
    %1338 = vmatpush1.bf16.msra.mxu0 0
    %1339 = vmatprep.subr.bf16.mxu0 0
    %1340 = vmatpush1.bf16.msra.mxu0 0
    %1341 = vmatprep.subr.bf16.mxu0 0
    %1342 = vmatpush1.bf16.msra.mxu0 0
    %1343 = vmatprep.subr.bf16.mxu0 0
    %1344 = vmatpush1.bf16.msra.mxu0 0
    %1345 = vmatprep.subr.bf16.mxu0 0
    %1346 = vmatpush1.bf16.msra.mxu0 0
    %1347 = vmatprep.subr.bf16.mxu0 0
    %1348 = vmatpush1.bf16.msra.mxu0 0
    %1349 = vmatprep.subr.bf16.mxu0 0
    %1350 = vmatpush1.bf16.msra.mxu0 0
    %1351 = vmatprep.subr.bf16.mxu0 0
    %1352 = vmatpush1.bf16.msra.mxu0 0
    %1353 = vmatprep.mubr.bf16.mxu0 0
    %1354 = vmatmul.mubr.bf16.gmra.mrb[0].mxu0 %v1319
    %v1355 = vpop.f32.mrb[0].mxu0
    %v1356 = vadd.f32 0.0, %v1355
    %v1357 = vpop.f32.mrb[0].mxu0
    %v1358 = vadd.f32 0.0, %v1357
    %v1359 = vpop.f32.mrb[0].mxu0
    %v1360 = vpop.f32.mrb[0].mxu0
    %1361 = vdwg.mxu0
    %v1362 = vadd.f32 %v1315, %v1356
    %v1363 = vadd.f32 %v1316, %v1358
    %v1364 = vtanh.pop %v1362
    %v1365 = vtanh.pop %v1363
    %v1366 = vxor.u32 %v1362, 2147483648
    %v1367 = vxor.u32 %v1363, 2147483648
    %v1368 = vmul.f32 %v1366, 1.442695
    %v1369 = vpow.pop %v1368
    %v1370 = vmul.f32 %v1367, 1.442695
    %v1371 = vpow.pop %v1370
    %v1372 = vadd.f32 %v1369, 1.0
    %v1373 = vadd.f32 %v1371, 1.0
    %v1374 = vrcp.pop %v1372
    %v1375 = vmul.f32 1.0, %v1374
    %v1376 = vrcp.pop %v1373
    %v1377 = vmul.f32 1.0, %v1376
    %v1378 = vsel %vm976, %v1364, %v1375
    %v1379 = vsel %vm977, %v1365, %v1377
    %1381 = vrot.lane.b32.xlu0 %v1311, 64
    %v1382 = vpop.permute.xlu0 %1381
    %v1384 = vmul.f32 %v1378, %v1382
    %v1385 = vmul.f32 %v1378, %v1379
    %1387 = vrot.lane.b32.xlu0 %v1385, 64
    %v1388 = vpop.permute.xlu0 %1387
    %v1390 = vadd.f32 %v1384, %v1388
    %v1391 = vtanh.pop %v1390
    %v1392 = vmul.f32 %v1379, %v1391
    %v1393 = vsel %vm990, %v1102, %v1097
    %vm1394 = vcmp.gt.f32.partialorder %v1393, 0.0
    %1396 = vrot.lane.b32.xlu0 %v1392, 64
    %v1397 = vpop.permute.xlu0 %1396
    %v1399 = vsel %vm1394, %v1397, %v1306
    %1401 = vrot.lane.b32.xlu0 %v1390, 64
    %v1402 = vpop.permute.xlu0 %1401
    %v1404 = vsel %vm1394, %v1402, %v1311
    %v1405 = vsel %vm1394, %v1397, 0.0
    %1406 = vst.msk [vmem:[#allocation2 + $0x20] sm:$0xff] %vm584, %v1405
    %1407 = vst.msk [vmem:[#allocation2 + $0x8] sm:$0xff] %vm1014, %v1405
    %v1408 = vadd.f32 %v797, %v836
    %v1409 = vadd.f32 %v799, %v838
    %v1410 = vpack.c.bf16 %v1399, %v1399
    %v1412 = vsel %vm169, %v1410, 0
    %1414 = vmatprep.subr.bf16.mxu0 %v899
    %1415 = vmatpush1.bf16.msra.mxu0 %v898
    %1416 = vmatprep.subr.bf16.mxu0 %v901
    %1417 = vmatpush1.bf16.msra.mxu0 %v900
    %1418 = vmatprep.subr.bf16.mxu0 %v903
    %1419 = vmatpush1.bf16.msra.mxu0 %v902
    %1420 = vmatprep.subr.bf16.mxu0 %v905
    %1421 = vmatpush1.bf16.msra.mxu0 %v904
    %1422 = vmatprep.subr.bf16.mxu0 0
    %1423 = vmatpush1.bf16.msra.mxu0 0
    %1424 = vmatprep.subr.bf16.mxu0 0
    %1425 = vmatpush1.bf16.msra.mxu0 0
    %1426 = vmatprep.subr.bf16.mxu0 0
    %1427 = vmatpush1.bf16.msra.mxu0 0
    %1428 = vmatprep.subr.bf16.mxu0 0
    %1429 = vmatpush1.bf16.msra.mxu0 0
    %1430 = vmatprep.subr.bf16.mxu0 0
    %1431 = vmatpush1.bf16.msra.mxu0 0
    %1432 = vmatprep.subr.bf16.mxu0 0
    %1433 = vmatpush1.bf16.msra.mxu0 0
    %1434 = vmatprep.subr.bf16.mxu0 0
    %1435 = vmatpush1.bf16.msra.mxu0 0
    %1436 = vmatprep.subr.bf16.mxu0 0
    %1437 = vmatpush1.bf16.msra.mxu0 0
    %1438 = vmatprep.subr.bf16.mxu0 0
    %1439 = vmatpush1.bf16.msra.mxu0 0
    %1440 = vmatprep.subr.bf16.mxu0 0
    %1441 = vmatpush1.bf16.msra.mxu0 0
    %1442 = vmatprep.subr.bf16.mxu0 0
    %1443 = vmatpush1.bf16.msra.mxu0 0
    %1444 = vmatprep.subr.bf16.mxu0 0
    %1445 = vmatpush1.bf16.msra.mxu0 0
    %1446 = vmatprep.mubr.bf16.mxu0 0
    %1447 = vmatmul.mubr.bf16.gmra.mrb[0].mxu0 %v1412
    %v1448 = vpop.f32.mrb[0].mxu0
    %v1449 = vadd.f32 0.0, %v1448
    %v1450 = vpop.f32.mrb[0].mxu0
    %v1451 = vadd.f32 0.0, %v1450
    %v1452 = vpop.f32.mrb[0].mxu0
    %v1453 = vpop.f32.mrb[0].mxu0
    %1454 = vdwg.mxu0
    %v1455 = vadd.f32 %v1408, %v1449
    %v1456 = vadd.f32 %v1409, %v1451
    %v1457 = vtanh.pop %v1455
    %v1458 = vtanh.pop %v1456
    %v1459 = vxor.u32 %v1455, 2147483648
    %v1460 = vxor.u32 %v1456, 2147483648
    %v1461 = vmul.f32 %v1459, 1.442695
    %v1462 = vpow.pop %v1461
    %v1463 = vmul.f32 %v1460, 1.442695
    %v1464 = vpow.pop %v1463
    %v1465 = vadd.f32 %v1462, 1.0
    %v1466 = vadd.f32 %v1464, 1.0
    %v1467 = vrcp.pop %v1465
    %v1468 = vmul.f32 1.0, %v1467
    %v1469 = vrcp.pop %v1466
    %v1470 = vmul.f32 1.0, %v1469
    %v1471 = vsel %vm976, %v1457, %v1468
    %v1472 = vsel %vm977, %v1458, %v1470
    %1474 = vrot.lane.b32.xlu0 %v1404, 64
    %v1475 = vpop.permute.xlu0 %1474
    %v1477 = vmul.f32 %v1471, %v1475
    %v1478 = vmul.f32 %v1471, %v1472
    %1480 = vrot.lane.b32.xlu0 %v1478, 64
    %v1481 = vpop.permute.xlu0 %1480
    %v1483 = vadd.f32 %v1477, %v1481
    %v1484 = vtanh.pop %v1483
    %v1485 = vmul.f32 %v1472, %v1484
    %v1486 = vsel %vm990, %v999, %v994
    %vm1487 = vcmp.gt.f32.partialorder %v1486, 0.0
    %1489 = vrot.lane.b32.xlu0 %v1485, 64
    %v1490 = vpop.permute.xlu0 %1489
    %v1492 = vsel %vm1487, %v1490, 0.0
    %1493 = vst.msk [vmem:[#allocation2 + $0x28] sm:$0xff] %vm584, %v1492
    %1494 = vst.msk [vmem:[#allocation2] sm:$0xff] %vm1014, %v1492
    %v1495 = vld [vmem:[#allocation2] sm:$0xff]
    %v1496 = vld [vmem:[#allocation2 + $0x8] sm:$0xff]
    %v1497 = vld [vmem:[#allocation2 + $0x10] sm:$0xff]
    %v1498 = vld [vmem:[#allocation2 + $0x18] sm:$0xff]
    %v1499 = vld [vmem:[#allocation2 + $0x20] sm:$0xff]
    %v1500 = vld [vmem:[#allocation2 + $0x28] sm:$0xff]
    %v1501 = vpack.c.bf16 %v1496, %v1495
    %v1502 = vpack.c.bf16 %v1498, %v1497
    %v1503 = vpack.c.bf16 %v1500, %v1499
    %v1504 = vld [vmem:[%s10] sm:$0xff]
    %v1505 = vld [vmem:[%s10 + $0x8] sm:$0xff]
    %v1506 = vld [vmem:[%s10 + $0x10] sm:$0xff]
    %v1507 = vld [vmem:[%s10 + $0x18] sm:$0xff]
    %v1508 = vld [vmem:[%s10 + $0x20] sm:$0xff]
    %v1509 = vld [vmem:[%s10 + $0x28] sm:$0xff]
    %v1510 = vld [vmem:[%s10 + $0x30] sm:$0xff]
    %v1511 = vld [vmem:[%s10 + $0x38] sm:$0xff]
    %v1512 = vld [vmem:[%s10 + $0x40] sm:$0xff]
    %v1513 = vld [vmem:[%s10 + $0x48] sm:$0xff]
    %v1514 = vld [vmem:[%s10 + $0x50] sm:$0xff]
    %v1515 = vld [vmem:[%s10 + $0x58] sm:$0xff]
    %v1516 = vld [vmem:[%s10 + $0x60] sm:$0xff]
    %v1517 = vld [vmem:[%s10 + $0x68] sm:$0xff]
    %v1518 = vld [vmem:[%s10 + $0x70] sm:$0xff]
    %v1519 = vld [vmem:[%s10 + $0x78] sm:$0xff]
    %v1520 = vld [vmem:[%s12] sm:$0xf]
    %v1522 = vlaneseq
    %v1523 = vshrl.u32 %v1522, 7
    %v1524 = vsub.s32 0, %v1523
    %v1525 = vrot.slane %v1520, %v1524
    %v1526 = vlaneseq
    %v1527 = vshrl.u32 %v1526, 7
    %v1528 = vsub.s32 1, %v1527
    %v1529 = vrot.slane %v1520, %v1528
    %v1530 = vlaneseq
    %v1531 = vshrl.u32 %v1530, 7
    %v1532 = vsub.s32 2, %v1531
    %v1533 = vrot.slane %v1520, %v1532
    %v1534 = vlaneseq
    %v1535 = vshrl.u32 %v1534, 7
    %v1536 = vsub.s32 3, %v1535
    %v1537 = vrot.slane %v1520, %v1536
    %v1558 = vunpack.c.l.b16 %v1504
    %v1559 = vunpack.c.h.b16 %v1504
    %v1560 = vunpack.c.l.b16 %v1505
    %v1561 = vunpack.c.h.b16 %v1505
    %v1562 = vunpack.c.l.b16 %v1506
    %v1563 = vunpack.c.h.b16 %v1506
    %v1564 = vunpack.c.l.b16 %v1507
    %v1565 = vunpack.c.h.b16 %v1507
    %v1566 = vunpack.c.l.b16 %v1508
    %v1567 = vunpack.c.h.b16 %v1508
    %v1568 = vunpack.c.l.b16 %v1509
    %v1569 = vunpack.c.h.b16 %v1509
    %v1570 = vunpack.c.l.b16 %v1510
    %v1571 = vunpack.c.h.b16 %v1510
    %v1572 = vunpack.c.l.b16 %v1511
    %v1573 = vunpack.c.h.b16 %v1511
    %v1574 = vunpack.c.l.b16 %v1512
    %v1575 = vunpack.c.h.b16 %v1512
    %v1576 = vunpack.c.l.b16 %v1513
    %v1577 = vunpack.c.h.b16 %v1513
    %v1578 = vunpack.c.l.b16 %v1514
    %v1579 = vunpack.c.h.b16 %v1514
    %v1580 = vunpack.c.l.b16 %v1515
    %v1581 = vunpack.c.h.b16 %v1515
    %v1582 = vunpack.c.l.b16 %v1516
    %v1583 = vunpack.c.h.b16 %v1516
    %v1584 = vunpack.c.l.b16 %v1517
    %v1585 = vunpack.c.h.b16 %v1517
    %v1586 = vunpack.c.l.b16 %v1518
    %v1587 = vunpack.c.h.b16 %v1518
    %v1588 = vunpack.c.l.b16 %v1519
    %v1589 = vunpack.c.h.b16 %v1519
    %v1590 = vpack.c.b16 %v1562, %v1558
    %v1591 = vpack.c.b16 %v1563, %v1559
    %v1592 = vpack.c.b16 %v1564, %v1560
    %v1593 = vpack.c.b16 %v1565, %v1561
    %v1594 = vpack.c.b16 %v1570, %v1566
    %v1595 = vpack.c.b16 %v1571, %v1567
    %v1596 = vpack.c.b16 %v1572, %v1568
    %v1597 = vpack.c.b16 %v1573, %v1569
    %v1598 = vpack.c.b16 %v1578, %v1574
    %v1599 = vpack.c.b16 %v1579, %v1575
    %v1600 = vpack.c.b16 %v1580, %v1576
    %v1601 = vpack.c.b16 %v1581, %v1577
    %v1602 = vpack.c.b16 %v1586, %v1582
    %v1603 = vpack.c.b16 %v1587, %v1583
    %v1604 = vpack.c.b16 %v1588, %v1584
    %v1605 = vpack.c.b16 %v1589, %v1585
    %1622 = vmatprep.subr.bf16.mxu0 %v1591
    %1623 = vmatpush1.bf16.msra.mxu0 %v1590
    %1624 = vmatprep.subr.bf16.mxu0 %v1595
    %1625 = vmatpush1.bf16.msra.mxu0 %v1594
    %1626 = vmatprep.subr.bf16.mxu0 %v1599
    %1627 = vmatpush1.bf16.msra.mxu0 %v1598
    %1628 = vmatprep.subr.bf16.mxu0 %v1603
    %1629 = vmatpush1.bf16.msra.mxu0 %v1602
    %1630 = vmatprep.subr.bf16.mxu0 0
    %1631 = vmatpush1.bf16.msra.mxu0 0
    %1632 = vmatprep.subr.bf16.mxu0 0
    %1633 = vmatpush1.bf16.msra.mxu0 0
    %1634 = vmatprep.subr.bf16.mxu0 0
    %1635 = vmatpush1.bf16.msra.mxu0 0
    %1636 = vmatprep.subr.bf16.mxu0 0
    %1637 = vmatpush1.bf16.msra.mxu0 0
    %1638 = vmatprep.subr.bf16.mxu0 0
    %1639 = vmatpush1.bf16.msra.mxu0 0
    %1640 = vmatprep.subr.bf16.mxu0 0
    %1641 = vmatpush1.bf16.msra.mxu0 0
    %1642 = vmatprep.subr.bf16.mxu0 0
    %1643 = vmatpush1.bf16.msra.mxu0 0
    %1644 = vmatprep.subr.bf16.mxu0 0
    %1645 = vmatpush1.bf16.msra.mxu0 0
    %1646 = vmatprep.subr.bf16.mxu0 0
    %1647 = vmatpush1.bf16.msra.mxu0 0
    %1648 = vmatprep.subr.bf16.mxu0 0
    %1649 = vmatpush1.bf16.msra.mxu0 0
    %1650 = vmatprep.subr.bf16.mxu0 0
    %1651 = vmatpush1.bf16.msra.mxu0 0
    %1652 = vmatprep.subr.bf16.mxu0 0
    %1653 = vmatpush1.bf16.msra.mxu0 0
    %1654 = vmatprep.mubr.bf16.mxu0 0
    %1655 = vmatmul.mubr.bf16.gmra.mrb[0].mxu0 %v730
    %v1656 = vpop.f32.mrb[0].mxu0
    %v1657 = vadd.f32 %v1525, %v1656
    %v1658 = vpop.f32.mrb[0].mxu0
    %v1659 = vadd.f32 %v1529, %v1658
    %v1660 = vpop.f32.mrb[0].mxu0
    %v1661 = vadd.f32 %v1525, %v1660
    %v1662 = vpop.f32.mrb[0].mxu0
    %v1663 = vadd.f32 %v1529, %v1662
    %1664 = vmatprep.mubr.bf16.mxu0 0
    %1665 = vmatmul.mubr.bf16.gmra.mrb[0].mxu0 %v733
    %v1666 = vpop.f32.mrb[0].mxu0
    %v1667 = vadd.f32 %v1525, %v1666
    %v1668 = vpop.f32.mrb[0].mxu0
    %v1669 = vadd.f32 %v1529, %v1668
    %v1670 = vpop.f32.mrb[0].mxu0
    %v1671 = vadd.f32 %v1525, %v1670
    %v1672 = vpop.f32.mrb[0].mxu0
    %v1673 = vadd.f32 %v1529, %v1672
    %1674 = vmatprep.mubr.bf16.mxu0 0
    %1675 = vmatmul.mubr.bf16.gmra.mrb[0].mxu0 %v736
    %v1676 = vpop.f32.mrb[0].mxu0
    %v1677 = vadd.f32 %v1525, %v1676
    %v1678 = vpop.f32.mrb[0].mxu0
    %v1679 = vadd.f32 %v1529, %v1678
    %v1680 = vpop.f32.mrb[0].mxu0
    %v1681 = vadd.f32 %v1525, %v1680
    %v1682 = vpop.f32.mrb[0].mxu0
    %v1683 = vadd.f32 %v1529, %v1682
    %1684 = vdwg.mxu0
    %1685 = vmatprep.subr.bf16.mxu0 %v1593
    %1686 = vmatpush1.bf16.msra.mxu0 %v1592
    %1687 = vmatprep.subr.bf16.mxu0 %v1597
    %1688 = vmatpush1.bf16.msra.mxu0 %v1596
    %1689 = vmatprep.subr.bf16.mxu0 %v1601
    %1690 = vmatpush1.bf16.msra.mxu0 %v1600
    %1691 = vmatprep.subr.bf16.mxu0 %v1605
    %1692 = vmatpush1.bf16.msra.mxu0 %v1604
    %1693 = vmatprep.subr.bf16.mxu0 0
    %1694 = vmatpush1.bf16.msra.mxu0 0
    %1695 = vmatprep.subr.bf16.mxu0 0
    %1696 = vmatpush1.bf16.msra.mxu0 0
    %1697 = vmatprep.subr.bf16.mxu0 0
    %1698 = vmatpush1.bf16.msra.mxu0 0
    %1699 = vmatprep.subr.bf16.mxu0 0
    %1700 = vmatpush1.bf16.msra.mxu0 0
    %1701 = vmatprep.subr.bf16.mxu0 0
    %1702 = vmatpush1.bf16.msra.mxu0 0
    %1703 = vmatprep.subr.bf16.mxu0 0
    %1704 = vmatpush1.bf16.msra.mxu0 0
    %1705 = vmatprep.subr.bf16.mxu0 0
    %1706 = vmatpush1.bf16.msra.mxu0 0
    %1707 = vmatprep.subr.bf16.mxu0 0
    %1708 = vmatpush1.bf16.msra.mxu0 0
    %1709 = vmatprep.subr.bf16.mxu0 0
    %1710 = vmatpush1.bf16.msra.mxu0 0
    %1711 = vmatprep.subr.bf16.mxu0 0
    %1712 = vmatpush1.bf16.msra.mxu0 0
    %1713 = vmatprep.subr.bf16.mxu0 0
    %1714 = vmatpush1.bf16.msra.mxu0 0
    %1715 = vmatprep.subr.bf16.mxu0 0
    %1716 = vmatpush1.bf16.msra.mxu0 0
    %1717 = vmatprep.mubr.bf16.mxu0 0
    %1718 = vmatmul.mubr.bf16.gmra.mrb[0].mxu0 %v730
    %v1719 = vpop.f32.mrb[0].mxu0
    %v1720 = vadd.f32 %v1533, %v1719
    %v1721 = vpop.f32.mrb[0].mxu0
    %v1722 = vadd.f32 %v1537, %v1721
    %v1723 = vpop.f32.mrb[0].mxu0
    %v1724 = vadd.f32 %v1533, %v1723
    %v1725 = vpop.f32.mrb[0].mxu0
    %v1726 = vadd.f32 %v1537, %v1725
    %1727 = vmatprep.mubr.bf16.mxu0 0
    %1728 = vmatmul.mubr.bf16.gmra.mrb[0].mxu0 %v733
    %v1729 = vpop.f32.mrb[0].mxu0
    %v1730 = vadd.f32 %v1533, %v1729
    %v1731 = vpop.f32.mrb[0].mxu0
    %v1732 = vadd.f32 %v1537, %v1731
    %v1733 = vpop.f32.mrb[0].mxu0
    %v1734 = vadd.f32 %v1533, %v1733
    %v1735 = vpop.f32.mrb[0].mxu0
    %v1736 = vadd.f32 %v1537, %v1735
    %1737 = vmatprep.mubr.bf16.mxu0 0
    %1738 = vmatmul.mubr.bf16.gmra.mrb[0].mxu0 %v736
    %v1739 = vpop.f32.mrb[0].mxu0
    %v1740 = vadd.f32 %v1533, %v1739
    %v1741 = vpop.f32.mrb[0].mxu0
    %v1742 = vadd.f32 %v1537, %v1741
    %v1743 = vpop.f32.mrb[0].mxu0
    %v1744 = vadd.f32 %v1533, %v1743
    %v1745 = vpop.f32.mrb[0].mxu0
    %v1746 = vadd.f32 %v1537, %v1745
    %1747 = vdwg.mxu0
    %v1748 = vld [vmem:[%s11] sm:$0xff]
    %v1749 = vld [vmem:[%s11 + $0x8] sm:$0xff]
    %v1750 = vld [vmem:[%s11 + $0x10] sm:$0xff]
    %v1751 = vld [vmem:[%s11 + $0x18] sm:$0xff]
    %v1752 = vld [vmem:[%s11 + $0x20] sm:$0xff]
    %v1753 = vld [vmem:[%s11 + $0x28] sm:$0xff]
    %v1754 = vld [vmem:[%s11 + $0x30] sm:$0xff]
    %v1755 = vld [vmem:[%s11 + $0x38] sm:$0xff]
    %v1756 = vld [vmem:[%s11 + $0x40] sm:$0xff]
    %v1757 = vld [vmem:[%s11 + $0x48] sm:$0xff]
    %v1758 = vld [vmem:[%s11 + $0x50] sm:$0xff]
    %v1759 = vld [vmem:[%s11 + $0x58] sm:$0xff]
    %v1760 = vld [vmem:[%s11 + $0x60] sm:$0xff]
    %v1761 = vld [vmem:[%s11 + $0x68] sm:$0xff]
    %v1762 = vld [vmem:[%s11 + $0x70] sm:$0xff]
    %v1763 = vld [vmem:[%s11 + $0x78] sm:$0xff]
    %v1780 = vunpack.c.l.b16 %v1748
    %v1781 = vunpack.c.h.b16 %v1748
    %v1782 = vunpack.c.l.b16 %v1749
    %v1783 = vunpack.c.h.b16 %v1749
    %v1784 = vunpack.c.l.b16 %v1750
    %v1785 = vunpack.c.h.b16 %v1750
    %v1786 = vunpack.c.l.b16 %v1751
    %v1787 = vunpack.c.h.b16 %v1751
    %v1788 = vunpack.c.l.b16 %v1752
    %v1789 = vunpack.c.h.b16 %v1752
    %v1790 = vunpack.c.l.b16 %v1753
    %v1791 = vunpack.c.h.b16 %v1753
    %v1792 = vunpack.c.l.b16 %v1754
    %v1793 = vunpack.c.h.b16 %v1754
    %v1794 = vunpack.c.l.b16 %v1755
    %v1795 = vunpack.c.h.b16 %v1755
    %v1796 = vunpack.c.l.b16 %v1756
    %v1797 = vunpack.c.h.b16 %v1756
    %v1798 = vunpack.c.l.b16 %v1757
    %v1799 = vunpack.c.h.b16 %v1757
    %v1800 = vunpack.c.l.b16 %v1758
    %v1801 = vunpack.c.h.b16 %v1758
    %v1802 = vunpack.c.l.b16 %v1759
    %v1803 = vunpack.c.h.b16 %v1759
    %v1804 = vunpack.c.l.b16 %v1760
    %v1805 = vunpack.c.h.b16 %v1760
    %v1806 = vunpack.c.l.b16 %v1761
    %v1807 = vunpack.c.h.b16 %v1761
    %v1808 = vunpack.c.l.b16 %v1762
    %v1809 = vunpack.c.h.b16 %v1762
    %v1810 = vunpack.c.l.b16 %v1763
    %v1811 = vunpack.c.h.b16 %v1763
    %v1812 = vpack.c.b16 %v1784, %v1780
    %v1813 = vpack.c.b16 %v1785, %v1781
    %v1814 = vpack.c.b16 %v1786, %v1782
    %v1815 = vpack.c.b16 %v1787, %v1783
    %v1816 = vpack.c.b16 %v1792, %v1788
    %v1817 = vpack.c.b16 %v1793, %v1789
    %v1818 = vpack.c.b16 %v1794, %v1790
    %v1819 = vpack.c.b16 %v1795, %v1791
    %v1820 = vpack.c.b16 %v1800, %v1796
    %v1821 = vpack.c.b16 %v1801, %v1797
    %v1822 = vpack.c.b16 %v1802, %v1798
    %v1823 = vpack.c.b16 %v1803, %v1799
    %v1824 = vpack.c.b16 %v1808, %v1804
    %v1825 = vpack.c.b16 %v1809, %v1805
    %v1826 = vpack.c.b16 %v1810, %v1806
    %v1827 = vpack.c.b16 %v1811, %v1807
    %v1845 = vsel %vm169, %v1501, 0
    %v1848 = vsel %vm169, %v1502, 0
    %v1851 = vsel %vm169, %v1503, 0
    %1853 = vmatprep.subr.bf16.mxu0 %v1813
    %1854 = vmatpush1.bf16.msra.mxu0 %v1812
    %1855 = vmatprep.subr.bf16.mxu0 %v1817
    %1856 = vmatpush1.bf16.msra.mxu0 %v1816
    %1857 = vmatprep.subr.bf16.mxu0 %v1821
    %1858 = vmatpush1.bf16.msra.mxu0 %v1820
    %1859 = vmatprep.subr.bf16.mxu0 %v1825
    %1860 = vmatpush1.bf16.msra.mxu0 %v1824
    %1861 = vmatprep.subr.bf16.mxu0 0
    %1862 = vmatpush1.bf16.msra.mxu0 0
    %1863 = vmatprep.subr.bf16.mxu0 0
    %1864 = vmatpush1.bf16.msra.mxu0 0
    %1865 = vmatprep.subr.bf16.mxu0 0
    %1866 = vmatpush1.bf16.msra.mxu0 0
    %1867 = vmatprep.subr.bf16.mxu0 0
    %1868 = vmatpush1.bf16.msra.mxu0 0
    %1869 = vmatprep.subr.bf16.mxu0 0
    %1870 = vmatpush1.bf16.msra.mxu0 0
    %1871 = vmatprep.subr.bf16.mxu0 0
    %1872 = vmatpush1.bf16.msra.mxu0 0
    %1873 = vmatprep.subr.bf16.mxu0 0
    %1874 = vmatpush1.bf16.msra.mxu0 0
    %1875 = vmatprep.subr.bf16.mxu0 0
    %1876 = vmatpush1.bf16.msra.mxu0 0
    %1877 = vmatprep.subr.bf16.mxu0 0
    %1878 = vmatpush1.bf16.msra.mxu0 0
    %1879 = vmatprep.subr.bf16.mxu0 0
    %1880 = vmatpush1.bf16.msra.mxu0 0
    %1881 = vmatprep.subr.bf16.mxu0 0
    %1882 = vmatpush1.bf16.msra.mxu0 0
    %1883 = vmatprep.subr.bf16.mxu0 0
    %1884 = vmatpush1.bf16.msra.mxu0 0
    %1885 = vmatprep.mubr.bf16.mxu0 0
    %1886 = vmatmul.mubr.bf16.gmra.mrb[0].mxu0 %v1845
    %v1887 = vpop.f32.mrb[0].mxu0
    %v1888 = vadd.f32 0.0, %v1887
    %v1889 = vpop.f32.mrb[0].mxu0
    %v1890 = vadd.f32 0.0, %v1889
    %v1891 = vpop.f32.mrb[0].mxu0
    %v1892 = vadd.f32 0.0, %v1891
    %v1893 = vpop.f32.mrb[0].mxu0
    %v1894 = vadd.f32 0.0, %v1893
    %1895 = vmatprep.mubr.bf16.mxu0 0
    %1896 = vmatmul.mubr.bf16.gmra.mrb[0].mxu0 %v1848
    %v1897 = vpop.f32.mrb[0].mxu0
    %v1898 = vadd.f32 0.0, %v1897
    %v1899 = vpop.f32.mrb[0].mxu0
    %v1900 = vadd.f32 0.0, %v1899
    %v1901 = vpop.f32.mrb[0].mxu0
    %v1902 = vadd.f32 0.0, %v1901
    %v1903 = vpop.f32.mrb[0].mxu0
    %v1904 = vadd.f32 0.0, %v1903
    %1905 = vmatprep.mubr.bf16.mxu0 0
    %1906 = vmatmul.mubr.bf16.gmra.mrb[0].mxu0 %v1851
    %v1907 = vpop.f32.mrb[0].mxu0
    %v1908 = vadd.f32 0.0, %v1907
    %v1909 = vpop.f32.mrb[0].mxu0
    %v1910 = vadd.f32 0.0, %v1909
    %v1911 = vpop.f32.mrb[0].mxu0
    %v1912 = vadd.f32 0.0, %v1911
    %v1913 = vpop.f32.mrb[0].mxu0
    %v1914 = vadd.f32 0.0, %v1913
    %1915 = vdwg.mxu0
    %1916 = vmatprep.subr.bf16.mxu0 %v1815
    %1917 = vmatpush1.bf16.msra.mxu0 %v1814
    %1918 = vmatprep.subr.bf16.mxu0 %v1819
    %1919 = vmatpush1.bf16.msra.mxu0 %v1818
    %1920 = vmatprep.subr.bf16.mxu0 %v1823
    %1921 = vmatpush1.bf16.msra.mxu0 %v1822
    %1922 = vmatprep.subr.bf16.mxu0 %v1827
    %1923 = vmatpush1.bf16.msra.mxu0 %v1826
    %1924 = vmatprep.subr.bf16.mxu0 0
    %1925 = vmatpush1.bf16.msra.mxu0 0
    %1926 = vmatprep.subr.bf16.mxu0 0
    %1927 = vmatpush1.bf16.msra.mxu0 0
    %1928 = vmatprep.subr.bf16.mxu0 0
    %1929 = vmatpush1.bf16.msra.mxu0 0
    %1930 = vmatprep.subr.bf16.mxu0 0
    %1931 = vmatpush1.bf16.msra.mxu0 0
    %1932 = vmatprep.subr.bf16.mxu0 0
    %1933 = vmatpush1.bf16.msra.mxu0 0
    %1934 = vmatprep.subr.bf16.mxu0 0
    %1935 = vmatpush1.bf16.msra.mxu0 0
    %1936 = vmatprep.subr.bf16.mxu0 0
    %1937 = vmatpush1.bf16.msra.mxu0 0
    %1938 = vmatprep.subr.bf16.mxu0 0
    %1939 = vmatpush1.bf16.msra.mxu0 0
    %1940 = vmatprep.subr.bf16.mxu0 0
    %1941 = vmatpush1.bf16.msra.mxu0 0
    %1942 = vmatprep.subr.bf16.mxu0 0
    %1943 = vmatpush1.bf16.msra.mxu0 0
    %1944 = vmatprep.subr.bf16.mxu0 0
    %1945 = vmatpush1.bf16.msra.mxu0 0
    %1946 = vmatprep.subr.bf16.mxu0 0
    %1947 = vmatpush1.bf16.msra.mxu0 0
    %1948 = vmatprep.mubr.bf16.mxu0 0
    %1949 = vmatmul.mubr.bf16.gmra.mrb[0].mxu0 %v1845
    %v1950 = vpop.f32.mrb[0].mxu0
    %v1951 = vadd.f32 0.0, %v1950
    %v1952 = vpop.f32.mrb[0].mxu0
    %v1953 = vadd.f32 0.0, %v1952
    %v1954 = vpop.f32.mrb[0].mxu0
    %v1955 = vadd.f32 0.0, %v1954
    %v1956 = vpop.f32.mrb[0].mxu0
    %v1957 = vadd.f32 0.0, %v1956
    %1958 = vmatprep.mubr.bf16.mxu0 0
    %1959 = vmatmul.mubr.bf16.gmra.mrb[0].mxu0 %v1848
    %v1960 = vpop.f32.mrb[0].mxu0
    %v1961 = vadd.f32 0.0, %v1960
    %v1962 = vpop.f32.mrb[0].mxu0
    %v1963 = vadd.f32 0.0, %v1962
    %v1964 = vpop.f32.mrb[0].mxu0
    %v1965 = vadd.f32 0.0, %v1964
    %v1966 = vpop.f32.mrb[0].mxu0
    %v1967 = vadd.f32 0.0, %v1966
    %1968 = vmatprep.mubr.bf16.mxu0 0
    %1969 = vmatmul.mubr.bf16.gmra.mrb[0].mxu0 %v1851
    %v1970 = vpop.f32.mrb[0].mxu0
    %v1971 = vadd.f32 0.0, %v1970
    %v1972 = vpop.f32.mrb[0].mxu0
    %v1973 = vadd.f32 0.0, %v1972
    %v1974 = vpop.f32.mrb[0].mxu0
    %v1975 = vadd.f32 0.0, %v1974
    %v1976 = vpop.f32.mrb[0].mxu0
    %v1977 = vadd.f32 0.0, %v1976
    %1978 = vdwg.mxu0
    %v1979 = vadd.f32 %v1657, %v1888
    %v1980 = vadd.f32 %v1659, %v1890
    %v1981 = vadd.f32 %v1720, %v1951
    %v1982 = vadd.f32 %v1722, %v1953
    %v1983 = vadd.f32 %v1661, %v1892
    %v1984 = vadd.f32 %v1663, %v1894
    %v1985 = vadd.f32 %v1724, %v1955
    %v1986 = vadd.f32 %v1726, %v1957
    %v1987 = vadd.f32 %v1667, %v1898
    %v1988 = vadd.f32 %v1669, %v1900
    %v1989 = vadd.f32 %v1730, %v1961
    %v1990 = vadd.f32 %v1732, %v1963
    %v1991 = vadd.f32 %v1671, %v1902
    %v1992 = vadd.f32 %v1673, %v1904
    %v1993 = vadd.f32 %v1734, %v1965
    %v1994 = vadd.f32 %v1736, %v1967
    %v1995 = vadd.f32 %v1677, %v1908
    %v1996 = vadd.f32 %v1679, %v1910
    %v1997 = vadd.f32 %v1740, %v1971
    %v1998 = vadd.f32 %v1742, %v1973
    %v1999 = vadd.f32 %v1681, %v1912
    %v2000 = vadd.f32 %v1683, %v1914
    %v2001 = vadd.f32 %v1744, %v1975
    %v2002 = vadd.f32 %v1746, %v1977
    %v2003 = vld [vmem:[%s13] sm:$0xff]
    %v2004 = vld [vmem:[%s13 + $0x8] sm:$0xff]
    %v2005 = vld [vmem:[%s13 + $0x10] sm:$0xff]
    %v2006 = vld [vmem:[%s13 + $0x18] sm:$0xff]
    %v2007 = vld [vmem:[%s13 + $0x20] sm:$0xff]
    %v2008 = vld [vmem:[%s13 + $0x28] sm:$0xff]
    %v2009 = vld [vmem:[%s13 + $0x30] sm:$0xff]
    %v2010 = vld [vmem:[%s13 + $0x38] sm:$0xff]
    %v2011 = vadd.f32 %v1979, %v2001
    %v2012 = vadd.f32 %v1980, %v2002
    %v2021 = vunpack.c.l.b16 %v2003
    %v2022 = vunpack.c.h.b16 %v2003
    %v2023 = vunpack.c.l.b16 %v2004
    %v2024 = vunpack.c.h.b16 %v2004
    %v2025 = vunpack.c.l.b16 %v2005
    %v2026 = vunpack.c.h.b16 %v2005
    %v2027 = vunpack.c.l.b16 %v2006
    %v2028 = vunpack.c.h.b16 %v2006
    %v2029 = vunpack.c.l.b16 %v2007
    %v2030 = vunpack.c.h.b16 %v2007
    %v2031 = vunpack.c.l.b16 %v2008
    %v2032 = vunpack.c.h.b16 %v2008
    %v2033 = vunpack.c.l.b16 %v2009
    %v2034 = vunpack.c.h.b16 %v2009
    %v2035 = vunpack.c.l.b16 %v2010
    %v2036 = vunpack.c.h.b16 %v2010
    %v2037 = vpack.c.b16 %v2023, %v2021
    %v2038 = vpack.c.b16 %v2024, %v2022
    %v2039 = vpack.c.b16 %v2027, %v2025
    %v2040 = vpack.c.b16 %v2028, %v2026
    %v2041 = vpack.c.b16 %v2031, %v2029
    %v2042 = vpack.c.b16 %v2032, %v2030
    %v2043 = vpack.c.b16 %v2035, %v2033
    %v2044 = vpack.c.b16 %v2036, %v2034
    %2053 = vmatprep.subr.bf16.mxu0 %v2038
    %2054 = vmatpush1.bf16.msra.mxu0 %v2037
    %2055 = vmatprep.subr.bf16.mxu0 %v2040
    %2056 = vmatpush1.bf16.msra.mxu0 %v2039
    %2057 = vmatprep.subr.bf16.mxu0 %v2042
    %2058 = vmatpush1.bf16.msra.mxu0 %v2041
    %2059 = vmatprep.subr.bf16.mxu0 %v2044
    %2060 = vmatpush1.bf16.msra.mxu0 %v2043
    %2061 = vmatprep.subr.bf16.mxu0 0
    %2062 = vmatpush1.bf16.msra.mxu0 0
    %2063 = vmatprep.subr.bf16.mxu0 0
    %2064 = vmatpush1.bf16.msra.mxu0 0
    %2065 = vmatprep.subr.bf16.mxu0 0
    %2066 = vmatpush1.bf16.msra.mxu0 0
    %2067 = vmatprep.subr.bf16.mxu0 0
    %2068 = vmatpush1.bf16.msra.mxu0 0
    %2069 = vmatprep.subr.bf16.mxu0 0
    %2070 = vmatpush1.bf16.msra.mxu0 0
    %2071 = vmatprep.subr.bf16.mxu0 0
    %2072 = vmatpush1.bf16.msra.mxu0 0
    %2073 = vmatprep.subr.bf16.mxu0 0
    %2074 = vmatpush1.bf16.msra.mxu0 0
    %2075 = vmatprep.subr.bf16.mxu0 0
    %2076 = vmatpush1.bf16.msra.mxu0 0
    %2077 = vmatprep.subr.bf16.mxu0 0
    %2078 = vmatpush1.bf16.msra.mxu0 0
    %2079 = vmatprep.subr.bf16.mxu0 0
    %2080 = vmatpush1.bf16.msra.mxu0 0
    %2081 = vmatprep.subr.bf16.mxu0 0
    %2082 = vmatpush1.bf16.msra.mxu0 0
    %2083 = vmatprep.subr.bf16.mxu0 0
    %2084 = vmatpush1.bf16.msra.mxu0 0
    %2085 = vmatprep.mubr.bf16.mxu0 0
    %2086 = vmatmul.mubr.bf16.gmra.mrb[0].mxu0 %v915
    %v2087 = vpop.f32.mrb[0].mxu0
    %v2088 = vadd.f32 0.0, %v2087
    %v2089 = vpop.f32.mrb[0].mxu0
    %v2090 = vadd.f32 0.0, %v2089
    %v2091 = vpop.f32.mrb[0].mxu0
    %v2092 = vpop.f32.mrb[0].mxu0
    %2093 = vdwg.mxu0
    %v2094 = vadd.f32 %v2011, %v2088
    %v2095 = vadd.f32 %v2012, %v2090
    %v2096 = vtanh.pop %v2094
    %v2097 = vtanh.pop %v2095
    %v2098 = vxor.u32 %v2094, 2147483648
    %v2099 = vxor.u32 %v2095, 2147483648
    %v2100 = vmul.f32 %v2098, 1.442695
    %v2101 = vpow.pop %v2100
    %v2102 = vmul.f32 %v2099, 1.442695
    %v2103 = vpow.pop %v2102
    %v2104 = vadd.f32 %v2101, 1.0
    %v2105 = vadd.f32 %v2103, 1.0
    %v2106 = vrcp.pop %v2104
    %v2107 = vmul.f32 1.0, %v2106
    %v2108 = vrcp.pop %v2105
    %v2109 = vmul.f32 1.0, %v2108
    %v2110 = vsel %vm976, %v2096, %v2107
    %v2111 = vsel %vm977, %v2097, %v2109
    %v2112 = vmul.f32 %v2110, 0.0
    %v2113 = vmul.f32 %v2110, %v2111
    %2115 = vrot.lane.b32.xlu0 %v2113, 64
    %v2116 = vpop.permute.xlu0 %2115
    %v2118 = vadd.f32 %v2112, %v2116
    %v2119 = vtanh.pop %v2118
    %v2120 = vmul.f32 %v2111, %v2119
    %2122 = vrot.lane.b32.xlu0 %v2120, 64
    %v2123 = vpop.permute.xlu0 %2122
    %v2125 = vsel %vm1002, %v2123, 0.0
    %2127 = vrot.lane.b32.xlu0 %v2118, 64
    %v2128 = vpop.permute.xlu0 %2127
    %v2130 = vsel %vm1002, %v2128, 0.0
    %2131 = vst.msk [vmem:[#allocation3] sm:$0xff] %vm584, %v2125
    %2132 = vst.msk [vmem:[#allocation3 + $0x28] sm:$0xff] %vm1014, %v2125
    %v2133 = vadd.f32 %v1983, %v1997
    %v2134 = vadd.f32 %v1984, %v1998
    %v2135 = vpack.c.bf16 %v2125, %v2125
    %v2137 = vsel %vm169, %v2135, 0
    %2139 = vmatprep.subr.bf16.mxu0 %v2038
    %2140 = vmatpush1.bf16.msra.mxu0 %v2037
    %2141 = vmatprep.subr.bf16.mxu0 %v2040
    %2142 = vmatpush1.bf16.msra.mxu0 %v2039
    %2143 = vmatprep.subr.bf16.mxu0 %v2042
    %2144 = vmatpush1.bf16.msra.mxu0 %v2041
    %2145 = vmatprep.subr.bf16.mxu0 %v2044
    %2146 = vmatpush1.bf16.msra.mxu0 %v2043
    %2147 = vmatprep.subr.bf16.mxu0 0
    %2148 = vmatpush1.bf16.msra.mxu0 0
    %2149 = vmatprep.subr.bf16.mxu0 0
    %2150 = vmatpush1.bf16.msra.mxu0 0
    %2151 = vmatprep.subr.bf16.mxu0 0
    %2152 = vmatpush1.bf16.msra.mxu0 0
    %2153 = vmatprep.subr.bf16.mxu0 0
    %2154 = vmatpush1.bf16.msra.mxu0 0
    %2155 = vmatprep.subr.bf16.mxu0 0
    %2156 = vmatpush1.bf16.msra.mxu0 0
    %2157 = vmatprep.subr.bf16.mxu0 0
    %2158 = vmatpush1.bf16.msra.mxu0 0
    %2159 = vmatprep.subr.bf16.mxu0 0
    %2160 = vmatpush1.bf16.msra.mxu0 0
    %2161 = vmatprep.subr.bf16.mxu0 0
    %2162 = vmatpush1.bf16.msra.mxu0 0
    %2163 = vmatprep.subr.bf16.mxu0 0
    %2164 = vmatpush1.bf16.msra.mxu0 0
    %2165 = vmatprep.subr.bf16.mxu0 0
    %2166 = vmatpush1.bf16.msra.mxu0 0
    %2167 = vmatprep.subr.bf16.mxu0 0
    %2168 = vmatpush1.bf16.msra.mxu0 0
    %2169 = vmatprep.subr.bf16.mxu0 0
    %2170 = vmatpush1.bf16.msra.mxu0 0
    %2171 = vmatprep.mubr.bf16.mxu0 0
    %2172 = vmatmul.mubr.bf16.gmra.mrb[0].mxu0 %v2137
    %v2173 = vpop.f32.mrb[0].mxu0
    %v2174 = vadd.f32 0.0, %v2173
    %v2175 = vpop.f32.mrb[0].mxu0
    %v2176 = vadd.f32 0.0, %v2175
    %v2177 = vpop.f32.mrb[0].mxu0
    %v2178 = vpop.f32.mrb[0].mxu0
    %2179 = vdwg.mxu0
    %v2180 = vadd.f32 %v2133, %v2174
    %v2181 = vadd.f32 %v2134, %v2176
    %v2182 = vtanh.pop %v2180
    %v2183 = vtanh.pop %v2181
    %v2184 = vxor.u32 %v2180, 2147483648
    %v2185 = vxor.u32 %v2181, 2147483648
    %v2186 = vmul.f32 %v2184, 1.442695
    %v2187 = vpow.pop %v2186
    %v2188 = vmul.f32 %v2185, 1.442695
    %v2189 = vpow.pop %v2188
    %v2190 = vadd.f32 %v2187, 1.0
    %v2191 = vadd.f32 %v2189, 1.0
    %v2192 = vrcp.pop %v2190
    %v2193 = vmul.f32 1.0, %v2192
    %v2194 = vrcp.pop %v2191
    %v2195 = vmul.f32 1.0, %v2194
    %v2196 = vsel %vm976, %v2182, %v2193
    %v2197 = vsel %vm977, %v2183, %v2195
    %2199 = vrot.lane.b32.xlu0 %v2130, 64
    %v2200 = vpop.permute.xlu0 %2199
    %v2202 = vmul.f32 %v2196, %v2200
    %v2203 = vmul.f32 %v2196, %v2197
    %2205 = vrot.lane.b32.xlu0 %v2203, 64
    %v2206 = vpop.permute.xlu0 %2205
    %v2208 = vadd.f32 %v2202, %v2206
    %v2209 = vtanh.pop %v2208
    %v2210 = vmul.f32 %v2197, %v2209
    %2212 = vrot.lane.b32.xlu0 %v2210, 64
    %v2213 = vpop.permute.xlu0 %2212
    %v2215 = vsel %vm1105, %v2213, %v2125
    %2217 = vrot.lane.b32.xlu0 %v2208, 64
    %v2218 = vpop.permute.xlu0 %2217
    %v2220 = vsel %vm1105, %v2218, %v2130
    %v2221 = vsel %vm1105, %v2213, 0.0
    %2222 = vst.msk [vmem:[#allocation3 + $0x8] sm:$0xff] %vm584, %v2221
    %2223 = vst.msk [vmem:[#allocation3 + $0x20] sm:$0xff] %vm1014, %v2221
    %v2224 = vadd.f32 %v1987, %v1993
    %v2225 = vadd.f32 %v1988, %v1994
    %v2226 = vpack.c.bf16 %v2215, %v2215
    %v2228 = vsel %vm169, %v2226, 0
    %2230 = vmatprep.subr.bf16.mxu0 %v2038
    %2231 = vmatpush1.bf16.msra.mxu0 %v2037
    %2232 = vmatprep.subr.bf16.mxu0 %v2040
    %2233 = vmatpush1.bf16.msra.mxu0 %v2039
    %2234 = vmatprep.subr.bf16.mxu0 %v2042
    %2235 = vmatpush1.bf16.msra.mxu0 %v2041
    %2236 = vmatprep.subr.bf16.mxu0 %v2044
    %2237 = vmatpush1.bf16.msra.mxu0 %v2043
    %2238 = vmatprep.subr.bf16.mxu0 0
    %2239 = vmatpush1.bf16.msra.mxu0 0
    %2240 = vmatprep.subr.bf16.mxu0 0
    %2241 = vmatpush1.bf16.msra.mxu0 0
    %2242 = vmatprep.subr.bf16.mxu0 0
    %2243 = vmatpush1.bf16.msra.mxu0 0
    %2244 = vmatprep.subr.bf16.mxu0 0
    %2245 = vmatpush1.bf16.msra.mxu0 0
    %2246 = vmatprep.subr.bf16.mxu0 0
    %2247 = vmatpush1.bf16.msra.mxu0 0
    %2248 = vmatprep.subr.bf16.mxu0 0
    %2249 = vmatpush1.bf16.msra.mxu0 0
    %2250 = vmatprep.subr.bf16.mxu0 0
    %2251 = vmatpush1.bf16.msra.mxu0 0
    %2252 = vmatprep.subr.bf16.mxu0 0
    %2253 = vmatpush1.bf16.msra.mxu0 0
    %2254 = vmatprep.subr.bf16.mxu0 0
    %2255 = vmatpush1.bf16.msra.mxu0 0
    %2256 = vmatprep.subr.bf16.mxu0 0
    %2257 = vmatpush1.bf16.msra.mxu0 0
    %2258 = vmatprep.subr.bf16.mxu0 0
    %2259 = vmatpush1.bf16.msra.mxu0 0
    %2260 = vmatprep.subr.bf16.mxu0 0
    %2261 = vmatpush1.bf16.msra.mxu0 0
    %2262 = vmatprep.mubr.bf16.mxu0 0
    %2263 = vmatmul.mubr.bf16.gmra.mrb[0].mxu0 %v2228
    %v2264 = vpop.f32.mrb[0].mxu0
    %v2265 = vadd.f32 0.0, %v2264
    %v2266 = vpop.f32.mrb[0].mxu0
    %v2267 = vadd.f32 0.0, %v2266
    %v2268 = vpop.f32.mrb[0].mxu0
    %v2269 = vpop.f32.mrb[0].mxu0
    %2270 = vdwg.mxu0
    %v2271 = vadd.f32 %v2224, %v2265
    %v2272 = vadd.f32 %v2225, %v2267
    %v2273 = vtanh.pop %v2271
    %v2274 = vtanh.pop %v2272
    %v2275 = vxor.u32 %v2271, 2147483648
    %v2276 = vxor.u32 %v2272, 2147483648
    %v2277 = vmul.f32 %v2275, 1.442695
    %v2278 = vpow.pop %v2277
    %v2279 = vmul.f32 %v2276, 1.442695
    %v2280 = vpow.pop %v2279
    %v2281 = vadd.f32 %v2278, 1.0
    %v2282 = vadd.f32 %v2280, 1.0
    %v2283 = vrcp.pop %v2281
    %v2284 = vmul.f32 1.0, %v2283
    %v2285 = vrcp.pop %v2282
    %v2286 = vmul.f32 1.0, %v2285
    %v2287 = vsel %vm976, %v2273, %v2284
    %v2288 = vsel %vm977, %v2274, %v2286
    %2290 = vrot.lane.b32.xlu0 %v2220, 64
    %v2291 = vpop.permute.xlu0 %2290
    %v2293 = vmul.f32 %v2287, %v2291
    %v2294 = vmul.f32 %v2287, %v2288
    %2296 = vrot.lane.b32.xlu0 %v2294, 64
    %v2297 = vpop.permute.xlu0 %2296
    %v2299 = vadd.f32 %v2293, %v2297
    %v2300 = vtanh.pop %v2299
    %v2301 = vmul.f32 %v2288, %v2300
    %2303 = vrot.lane.b32.xlu0 %v2301, 64
    %v2304 = vpop.permute.xlu0 %2303
    %v2306 = vsel %vm1208, %v2304, %v2215
    %2308 = vrot.lane.b32.xlu0 %v2299, 64
    %v2309 = vpop.permute.xlu0 %2308
    %v2311 = vsel %vm1208, %v2309, %v2220
    %v2312 = vsel %vm1208, %v2304, 0.0
    %2313 = vst.msk [vmem:[#allocation3 + $0x10] sm:$0xff] %vm584, %v2312
    %2314 = vst.msk [vmem:[#allocation3 + $0x18] sm:$0xff] %vm1014, %v2312
    %v2315 = vadd.f32 %v1991, %v1989
    %v2316 = vadd.f32 %v1992, %v1990
    %v2317 = vpack.c.bf16 %v2306, %v2306
    %v2319 = vsel %vm169, %v2317, 0
    %2321 = vmatprep.subr.bf16.mxu0 %v2038
    %2322 = vmatpush1.bf16.msra.mxu0 %v2037
    %2323 = vmatprep.subr.bf16.mxu0 %v2040
    %2324 = vmatpush1.bf16.msra.mxu0 %v2039
    %2325 = vmatprep.subr.bf16.mxu0 %v2042
    %2326 = vmatpush1.bf16.msra.mxu0 %v2041
    %2327 = vmatprep.subr.bf16.mxu0 %v2044
    %2328 = vmatpush1.bf16.msra.mxu0 %v2043
    %2329 = vmatprep.subr.bf16.mxu0 0
    %2330 = vmatpush1.bf16.msra.mxu0 0
    %2331 = vmatprep.subr.bf16.mxu0 0
    %2332 = vmatpush1.bf16.msra.mxu0 0
    %2333 = vmatprep.subr.bf16.mxu0 0
    %2334 = vmatpush1.bf16.msra.mxu0 0
    %2335 = vmatprep.subr.bf16.mxu0 0
    %2336 = vmatpush1.bf16.msra.mxu0 0
    %2337 = vmatprep.subr.bf16.mxu0 0
    %2338 = vmatpush1.bf16.msra.mxu0 0
    %2339 = vmatprep.subr.bf16.mxu0 0
    %2340 = vmatpush1.bf16.msra.mxu0 0
    %2341 = vmatprep.subr.bf16.mxu0 0
    %2342 = vmatpush1.bf16.msra.mxu0 0
    %2343 = vmatprep.subr.bf16.mxu0 0
    %2344 = vmatpush1.bf16.msra.mxu0 0
    %2345 = vmatprep.subr.bf16.mxu0 0
    %2346 = vmatpush1.bf16.msra.mxu0 0
    %2347 = vmatprep.subr.bf16.mxu0 0
    %2348 = vmatpush1.bf16.msra.mxu0 0
    %2349 = vmatprep.subr.bf16.mxu0 0
    %2350 = vmatpush1.bf16.msra.mxu0 0
    %2351 = vmatprep.subr.bf16.mxu0 0
    %2352 = vmatpush1.bf16.msra.mxu0 0
    %2353 = vmatprep.mubr.bf16.mxu0 0
    %2354 = vmatmul.mubr.bf16.gmra.mrb[0].mxu0 %v2319
    %v2355 = vpop.f32.mrb[0].mxu0
    %v2356 = vadd.f32 0.0, %v2355
    %v2357 = vpop.f32.mrb[0].mxu0
    %v2358 = vadd.f32 0.0, %v2357
    %v2359 = vpop.f32.mrb[0].mxu0
    %v2360 = vpop.f32.mrb[0].mxu0
    %2361 = vdwg.mxu0
    %v2362 = vadd.f32 %v2315, %v2356
    %v2363 = vadd.f32 %v2316, %v2358
    %v2364 = vtanh.pop %v2362
    %v2365 = vtanh.pop %v2363
    %v2366 = vxor.u32 %v2362, 2147483648
    %v2367 = vxor.u32 %v2363, 2147483648
    %v2368 = vmul.f32 %v2366, 1.442695
    %v2369 = vpow.pop %v2368
    %v2370 = vmul.f32 %v2367, 1.442695
    %v2371 = vpow.pop %v2370
    %v2372 = vadd.f32 %v2369, 1.0
    %v2373 = vadd.f32 %v2371, 1.0
    %v2374 = vrcp.pop %v2372
    %v2375 = vmul.f32 1.0, %v2374
    %v2376 = vrcp.pop %v2373
    %v2377 = vmul.f32 1.0, %v2376
    %v2378 = vsel %vm976, %v2364, %v2375
    %v2379 = vsel %vm977, %v2365, %v2377
    %2381 = vrot.lane.b32.xlu0 %v2311, 64
    %v2382 = vpop.permute.xlu0 %2381
    %v2384 = vmul.f32 %v2378, %v2382
    %v2385 = vmul.f32 %v2378, %v2379
    %2387 = vrot.lane.b32.xlu0 %v2385, 64
    %v2388 = vpop.permute.xlu0 %2387
    %v2390 = vadd.f32 %v2384, %v2388
    %v2391 = vtanh.pop %v2390
    %v2392 = vmul.f32 %v2379, %v2391
    %2394 = vrot.lane.b32.xlu0 %v2392, 64
    %v2395 = vpop.permute.xlu0 %2394
    %v2397 = vsel %vm1301, %v2395, %v2306
    %2399 = vrot.lane.b32.xlu0 %v2390, 64
    %v2400 = vpop.permute.xlu0 %2399
    %v2402 = vsel %vm1301, %v2400, %v2311
    %v2403 = vsel %vm1301, %v2395, 0.0
    %2404 = vst.msk [vmem:[#allocation3 + $0x18] sm:$0xff] %vm584, %v2403
    %2405 = vst.msk [vmem:[#allocation3 + $0x10] sm:$0xff] %vm1014, %v2403
    %v2406 = vadd.f32 %v1995, %v1985
    %v2407 = vadd.f32 %v1996, %v1986
    %v2408 = vpack.c.bf16 %v2397, %v2397
    %v2410 = vsel %vm169, %v2408, 0
    %2412 = vmatprep.subr.bf16.mxu0 %v2038
    %2413 = vmatpush1.bf16.msra.mxu0 %v2037
    %2414 = vmatprep.subr.bf16.mxu0 %v2040
    %2415 = vmatpush1.bf16.msra.mxu0 %v2039
    %2416 = vmatprep.subr.bf16.mxu0 %v2042
    %2417 = vmatpush1.bf16.msra.mxu0 %v2041
    %2418 = vmatprep.subr.bf16.mxu0 %v2044
    %2419 = vmatpush1.bf16.msra.mxu0 %v2043
    %2420 = vmatprep.subr.bf16.mxu0 0
    %2421 = vmatpush1.bf16.msra.mxu0 0
    %2422 = vmatprep.subr.bf16.mxu0 0
    %2423 = vmatpush1.bf16.msra.mxu0 0
    %2424 = vmatprep.subr.bf16.mxu0 0
    %2425 = vmatpush1.bf16.msra.mxu0 0
    %2426 = vmatprep.subr.bf16.mxu0 0
    %2427 = vmatpush1.bf16.msra.mxu0 0
    %2428 = vmatprep.subr.bf16.mxu0 0
    %2429 = vmatpush1.bf16.msra.mxu0 0
    %2430 = vmatprep.subr.bf16.mxu0 0
    %2431 = vmatpush1.bf16.msra.mxu0 0
    %2432 = vmatprep.subr.bf16.mxu0 0
    %2433 = vmatpush1.bf16.msra.mxu0 0
    %2434 = vmatprep.subr.bf16.mxu0 0
    %2435 = vmatpush1.bf16.msra.mxu0 0
    %2436 = vmatprep.subr.bf16.mxu0 0
    %2437 = vmatpush1.bf16.msra.mxu0 0
    %2438 = vmatprep.subr.bf16.mxu0 0
    %2439 = vmatpush1.bf16.msra.mxu0 0
    %2440 = vmatprep.subr.bf16.mxu0 0
    %2441 = vmatpush1.bf16.msra.mxu0 0
    %2442 = vmatprep.subr.bf16.mxu0 0
    %2443 = vmatpush1.bf16.msra.mxu0 0
    %2444 = vmatprep.mubr.bf16.mxu0 0
    %2445 = vmatmul.mubr.bf16.gmra.mrb[0].mxu0 %v2410
    %v2446 = vpop.f32.mrb[0].mxu0
    %v2447 = vadd.f32 0.0, %v2446
    %v2448 = vpop.f32.mrb[0].mxu0
    %v2449 = vadd.f32 0.0, %v2448
    %v2450 = vpop.f32.mrb[0].mxu0
    %v2451 = vpop.f32.mrb[0].mxu0
    %2452 = vdwg.mxu0
    %v2453 = vadd.f32 %v2406, %v2447
    %v2454 = vadd.f32 %v2407, %v2449
    %v2455 = vtanh.pop %v2453
    %v2456 = vtanh.pop %v2454
    %v2457 = vxor.u32 %v2453, 2147483648
    %v2458 = vxor.u32 %v2454, 2147483648
    %v2459 = vmul.f32 %v2457, 1.442695
    %v2460 = vpow.pop %v2459
    %v2461 = vmul.f32 %v2458, 1.442695
    %v2462 = vpow.pop %v2461
    %v2463 = vadd.f32 %v2460, 1.0
    %v2464 = vadd.f32 %v2462, 1.0
    %v2465 = vrcp.pop %v2463
    %v2466 = vmul.f32 1.0, %v2465
    %v2467 = vrcp.pop %v2464
    %v2468 = vmul.f32 1.0, %v2467
    %v2469 = vsel %vm976, %v2455, %v2466
    %v2470 = vsel %vm977, %v2456, %v2468
    %2472 = vrot.lane.b32.xlu0 %v2402, 64
    %v2473 = vpop.permute.xlu0 %2472
    %v2475 = vmul.f32 %v2469, %v2473
    %v2476 = vmul.f32 %v2469, %v2470
    %2478 = vrot.lane.b32.xlu0 %v2476, 64
    %v2479 = vpop.permute.xlu0 %2478
    %v2481 = vadd.f32 %v2475, %v2479
    %v2482 = vtanh.pop %v2481
    %v2483 = vmul.f32 %v2470, %v2482
    %2485 = vrot.lane.b32.xlu0 %v2483, 64
    %v2486 = vpop.permute.xlu0 %2485
    %v2488 = vsel %vm1394, %v2486, %v2397
    %2490 = vrot.lane.b32.xlu0 %v2481, 64
    %v2491 = vpop.permute.xlu0 %2490
    %v2493 = vsel %vm1394, %v2491, %v2402
    %v2494 = vsel %vm1394, %v2486, 0.0
    %2495 = vst.msk [vmem:[#allocation3 + $0x20] sm:$0xff] %vm584, %v2494
    %2496 = vst.msk [vmem:[#allocation3 + $0x8] sm:$0xff] %vm1014, %v2494
    %v2497 = vadd.f32 %v1999, %v1981
    %v2498 = vadd.f32 %v2000, %v1982
    %v2499 = vpack.c.bf16 %v2488, %v2488
    %v2501 = vsel %vm169, %v2499, 0
    %2503 = vmatprep.subr.bf16.mxu0 %v2038
    %2504 = vmatpush1.bf16.msra.mxu0 %v2037
    %2505 = vmatprep.subr.bf16.mxu0 %v2040
    %2506 = vmatpush1.bf16.msra.mxu0 %v2039
    %2507 = vmatprep.subr.bf16.mxu0 %v2042
    %2508 = vmatpush1.bf16.msra.mxu0 %v2041
    %2509 = vmatprep.subr.bf16.mxu0 %v2044
    %2510 = vmatpush1.bf16.msra.mxu0 %v2043
    %2511 = vmatprep.subr.bf16.mxu0 0
    %2512 = vmatpush1.bf16.msra.mxu0 0
    %2513 = vmatprep.subr.bf16.mxu0 0
    %2514 = vmatpush1.bf16.msra.mxu0 0
    %2515 = vmatprep.subr.bf16.mxu0 0
    %2516 = vmatpush1.bf16.msra.mxu0 0
    %2517 = vmatprep.subr.bf16.mxu0 0
    %2518 = vmatpush1.bf16.msra.mxu0 0
    %2519 = vmatprep.subr.bf16.mxu0 0
    %2520 = vmatpush1.bf16.msra.mxu0 0
    %2521 = vmatprep.subr.bf16.mxu0 0
    %2522 = vmatpush1.bf16.msra.mxu0 0
    %2523 = vmatprep.subr.bf16.mxu0 0
    %2524 = vmatpush1.bf16.msra.mxu0 0
    %2525 = vmatprep.subr.bf16.mxu0 0
    %2526 = vmatpush1.bf16.msra.mxu0 0
    %2527 = vmatprep.subr.bf16.mxu0 0
    %2528 = vmatpush1.bf16.msra.mxu0 0
    %2529 = vmatprep.subr.bf16.mxu0 0
    %2530 = vmatpush1.bf16.msra.mxu0 0
    %2531 = vmatprep.subr.bf16.mxu0 0
    %2532 = vmatpush1.bf16.msra.mxu0 0
    %2533 = vmatprep.subr.bf16.mxu0 0
    %2534 = vmatpush1.bf16.msra.mxu0 0
    %2535 = vmatprep.mubr.bf16.mxu0 0
    %2536 = vmatmul.mubr.bf16.gmra.mrb[0].mxu0 %v2501
    %v2537 = vpop.f32.mrb[0].mxu0
    %v2538 = vadd.f32 0.0, %v2537
    %v2539 = vpop.f32.mrb[0].mxu0
    %v2540 = vadd.f32 0.0, %v2539
    %v2541 = vpop.f32.mrb[0].mxu0
    %v2542 = vpop.f32.mrb[0].mxu0
    %2543 = vdwg.mxu0
    %v2544 = vadd.f32 %v2497, %v2538
    %v2545 = vadd.f32 %v2498, %v2540
    %v2546 = vtanh.pop %v2544
    %v2547 = vtanh.pop %v2545
    %v2548 = vxor.u32 %v2544, 2147483648
    %v2549 = vxor.u32 %v2545, 2147483648
    %v2550 = vmul.f32 %v2548, 1.442695
    %v2551 = vpow.pop %v2550
    %v2552 = vmul.f32 %v2549, 1.442695
    %v2553 = vpow.pop %v2552
    %v2554 = vadd.f32 %v2551, 1.0
    %v2555 = vadd.f32 %v2553, 1.0
    %v2556 = vrcp.pop %v2554
    %v2557 = vmul.f32 1.0, %v2556
    %v2558 = vrcp.pop %v2555
    %v2559 = vmul.f32 1.0, %v2558
    %v2560 = vsel %vm976, %v2546, %v2557
    %v2561 = vsel %vm977, %v2547, %v2559
    %2563 = vrot.lane.b32.xlu0 %v2493, 64
    %v2564 = vpop.permute.xlu0 %2563
    %v2566 = vmul.f32 %v2560, %v2564
    %v2567 = vmul.f32 %v2560, %v2561
    %2569 = vrot.lane.b32.xlu0 %v2567, 64
    %v2570 = vpop.permute.xlu0 %2569
    %v2572 = vadd.f32 %v2566, %v2570
    %v2573 = vtanh.pop %v2572
    %v2574 = vmul.f32 %v2561, %v2573
    %2576 = vrot.lane.b32.xlu0 %v2574, 64
    %v2577 = vpop.permute.xlu0 %2576
    %v2579 = vsel %vm1487, %v2577, 0.0
    %2580 = vst.msk [vmem:[#allocation3 + $0x28] sm:$0xff] %vm584, %v2579
    %2581 = vst.msk [vmem:[#allocation3] sm:$0xff] %vm1014, %v2579
    %v2582 = vld [vmem:[#allocation3] sm:$0xff]
    %v2583 = vld [vmem:[#allocation3 + $0x8] sm:$0xff]
    %v2584 = vld [vmem:[#allocation3 + $0x10] sm:$0xff]
    %v2585 = vld [vmem:[#allocation3 + $0x18] sm:$0xff]
    %v2586 = vld [vmem:[#allocation3 + $0x20] sm:$0xff]
    %v2587 = vld [vmem:[#allocation3 + $0x28] sm:$0xff]
    %v2588 = vpack.c.bf16 %v2583, %v2582
    %v2589 = vpack.c.bf16 %v2585, %v2584
    %v2590 = vpack.c.bf16 %v2587, %v2586
    %v2591 = vld [vmem:[%s14] sm:$0xf]
    %v2592 = vld [vmem:[%s14 + $0x4] sm:$0xf]
    %v2593 = vld [vmem:[%s14 + $0x8] sm:$0xf]
    %v2594 = vld [vmem:[%s14 + $0xc] sm:$0xf]
    %v2595 = vld [vmem:[%s14 + $0x10] sm:$0xf]
    %v2596 = vld [vmem:[%s14 + $0x14] sm:$0xf]
    %v2597 = vld [vmem:[%s14 + $0x18] sm:$0xf]
    %v2598 = vld [vmem:[%s14 + $0x1c] sm:$0xf]
    %v2599 = vld [vmem:[%s15] sm:$0x1]
    %v2601 = vlaneseq
    %v2602 = vshrl.u32 %v2601, 7
    %v2603 = vsub.s32 0, %v2602
    %v2604 = vrot.slane %v2599, %v2603
    %v2614 = vunpack.c.l.b16 %v2591
    %v2615 = vunpack.c.l.b16 %v2592
    %v2616 = vunpack.c.l.b16 %v2593
    %v2617 = vunpack.c.l.b16 %v2594
    %v2618 = vunpack.c.l.b16 %v2595
    %v2619 = vunpack.c.l.b16 %v2596
    %v2620 = vunpack.c.l.b16 %v2597
    %v2621 = vunpack.c.l.b16 %v2598
    %v2622 = vpack.c.b16 %v2615, %v2614
    %v2623 = vpack.c.b16 %v2617, %v2616
    %v2624 = vpack.c.b16 %v2619, %v2618
    %v2625 = vpack.c.b16 %v2621, %v2620
    %v2631 = vsel %vm169, %v2588, 0
    %v2634 = vsel %vm169, %v2589, 0
    %v2637 = vsel %vm169, %v2590, 0
    %2639 = vmatprep.subr.bf16.mxu0 0
    %2640 = vmatpush1.bf16.msra.mxu0 %v2622
    %2641 = vmatprep.subr.bf16.mxu0 0
    %2642 = vmatpush1.bf16.msra.mxu0 %v2623
    %2643 = vmatprep.subr.bf16.mxu0 0
    %2644 = vmatpush1.bf16.msra.mxu0 %v2624
    %2645 = vmatprep.subr.bf16.mxu0 0
    %2646 = vmatpush1.bf16.msra.mxu0 %v2625
    %2647 = vmatprep.subr.bf16.mxu0 0
    %2648 = vmatpush1.bf16.msra.mxu0 0
    %2649 = vmatprep.subr.bf16.mxu0 0
    %2650 = vmatpush1.bf16.msra.mxu0 0
    %2651 = vmatprep.subr.bf16.mxu0 0
    %2652 = vmatpush1.bf16.msra.mxu0 0
    %2653 = vmatprep.subr.bf16.mxu0 0
    %2654 = vmatpush1.bf16.msra.mxu0 0
    %2655 = vmatprep.subr.bf16.mxu0 0
    %2656 = vmatpush1.bf16.msra.mxu0 0
    %2657 = vmatprep.subr.bf16.mxu0 0
    %2658 = vmatpush1.bf16.msra.mxu0 0
    %2659 = vmatprep.subr.bf16.mxu0 0
    %2660 = vmatpush1.bf16.msra.mxu0 0
    %2661 = vmatprep.subr.bf16.mxu0 0
    %2662 = vmatpush1.bf16.msra.mxu0 0
    %2663 = vmatprep.subr.bf16.mxu0 0
    %2664 = vmatpush1.bf16.msra.mxu0 0
    %2665 = vmatprep.subr.bf16.mxu0 0
    %2666 = vmatpush1.bf16.msra.mxu0 0
    %2667 = vmatprep.subr.bf16.mxu0 0
    %2668 = vmatpush1.bf16.msra.mxu0 0
    %2669 = vmatprep.subr.bf16.mxu0 0
    %2670 = vmatpush1.bf16.msra.mxu0 0
    %2671 = vmatprep.mubr.bf16.mxu0 0
    %2672 = vmatmul.mubr.bf16.gmra.mrb[0].mxu0 %v2631
    %v2673 = vpop.f32.mrb[0].mxu0
    %v2674 = vadd.f32 %v2604, %v2673
    %v2675 = vpop.f32.mrb[0].mxu0
    %v2676 = vpop.f32.mrb[0].mxu0
    %v2677 = vadd.f32 %v2604, %v2676
    %v2678 = vpop.f32.mrb[0].mxu0
    %2679 = vmatprep.mubr.bf16.mxu0 0
    %2680 = vmatmul.mubr.bf16.gmra.mrb[0].mxu0 %v2634
    %v2681 = vpop.f32.mrb[0].mxu0
    %v2682 = vadd.f32 %v2604, %v2681
    %v2683 = vpop.f32.mrb[0].mxu0
    %v2684 = vpop.f32.mrb[0].mxu0
    %v2685 = vadd.f32 %v2604, %v2684
    %v2686 = vpop.f32.mrb[0].mxu0
    %2687 = vmatprep.mubr.bf16.mxu0 0
    %2688 = vmatmul.mubr.bf16.gmra.mrb[0].mxu0 %v2637
    %v2689 = vpop.f32.mrb[0].mxu0
    %v2690 = vadd.f32 %v2604, %v2689
    %v2691 = vpop.f32.mrb[0].mxu0
    %v2692 = vpop.f32.mrb[0].mxu0
    %v2693 = vadd.f32 %v2604, %v2692
    %v2694 = vpop.f32.mrb[0].mxu0
    %2695 = vdwg.mxu0
    %v2696 = vmax.f32 %v2674, 0.0
    %v2697 = vmax.f32 %v2677, 0.0
    %v2698 = vmax.f32 %v2682, 0.0
    %v2699 = vmax.f32 %v2685, 0.0
    %v2700 = vmax.f32 %v2690, 0.0
    %v2701 = vmax.f32 %v2693, 0.0
    %v2702 = vpack.c.bf16 %v2697, %v2696
    %v2703 = vpack.c.bf16 %v2699, %v2698
    %v2704 = vpack.c.bf16 %v2701, %v2700
    %v2705 = vld [vmem:[%s16] sm:$0xf]
    %v2706 = vld [vmem:[%s16 + $0x4] sm:$0xf]
    %v2707 = vld [vmem:[%s16 + $0x8] sm:$0xf]
    %v2708 = vld [vmem:[%s16 + $0xc] sm:$0xf]
    %v2709 = vld [vmem:[%s16 + $0x10] sm:$0xf]
    %v2710 = vld [vmem:[%s16 + $0x14] sm:$0xf]
    %v2711 = vld [vmem:[%s16 + $0x18] sm:$0xf]
    %v2712 = vld [vmem:[%s16 + $0x1c] sm:$0xf]
    %v2713 = vld [vmem:[%s17] sm:$0x1]
    %v2715 = vlaneseq
    %v2716 = vshrl.u32 %v2715, 7
    %v2717 = vsub.s32 0, %v2716
    %v2718 = vrot.slane %v2713, %v2717
    %v2728 = vunpack.c.l.b16 %v2705
    %v2729 = vunpack.c.l.b16 %v2706
    %v2730 = vunpack.c.l.b16 %v2707
    %v2731 = vunpack.c.l.b16 %v2708
    %v2732 = vunpack.c.l.b16 %v2709
    %v2733 = vunpack.c.l.b16 %v2710
    %v2734 = vunpack.c.l.b16 %v2711
    %v2735 = vunpack.c.l.b16 %v2712
    %v2736 = vpack.c.b16 %v2729, %v2728
    %v2737 = vpack.c.b16 %v2731, %v2730
    %v2738 = vpack.c.b16 %v2733, %v2732
    %v2739 = vpack.c.b16 %v2735, %v2734
    %v2745 = vsel %vm169, %v2702, 0
    %v2748 = vsel %vm169, %v2703, 0
    %v2751 = vsel %vm169, %v2704, 0
    %2753 = vmatprep.subr.bf16.mxu0 0
    %2754 = vmatpush1.bf16.msra.mxu0 %v2736
    %2755 = vmatprep.subr.bf16.mxu0 0
    %2756 = vmatpush1.bf16.msra.mxu0 %v2737
    %2757 = vmatprep.subr.bf16.mxu0 0
    %2758 = vmatpush1.bf16.msra.mxu0 %v2738
    %2759 = vmatprep.subr.bf16.mxu0 0
    %2760 = vmatpush1.bf16.msra.mxu0 %v2739
    %2761 = vmatprep.subr.bf16.mxu0 0
    %2762 = vmatpush1.bf16.msra.mxu0 0
    %2763 = vmatprep.subr.bf16.mxu0 0
    %2764 = vmatpush1.bf16.msra.mxu0 0
    %2765 = vmatprep.subr.bf16.mxu0 0
    %2766 = vmatpush1.bf16.msra.mxu0 0
    %2767 = vmatprep.subr.bf16.mxu0 0
    %2768 = vmatpush1.bf16.msra.mxu0 0
    %2769 = vmatprep.subr.bf16.mxu0 0
    %2770 = vmatpush1.bf16.msra.mxu0 0
    %2771 = vmatprep.subr.bf16.mxu0 0
    %2772 = vmatpush1.bf16.msra.mxu0 0
    %2773 = vmatprep.subr.bf16.mxu0 0
    %2774 = vmatpush1.bf16.msra.mxu0 0
    %2775 = vmatprep.subr.bf16.mxu0 0
    %2776 = vmatpush1.bf16.msra.mxu0 0
    %2777 = vmatprep.subr.bf16.mxu0 0
    %2778 = vmatpush1.bf16.msra.mxu0 0
    %2779 = vmatprep.subr.bf16.mxu0 0
    %2780 = vmatpush1.bf16.msra.mxu0 0
    %2781 = vmatprep.subr.bf16.mxu0 0
    %2782 = vmatpush1.bf16.msra.mxu0 0
    %2783 = vmatprep.subr.bf16.mxu0 0
    %2784 = vmatpush1.bf16.msra.mxu0 0
    %2785 = vmatprep.mubr.bf16.mxu0 0
    %2786 = vmatmul.mubr.bf16.gmra.mrb[0].mxu0 %v2745
    %v2787 = vpop.f32.mrb[0].mxu0
    %v2788 = vadd.f32 %v2718, %v2787
    %v2789 = vpop.f32.mrb[0].mxu0
    %v2790 = vpop.f32.mrb[0].mxu0
    %v2791 = vadd.f32 %v2718, %v2790
    %v2792 = vpop.f32.mrb[0].mxu0
    %2793 = vmatprep.mubr.bf16.mxu0 0
    %2794 = vmatmul.mubr.bf16.gmra.mrb[0].mxu0 %v2748
    %v2795 = vpop.f32.mrb[0].mxu0
    %v2796 = vadd.f32 %v2718, %v2795
    %v2797 = vpop.f32.mrb[0].mxu0
    %v2798 = vpop.f32.mrb[0].mxu0
    %v2799 = vadd.f32 %v2718, %v2798
    %v2800 = vpop.f32.mrb[0].mxu0
    %2801 = vmatprep.mubr.bf16.mxu0 0
    %2802 = vmatmul.mubr.bf16.gmra.mrb[0].mxu0 %v2751
    %v2803 = vpop.f32.mrb[0].mxu0
    %v2804 = vadd.f32 %v2718, %v2803
    %v2805 = vpop.f32.mrb[0].mxu0
    %v2806 = vpop.f32.mrb[0].mxu0
    %v2807 = vadd.f32 %v2718, %v2806
    %v2808 = vpop.f32.mrb[0].mxu0
    %2809 = vdwg.mxu0
    %v2810 = vmax.f32 %v2788, %v2804
    %v2811 = vmax.f32 %v2791, %v2807
    %v2812 = vmax.f32 %v2810, %v2811
    %v2813 = vmax.f32 %v2796, %v2799
    %v2814 = vmax.f32 %v2812, %v2813
    %v2815 = vrot.slane %v2814, 4
    %v2816 = vmax.f32 %v2814, %v2815
    %v2817 = vrot.slane %v2816, 2
    %v2818 = vmax.f32 %v2816, %v2817
    %v2819 = vrot.slane %v2818, 1
    %v2820 = vmax.f32 %v2818, %v2819
    %v2821 = vsub.f32 %v2788, %v2820
    %v2822 = vsub.f32 %v2791, %v2820
    %v2823 = vsub.f32 %v2796, %v2820
    %v2824 = vsub.f32 %v2799, %v2820
    %v2825 = vsub.f32 %v2804, %v2820
    %v2826 = vsub.f32 %v2807, %v2820
    %v2827 = vmul.f32 %v2821, 1.442695
    %v2828 = vpow.pop %v2827
    %v2829 = vmul.f32 %v2822, 1.442695
    %v2830 = vpow.pop %v2829
    %v2831 = vmul.f32 %v2823, 1.442695
    %v2832 = vpow.pop %v2831
    %v2833 = vmul.f32 %v2824, 1.442695
    %v2834 = vpow.pop %v2833
    %v2835 = vmul.f32 %v2825, 1.442695
    %v2836 = vpow.pop %v2835
    %v2837 = vmul.f32 %v2826, 1.442695
    %v2838 = vpow.pop %v2837
    %v2839 = vld [vmem:[%s3] sm:$0xff]
    %v2840 = vld [vmem:[%s3 + $0x8] sm:$0xff]
    %v2841 = vld [vmem:[%s3 + $0x10] sm:$0xff]
    %v2842 = vld [vmem:[%s3 + $0x18] sm:$0xff]
    %v2843 = vld [vmem:[%s3 + $0x20] sm:$0xff]
    %v2844 = vld [vmem:[%s3 + $0x28] sm:$0xff]
    %2846 = vset.pattern.permute.xlu0 0
    %2847 = vperm.xlu0 %2846, %v2839
    %v2848 = vpop.permute.xlu0 %2847
    %2851 = vset.pattern.permute.xlu0 0
    %2852 = vperm.xlu0 %2851, %v2840
    %v2853 = vpop.permute.xlu0 %2852
    %2856 = vset.pattern.permute.xlu0 0
    %2857 = vperm.xlu0 %2856, %v2841
    %v2858 = vpop.permute.xlu0 %2857
    %2861 = vset.pattern.permute.xlu0 0
    %2862 = vperm.xlu0 %2861, %v2842
    %v2863 = vpop.permute.xlu0 %2862
    %2866 = vset.pattern.permute.xlu0 0
    %2867 = vperm.xlu0 %2866, %v2843
    %v2868 = vpop.permute.xlu0 %2867
    %2871 = vset.pattern.permute.xlu0 0
    %2872 = vperm.xlu0 %2871, %v2844
    %v2873 = vpop.permute.xlu0 %2872
    %v2875 = vmul.f32 %v2828, %v2848
    %v2876 = vmul.f32 %v2830, %v2853
    %v2877 = vmul.f32 %v2832, %v2858
    %v2878 = vmul.f32 %v2834, %v2863
    %v2879 = vmul.f32 %v2836, %v2868
    %v2880 = vmul.f32 %v2838, %v2873
    %2887 = vrot.lane.b32.xlu0 %v2582, 64
    %v2888 = vpop.permute.xlu0 %2887
    %2889 = vrot.lane.b32.xlu0 %v2583, 64
    %v2890 = vpop.permute.xlu0 %2889
    %2891 = vrot.lane.b32.xlu0 %v2584, 64
    %v2892 = vpop.permute.xlu0 %2891
    %2893 = vrot.lane.b32.xlu0 %v2585, 64
    %v2894 = vpop.permute.xlu0 %2893
    %2895 = vrot.lane.b32.xlu0 %v2586, 64
    %v2896 = vpop.permute.xlu0 %2895
    %2897 = vrot.lane.b32.xlu0 %v2587, 64
    %v2898 = vpop.permute.xlu0 %2897
    %v2905 = vsel %vm169, %v2582, %v2888
    %v2906 = vsel %vm169, %v2583, %v2890
    %v2907 = vsel %vm169, %v2584, %v2892
    %v2908 = vsel %vm169, %v2585, %v2894
    %v2909 = vsel %vm169, %v2586, %v2896
    %v2910 = vsel %vm169, %v2587, %v2898
    %v2911 = vld [vmem:[%s4] sm:$0xf]
    %v2913 = vsel %vm591, %v2911, 0
    %2915 = vmatprep.subr.mxu0 0.0
    %2916 = vmatpush1.msra.mxu0 %v2875
    %2917 = vmatprep.subr.mxu0 0.0
    %2918 = vmatpush1.msra.mxu0 %v2876
    %2919 = vmatprep.subr.mxu0 0.0
    %2920 = vmatpush1.msra.mxu0 %v2877
    %2921 = vmatprep.subr.mxu0 0.0
    %2922 = vmatpush1.msra.mxu0 %v2878
    %2923 = vmatprep.subr.mxu0 0.0
    %2924 = vmatpush1.msra.mxu0 %v2879
    %2925 = vmatprep.subr.mxu0 0.0
    %2926 = vmatpush1.msra.mxu0 %v2880
    %2927 = vmatprep.subr.mxu0 0.0
    %2928 = vmatpush1.msra.mxu0 0.0
    %2929 = vmatprep.subr.mxu0 0.0
    %2930 = vmatpush1.msra.mxu0 0.0
    %2931 = vmatprep.subr.mxu0 0.0
    %2932 = vmatpush1.msra.mxu0 0.0
    %2933 = vmatprep.subr.mxu0 0.0
    %2934 = vmatpush1.msra.mxu0 0.0
    %2935 = vmatprep.subr.mxu0 0.0
    %2936 = vmatpush1.msra.mxu0 0.0
    %2937 = vmatprep.subr.mxu0 0.0
    %2938 = vmatpush1.msra.mxu0 0.0
    %2939 = vmatprep.subr.mxu0 0.0
    %2940 = vmatpush1.msra.mxu0 0.0
    %2941 = vmatprep.subr.mxu0 0.0
    %2942 = vmatpush1.msra.mxu0 0.0
    %2943 = vmatprep.subr.mxu0 0.0
    %2944 = vmatpush1.msra.mxu0 0.0
    %2945 = vmatprep.subr.mxu0 0.0
    %2946 = vmatpush1.msra.mxu0 0.0
    %2947 = vmatprep.subr.mxu0 0.0
    %2948 = vmatpush1.msra.mxu0 0.0
    %2949 = vmatprep.subr.mxu0 0.0
    %2950 = vmatpush1.msra.mxu0 0.0
    %2951 = vmatprep.subr.mxu0 0.0
    %2952 = vmatpush1.msra.mxu0 0.0
    %2953 = vmatprep.subr.mxu0 0.0
    %2954 = vmatpush1.msra.mxu0 0.0
    %2955 = vmatprep.subr.mxu0 0.0
    %2956 = vmatpush1.msra.mxu0 0.0
    %2957 = vmatprep.subr.mxu0 0.0
    %2958 = vmatpush1.msra.mxu0 0.0
    %2959 = vmatprep.subr.mxu0 0.0
    %2960 = vmatpush1.msra.mxu0 0.0
    %2961 = vmatprep.subr.mxu0 0.0
    %2962 = vmatpush1.msra.mxu0 0.0
    %2963 = vmatprep.subr.mxu0 0.0
    %2964 = vmatpush1.msra.mxu0 0.0
    %2965 = vmatprep.subr.mxu0 0.0
    %2966 = vmatpush1.msra.mxu0 0.0
    %2967 = vmatprep.subr.mxu0 0.0
    %2968 = vmatpush1.msra.mxu0 0.0
    %2969 = vmatprep.subr.mxu0 0.0
    %2970 = vmatpush1.msra.mxu0 0.0
    %2971 = vmatprep.subr.mxu0 0.0
    %2972 = vmatpush1.msra.mxu0 0.0
    %2973 = vmatprep.subr.mxu0 0.0
    %2974 = vmatpush1.msra.mxu0 0.0
    %2975 = vmatprep.subr.mxu0 0.0
    %2976 = vmatpush1.msra.mxu0 0.0
    %2977 = vmatprep.subr.mxu0 0.0
    %2978 = vmatpush1.msra.mxu0 0.0
    %2979 = vmatprep.mubr.f32.mxu0 0.0
    %2980 = vmatmul.mubr.f32.gmra.mrb[0].mxu0 %v2913
    %v2981 = vpop.f32.mrb[0].mxu0
    %v2982 = vadd.f32 0.0, %v2981
    %v2983 = vpop.f32.mrb[0].mxu0
    %2984 = vdwg.mxu0
    %v2985 = vmul.f32 %v2875, %v2905
    %v2986 = vmul.f32 %v2876, %v2906
    %v2987 = vmul.f32 %v2877, %v2907
    %v2988 = vmul.f32 %v2878, %v2908
    %v2989 = vmul.f32 %v2879, %v2909
    %v2990 = vmul.f32 %v2880, %v2910
    %2991 = vmatprep.subr.mxu0 0.0
    %2992 = vmatpush1.msra.mxu0 %v2985
    %2993 = vmatprep.subr.mxu0 0.0
    %2994 = vmatpush1.msra.mxu0 %v2986
    %2995 = vmatprep.subr.mxu0 0.0
    %2996 = vmatpush1.msra.mxu0 %v2987
    %2997 = vmatprep.subr.mxu0 0.0
    %2998 = vmatpush1.msra.mxu0 %v2988
    %2999 = vmatprep.subr.mxu0 0.0
    %3000 = vmatpush1.msra.mxu0 %v2989
    %3001 = vmatprep.subr.mxu0 0.0
    %3002 = vmatpush1.msra.mxu0 %v2990
    %3003 = vmatprep.subr.mxu0 0.0
    %3004 = vmatpush1.msra.mxu0 0.0
    %3005 = vmatprep.subr.mxu0 0.0
    %3006 = vmatpush1.msra.mxu0 0.0
    %3007 = vmatprep.subr.mxu0 0.0
    %3008 = vmatpush1.msra.mxu0 0.0
    %3009 = vmatprep.subr.mxu0 0.0
    %3010 = vmatpush1.msra.mxu0 0.0
    %3011 = vmatprep.subr.mxu0 0.0
    %3012 = vmatpush1.msra.mxu0 0.0
    %3013 = vmatprep.subr.mxu0 0.0
    %3014 = vmatpush1.msra.mxu0 0.0
    %3015 = vmatprep.subr.mxu0 0.0
    %3016 = vmatpush1.msra.mxu0 0.0
    %3017 = vmatprep.subr.mxu0 0.0
    %3018 = vmatpush1.msra.mxu0 0.0
    %3019 = vmatprep.subr.mxu0 0.0
    %3020 = vmatpush1.msra.mxu0 0.0
    %3021 = vmatprep.subr.mxu0 0.0
    %3022 = vmatpush1.msra.mxu0 0.0
    %3023 = vmatprep.subr.mxu0 0.0
    %3024 = vmatpush1.msra.mxu0 0.0
    %3025 = vmatprep.subr.mxu0 0.0
    %3026 = vmatpush1.msra.mxu0 0.0
    %3027 = vmatprep.subr.mxu0 0.0
    %3028 = vmatpush1.msra.mxu0 0.0
    %3029 = vmatprep.subr.mxu0 0.0
    %3030 = vmatpush1.msra.mxu0 0.0
    %3031 = vmatprep.subr.mxu0 0.0
    %3032 = vmatpush1.msra.mxu0 0.0
    %3033 = vmatprep.subr.mxu0 0.0
    %3034 = vmatpush1.msra.mxu0 0.0
    %3035 = vmatprep.subr.mxu0 0.0
    %3036 = vmatpush1.msra.mxu0 0.0
    %3037 = vmatprep.subr.mxu0 0.0
    %3038 = vmatpush1.msra.mxu0 0.0
    %3039 = vmatprep.subr.mxu0 0.0
    %3040 = vmatpush1.msra.mxu0 0.0
    %3041 = vmatprep.subr.mxu0 0.0
    %3042 = vmatpush1.msra.mxu0 0.0
    %3043 = vmatprep.subr.mxu0 0.0
    %3044 = vmatpush1.msra.mxu0 0.0
    %3045 = vmatprep.subr.mxu0 0.0
    %3046 = vmatpush1.msra.mxu0 0.0
    %3047 = vmatprep.subr.mxu0 0.0
    %3048 = vmatpush1.msra.mxu0 0.0
    %3049 = vmatprep.subr.mxu0 0.0
    %3050 = vmatpush1.msra.mxu0 0.0
    %3051 = vmatprep.subr.mxu0 0.0
    %3052 = vmatpush1.msra.mxu0 0.0
    %3053 = vmatprep.subr.mxu0 0.0
    %3054 = vmatpush1.msra.mxu0 0.0
    %3055 = vmatprep.mubr.f32.mxu0 0.0
    %3056 = vmatmul.mubr.f32.gmra.mrb[0].mxu0 %v2913
    %v3057 = vpop.f32.mrb[0].mxu0
    %v3058 = vadd.f32 0.0, %v3057
    %v3059 = vpop.f32.mrb[0].mxu0
    %3060 = vdwg.mxu0
    %v3061 = vrcp.pop %v2982
    %v3062 = vmul.f32 %v3058, %v3061
    %v3064 = vrot.slane %v3062, 2
    %v3066 = vsub.f32 %v3062, %v3064
    %v3067 = vand.u32 2147483647, %v3066
    %v3068 = vmul.f32 %v3062, %v3064
    %v3069 = vpack.c.bf16 %v3062, %v3062
    %v3070 = vpack.c.bf16 %v3064, %v3064
    %v3071 = vpack.c.bf16 %v3067, %v3067
    %v3072 = vpack.c.bf16 %v3068, %v3068
    %v3073 = vld [vmem:[%s18] sm:$0xf]
    %v3074 = vld [vmem:[%s18 + $0x4] sm:$0xf]
    %v3075 = vld [vmem:[%s18 + $0x8] sm:$0xf]
    %v3076 = vld [vmem:[%s18 + $0xc] sm:$0xf]
    %v3077 = vld [vmem:[%s18 + $0x10] sm:$0xf]
    %v3078 = vld [vmem:[%s18 + $0x14] sm:$0xf]
    %v3079 = vld [vmem:[%s18 + $0x18] sm:$0xf]
    %v3080 = vld [vmem:[%s18 + $0x1c] sm:$0xf]
    %v3081 = vld [vmem:[%s18 + $0x20] sm:$0xf]
    %v3082 = vld [vmem:[%s18 + $0x24] sm:$0xf]
    %v3083 = vld [vmem:[%s18 + $0x28] sm:$0xf]
    %v3084 = vld [vmem:[%s18 + $0x2c] sm:$0xf]
    %v3085 = vld [vmem:[%s18 + $0x30] sm:$0xf]
    %v3086 = vld [vmem:[%s18 + $0x34] sm:$0xf]
    %v3087 = vld [vmem:[%s18 + $0x38] sm:$0xf]
    %v3088 = vld [vmem:[%s18 + $0x3c] sm:$0xf]
    %v3089 = vld [vmem:[%s18 + $0x40] sm:$0xf]
    %v3090 = vld [vmem:[%s18 + $0x44] sm:$0xf]
    %v3091 = vld [vmem:[%s18 + $0x48] sm:$0xf]
    %v3092 = vld [vmem:[%s18 + $0x4c] sm:$0xf]
    %v3093 = vld [vmem:[%s18 + $0x50] sm:$0xf]
    %v3094 = vld [vmem:[%s18 + $0x54] sm:$0xf]
    %v3095 = vld [vmem:[%s18 + $0x58] sm:$0xf]
    %v3096 = vld [vmem:[%s18 + $0x5c] sm:$0xf]
    %v3097 = vld [vmem:[%s18 + $0x60] sm:$0xf]
    %v3098 = vld [vmem:[%s18 + $0x64] sm:$0xf]
    %v3099 = vld [vmem:[%s18 + $0x68] sm:$0xf]
    %v3100 = vld [vmem:[%s18 + $0x6c] sm:$0xf]
    %v3101 = vld [vmem:[%s18 + $0x70] sm:$0xf]
    %v3102 = vld [vmem:[%s18 + $0x74] sm:$0xf]
    %v3103 = vld [vmem:[%s18 + $0x78] sm:$0xf]
    %v3104 = vld [vmem:[%s18 + $0x7c] sm:$0xf]
    %v3105 = vld [vmem:[%s18 + $0x80] sm:$0xf]
    %v3106 = vld [vmem:[%s18 + $0x84] sm:$0xf]
    %v3107 = vld [vmem:[%s18 + $0x88] sm:$0xf]
    %v3108 = vld [vmem:[%s18 + $0x8c] sm:$0xf]
    %v3109 = vld [vmem:[%s18 + $0x90] sm:$0xf]
    %v3110 = vld [vmem:[%s18 + $0x94] sm:$0xf]
    %v3111 = vld [vmem:[%s18 + $0x98] sm:$0xf]
    %v3112 = vld [vmem:[%s18 + $0x9c] sm:$0xf]
    %v3113 = vld [vmem:[%s18 + $0xa0] sm:$0xf]
    %v3114 = vld [vmem:[%s18 + $0xa4] sm:$0xf]
    %v3115 = vld [vmem:[%s18 + $0xa8] sm:$0xf]
    %v3116 = vld [vmem:[%s18 + $0xac] sm:$0xf]
    %v3117 = vld [vmem:[%s18 + $0xb0] sm:$0xf]
    %v3118 = vld [vmem:[%s18 + $0xb4] sm:$0xf]
    %v3119 = vld [vmem:[%s18 + $0xb8] sm:$0xf]
    %v3120 = vld [vmem:[%s18 + $0xbc] sm:$0xf]
    %v3121 = vld [vmem:[%s18 + $0xc0] sm:$0xf]
    %v3122 = vld [vmem:[%s18 + $0xc4] sm:$0xf]
    %v3123 = vld [vmem:[%s18 + $0xc8] sm:$0xf]
    %v3124 = vld [vmem:[%s18 + $0xcc] sm:$0xf]
    %v3125 = vld [vmem:[%s18 + $0xd0] sm:$0xf]
    %v3126 = vld [vmem:[%s18 + $0xd4] sm:$0xf]
    %v3127 = vld [vmem:[%s18 + $0xd8] sm:$0xf]
    %v3128 = vld [vmem:[%s18 + $0xdc] sm:$0xf]
    %v3129 = vld [vmem:[%s18 + $0xe0] sm:$0xf]
    %v3130 = vld [vmem:[%s18 + $0xe4] sm:$0xf]
    %v3131 = vld [vmem:[%s18 + $0xe8] sm:$0xf]
    %v3132 = vld [vmem:[%s18 + $0xec] sm:$0xf]
    %v3133 = vld [vmem:[%s18 + $0xf0] sm:$0xf]
    %v3134 = vld [vmem:[%s18 + $0xf4] sm:$0xf]
    %v3135 = vld [vmem:[%s18 + $0xf8] sm:$0xf]
    %v3136 = vld [vmem:[%s18 + $0xfc] sm:$0xf]
    %v3137 = vld [vmem:[%s19] sm:$0x1]
    %v3139 = vlaneseq
    %v3140 = vshrl.u32 %v3139, 7
    %v3141 = vsub.s32 0, %v3140
    %v3142 = vrot.slane %v3137, %v3141
    %v3208 = vunpack.c.l.b16 %v3073
    %v3209 = vunpack.c.l.b16 %v3074
    %v3210 = vunpack.c.l.b16 %v3075
    %v3211 = vunpack.c.l.b16 %v3076
    %v3212 = vunpack.c.l.b16 %v3077
    %v3213 = vunpack.c.l.b16 %v3078
    %v3214 = vunpack.c.l.b16 %v3079
    %v3215 = vunpack.c.l.b16 %v3080
    %v3216 = vunpack.c.l.b16 %v3081
    %v3217 = vunpack.c.l.b16 %v3082
    %v3218 = vunpack.c.l.b16 %v3083
    %v3219 = vunpack.c.l.b16 %v3084
    %v3220 = vunpack.c.l.b16 %v3085
    %v3221 = vunpack.c.l.b16 %v3086
    %v3222 = vunpack.c.l.b16 %v3087
    %v3223 = vunpack.c.l.b16 %v3088
    %v3224 = vunpack.c.l.b16 %v3089
    %v3225 = vunpack.c.l.b16 %v3090
    %v3226 = vunpack.c.l.b16 %v3091
    %v3227 = vunpack.c.l.b16 %v3092
    %v3228 = vunpack.c.l.b16 %v3093
    %v3229 = vunpack.c.l.b16 %v3094
    %v3230 = vunpack.c.l.b16 %v3095
    %v3231 = vunpack.c.l.b16 %v3096
    %v3232 = vunpack.c.l.b16 %v3097
    %v3233 = vunpack.c.l.b16 %v3098
    %v3234 = vunpack.c.l.b16 %v3099
    %v3235 = vunpack.c.l.b16 %v3100
    %v3236 = vunpack.c.l.b16 %v3101
    %v3237 = vunpack.c.l.b16 %v3102
    %v3238 = vunpack.c.l.b16 %v3103
    %v3239 = vunpack.c.l.b16 %v3104
    %v3240 = vunpack.c.l.b16 %v3105
    %v3241 = vunpack.c.l.b16 %v3106
    %v3242 = vunpack.c.l.b16 %v3107
    %v3243 = vunpack.c.l.b16 %v3108
    %v3244 = vunpack.c.l.b16 %v3109
    %v3245 = vunpack.c.l.b16 %v3110
    %v3246 = vunpack.c.l.b16 %v3111
    %v3247 = vunpack.c.l.b16 %v3112
    %v3248 = vunpack.c.l.b16 %v3113
    %v3249 = vunpack.c.l.b16 %v3114
    %v3250 = vunpack.c.l.b16 %v3115
    %v3251 = vunpack.c.l.b16 %v3116
    %v3252 = vunpack.c.l.b16 %v3117
    %v3253 = vunpack.c.l.b16 %v3118
    %v3254 = vunpack.c.l.b16 %v3119
    %v3255 = vunpack.c.l.b16 %v3120
    %v3256 = vunpack.c.l.b16 %v3121
    %v3257 = vunpack.c.l.b16 %v3122
    %v3258 = vunpack.c.l.b16 %v3123
    %v3259 = vunpack.c.l.b16 %v3124
    %v3260 = vunpack.c.l.b16 %v3125
    %v3261 = vunpack.c.l.b16 %v3126
    %v3262 = vunpack.c.l.b16 %v3127
    %v3263 = vunpack.c.l.b16 %v3128
    %v3264 = vunpack.c.l.b16 %v3129
    %v3265 = vunpack.c.l.b16 %v3130
    %v3266 = vunpack.c.l.b16 %v3131
    %v3267 = vunpack.c.l.b16 %v3132
    %v3268 = vunpack.c.l.b16 %v3133
    %v3269 = vunpack.c.l.b16 %v3134
    %v3270 = vunpack.c.l.b16 %v3135
    %v3271 = vunpack.c.l.b16 %v3136
    %v3272 = vpack.c.b16 %v3209, %v3208
    %v3273 = vpack.c.b16 %v3211, %v3210
    %v3274 = vpack.c.b16 %v3213, %v3212
    %v3275 = vpack.c.b16 %v3215, %v3214
    %v3276 = vpack.c.b16 %v3217, %v3216
    %v3277 = vpack.c.b16 %v3219, %v3218
    %v3278 = vpack.c.b16 %v3221, %v3220
    %v3279 = vpack.c.b16 %v3223, %v3222
    %v3280 = vpack.c.b16 %v3225, %v3224
    %v3281 = vpack.c.b16 %v3227, %v3226
    %v3282 = vpack.c.b16 %v3229, %v3228
    %v3283 = vpack.c.b16 %v3231, %v3230
    %v3284 = vpack.c.b16 %v3233, %v3232
    %v3285 = vpack.c.b16 %v3235, %v3234
    %v3286 = vpack.c.b16 %v3237, %v3236
    %v3287 = vpack.c.b16 %v3239, %v3238
    %v3288 = vpack.c.b16 %v3241, %v3240
    %v3289 = vpack.c.b16 %v3243, %v3242
    %v3290 = vpack.c.b16 %v3245, %v3244
    %v3291 = vpack.c.b16 %v3247, %v3246
    %v3292 = vpack.c.b16 %v3249, %v3248
    %v3293 = vpack.c.b16 %v3251, %v3250
    %v3294 = vpack.c.b16 %v3253, %v3252
    %v3295 = vpack.c.b16 %v3255, %v3254
    %v3296 = vpack.c.b16 %v3257, %v3256
    %v3297 = vpack.c.b16 %v3259, %v3258
    %v3298 = vpack.c.b16 %v3261, %v3260
    %v3299 = vpack.c.b16 %v3263, %v3262
    %v3300 = vpack.c.b16 %v3265, %v3264
    %v3301 = vpack.c.b16 %v3267, %v3266
    %v3302 = vpack.c.b16 %v3269, %v3268
    %v3303 = vpack.c.b16 %v3271, %v3270
    %3336 = vmatprep.subr.bf16.mxu0 0
    %3337 = vmatpush1.bf16.msra.mxu0 %v3272
    %3338 = vmatprep.subr.bf16.mxu0 0
    %3339 = vmatpush1.bf16.msra.mxu0 %v3273
    %3340 = vmatprep.subr.bf16.mxu0 0
    %3341 = vmatpush1.bf16.msra.mxu0 %v3274
    %3342 = vmatprep.subr.bf16.mxu0 0
    %3343 = vmatpush1.bf16.msra.mxu0 %v3275
    %3344 = vmatprep.subr.bf16.mxu0 0
    %3345 = vmatpush1.bf16.msra.mxu0 %v3276
    %3346 = vmatprep.subr.bf16.mxu0 0
    %3347 = vmatpush1.bf16.msra.mxu0 %v3277
    %3348 = vmatprep.subr.bf16.mxu0 0
    %3349 = vmatpush1.bf16.msra.mxu0 %v3278
    %3350 = vmatprep.subr.bf16.mxu0 0
    %3351 = vmatpush1.bf16.msra.mxu0 %v3279
    %3352 = vmatprep.subr.bf16.mxu0 0
    %3353 = vmatpush1.bf16.msra.mxu0 %v3280
    %3354 = vmatprep.subr.bf16.mxu0 0
    %3355 = vmatpush1.bf16.msra.mxu0 %v3281
    %3356 = vmatprep.subr.bf16.mxu0 0
    %3357 = vmatpush1.bf16.msra.mxu0 %v3282
    %3358 = vmatprep.subr.bf16.mxu0 0
    %3359 = vmatpush1.bf16.msra.mxu0 %v3283
    %3360 = vmatprep.subr.bf16.mxu0 0
    %3361 = vmatpush1.bf16.msra.mxu0 %v3284
    %3362 = vmatprep.subr.bf16.mxu0 0
    %3363 = vmatpush1.bf16.msra.mxu0 %v3285
    %3364 = vmatprep.subr.bf16.mxu0 0
    %3365 = vmatpush1.bf16.msra.mxu0 %v3286
    %3366 = vmatprep.subr.bf16.mxu0 0
    %3367 = vmatpush1.bf16.msra.mxu0 %v3287
    %3368 = vmatprep.mubr.bf16.mxu0 %v3070
    %3369 = vmatmul.mubr.bf16.gmra.mrb[0].mxu0 %v3069
    %v3370 = vpop.f32.mrb[0].mxu0
    %v3371 = vadd.f32 %v3142, %v3370
    %v3372 = vpop.f32.mrb[0].mxu0
    %v3373 = vpop.f32.mrb[0].mxu0
    %v3374 = vpop.f32.mrb[0].mxu0
    %3375 = vdwg.mxu0
    %3376 = vmatprep.subr.bf16.mxu0 0
    %3377 = vmatpush1.bf16.msra.mxu0 %v3288
    %3378 = vmatprep.subr.bf16.mxu0 0
    %3379 = vmatpush1.bf16.msra.mxu0 %v3289
    %3380 = vmatprep.subr.bf16.mxu0 0
    %3381 = vmatpush1.bf16.msra.mxu0 %v3290
    %3382 = vmatprep.subr.bf16.mxu0 0
    %3383 = vmatpush1.bf16.msra.mxu0 %v3291
    %3384 = vmatprep.subr.bf16.mxu0 0
    %3385 = vmatpush1.bf16.msra.mxu0 %v3292
    %3386 = vmatprep.subr.bf16.mxu0 0
    %3387 = vmatpush1.bf16.msra.mxu0 %v3293
    %3388 = vmatprep.subr.bf16.mxu0 0
    %3389 = vmatpush1.bf16.msra.mxu0 %v3294
    %3390 = vmatprep.subr.bf16.mxu0 0
    %3391 = vmatpush1.bf16.msra.mxu0 %v3295
    %3392 = vmatprep.subr.bf16.mxu0 0
    %3393 = vmatpush1.bf16.msra.mxu0 %v3296
    %3394 = vmatprep.subr.bf16.mxu0 0
    %3395 = vmatpush1.bf16.msra.mxu0 %v3297
    %3396 = vmatprep.subr.bf16.mxu0 0
    %3397 = vmatpush1.bf16.msra.mxu0 %v3298
    %3398 = vmatprep.subr.bf16.mxu0 0
    %3399 = vmatpush1.bf16.msra.mxu0 %v3299
    %3400 = vmatprep.subr.bf16.mxu0 0
    %3401 = vmatpush1.bf16.msra.mxu0 %v3300
    %3402 = vmatprep.subr.bf16.mxu0 0
    %3403 = vmatpush1.bf16.msra.mxu0 %v3301
    %3404 = vmatprep.subr.bf16.mxu0 0
    %3405 = vmatpush1.bf16.msra.mxu0 %v3302
    %3406 = vmatprep.subr.bf16.mxu0 0
    %3407 = vmatpush1.bf16.msra.mxu0 %v3303
    %3408 = vmatprep.mubr.bf16.mxu0 %v3072
    %3409 = vmatmul.mubr.bf16.gmra.mrb[0].mxu0 %v3071
    %v3410 = vpop.f32.mrb[0].mxu0
    %v3411 = vadd.f32 %v3371, %v3410
    %v3412 = vpop.f32.mrb[0].mxu0
    %v3413 = vpop.f32.mrb[0].mxu0
    %v3414 = vpop.f32.mrb[0].mxu0
    %3415 = vdwg.mxu0
    %v3416 = vmax.f32 %v3411, 0.0
    %v3417 = vld [vmem:[%s20] sm:$0xf]
    %v3418 = vld [vmem:[%s20 + $0x4] sm:$0xf]
    %v3419 = vld [vmem:[%s20 + $0x8] sm:$0xf]
    %v3420 = vld [vmem:[%s20 + $0xc] sm:$0xf]
    %v3421 = vld [vmem:[%s20 + $0x10] sm:$0xf]
    %v3422 = vld [vmem:[%s20 + $0x14] sm:$0xf]
    %v3423 = vld [vmem:[%s20 + $0x18] sm:$0xf]
    %v3424 = vld [vmem:[%s20 + $0x1c] sm:$0xf]
    %v3425 = vld [vmem:[%s20 + $0x20] sm:$0xf]
    %v3426 = vld [vmem:[%s20 + $0x24] sm:$0xf]
    %v3427 = vld [vmem:[%s20 + $0x28] sm:$0xf]
    %v3428 = vld [vmem:[%s20 + $0x2c] sm:$0xf]
    %v3429 = vld [vmem:[%s20 + $0x30] sm:$0xf]
    %v3430 = vld [vmem:[%s20 + $0x34] sm:$0xf]
    %v3431 = vld [vmem:[%s20 + $0x38] sm:$0xf]
    %v3432 = vld [vmem:[%s20 + $0x3c] sm:$0xf]
    %v3433 = vld [vmem:[%s20 + $0x40] sm:$0xf]
    %v3434 = vld [vmem:[%s20 + $0x44] sm:$0xf]
    %v3435 = vld [vmem:[%s20 + $0x48] sm:$0xf]
    %v3436 = vld [vmem:[%s20 + $0x4c] sm:$0xf]
    %v3437 = vld [vmem:[%s20 + $0x50] sm:$0xf]
    %v3438 = vld [vmem:[%s20 + $0x54] sm:$0xf]
    %v3439 = vld [vmem:[%s20 + $0x58] sm:$0xf]
    %v3440 = vld [vmem:[%s20 + $0x5c] sm:$0xf]
    %v3441 = vld [vmem:[%s20 + $0x60] sm:$0xf]
    %v3442 = vld [vmem:[%s20 + $0x64] sm:$0xf]
    %v3443 = vld [vmem:[%s20 + $0x68] sm:$0xf]
    %v3444 = vld [vmem:[%s20 + $0x6c] sm:$0xf]
    %v3445 = vld [vmem:[%s20 + $0x70] sm:$0xf]
    %v3446 = vld [vmem:[%s20 + $0x74] sm:$0xf]
    %v3447 = vld [vmem:[%s20 + $0x78] sm:$0xf]
    %v3448 = vld [vmem:[%s20 + $0x7c] sm:$0xf]
    %v3449 = vld [vmem:[%s20 + $0x80] sm:$0xf]
    %v3450 = vld [vmem:[%s20 + $0x84] sm:$0xf]
    %v3451 = vld [vmem:[%s20 + $0x88] sm:$0xf]
    %v3452 = vld [vmem:[%s20 + $0x8c] sm:$0xf]
    %v3453 = vld [vmem:[%s20 + $0x90] sm:$0xf]
    %v3454 = vld [vmem:[%s20 + $0x94] sm:$0xf]
    %v3455 = vld [vmem:[%s20 + $0x98] sm:$0xf]
    %v3456 = vld [vmem:[%s20 + $0x9c] sm:$0xf]
    %v3457 = vld [vmem:[%s20 + $0xa0] sm:$0xf]
    %v3458 = vld [vmem:[%s20 + $0xa4] sm:$0xf]
    %v3459 = vld [vmem:[%s20 + $0xa8] sm:$0xf]
    %v3460 = vld [vmem:[%s20 + $0xac] sm:$0xf]
    %v3461 = vld [vmem:[%s20 + $0xb0] sm:$0xf]
    %v3462 = vld [vmem:[%s20 + $0xb4] sm:$0xf]
    %v3463 = vld [vmem:[%s20 + $0xb8] sm:$0xf]
    %v3464 = vld [vmem:[%s20 + $0xbc] sm:$0xf]
    %v3465 = vld [vmem:[%s20 + $0xc0] sm:$0xf]
    %v3466 = vld [vmem:[%s20 + $0xc4] sm:$0xf]
    %v3467 = vld [vmem:[%s20 + $0xc8] sm:$0xf]
    %v3468 = vld [vmem:[%s20 + $0xcc] sm:$0xf]
    %v3469 = vld [vmem:[%s20 + $0xd0] sm:$0xf]
    %v3470 = vld [vmem:[%s20 + $0xd4] sm:$0xf]
    %v3471 = vld [vmem:[%s20 + $0xd8] sm:$0xf]
    %v3472 = vld [vmem:[%s20 + $0xdc] sm:$0xf]
    %v3473 = vld [vmem:[%s20 + $0xe0] sm:$0xf]
    %v3474 = vld [vmem:[%s20 + $0xe4] sm:$0xf]
    %v3475 = vld [vmem:[%s20 + $0xe8] sm:$0xf]
    %v3476 = vld [vmem:[%s20 + $0xec] sm:$0xf]
    %v3477 = vld [vmem:[%s20 + $0xf0] sm:$0xf]
    %v3478 = vld [vmem:[%s20 + $0xf4] sm:$0xf]
    %v3479 = vld [vmem:[%s20 + $0xf8] sm:$0xf]
    %v3480 = vld [vmem:[%s20 + $0xfc] sm:$0xf]
    %v3481 = vpack.c.bf16 %v3416, %v3416
    %v3482 = vld [vmem:[%s21] sm:$0xf]
    %v3483 = vld [vmem:[%s21 + $0x4] sm:$0xf]
    %v3484 = vld [vmem:[%s21 + $0x8] sm:$0xf]
    %v3485 = vld [vmem:[%s21 + $0xc] sm:$0xf]
    %v3490 = vunpack.c.l.b16 %v3482
    %v3491 = vunpack.c.l.b16 %v3483
    %v3492 = vunpack.c.l.b16 %v3484
    %v3493 = vunpack.c.l.b16 %v3485
    %v3494 = vpack.c.b16 %v3491, %v3490
    %v3495 = vpack.c.b16 %v3493, %v3492
    %v3499 = vsel %vm584, %v3481, 0
    %3501 = vmatprep.subr.bf16.mxu0 0
    %3502 = vmatpush1.bf16.msra.mxu0 %v3494
    %3503 = vmatprep.subr.bf16.mxu0 0
    %3504 = vmatpush1.bf16.msra.mxu0 %v3495
    %3505 = vmatprep.subr.bf16.mxu0 0
    %3506 = vmatpush1.bf16.msra.mxu0 0
    %3507 = vmatprep.subr.bf16.mxu0 0
    %3508 = vmatpush1.bf16.msra.mxu0 0
    %3509 = vmatprep.subr.bf16.mxu0 0
    %3510 = vmatpush1.bf16.msra.mxu0 0
    %3511 = vmatprep.subr.bf16.mxu0 0
    %3512 = vmatpush1.bf16.msra.mxu0 0
    %3513 = vmatprep.subr.bf16.mxu0 0
    %3514 = vmatpush1.bf16.msra.mxu0 0
    %3515 = vmatprep.subr.bf16.mxu0 0
    %3516 = vmatpush1.bf16.msra.mxu0 0
    %3517 = vmatprep.subr.bf16.mxu0 0
    %3518 = vmatpush1.bf16.msra.mxu0 0
    %3519 = vmatprep.subr.bf16.mxu0 0
    %3520 = vmatpush1.bf16.msra.mxu0 0
    %3521 = vmatprep.subr.bf16.mxu0 0
    %3522 = vmatpush1.bf16.msra.mxu0 0
    %3523 = vmatprep.subr.bf16.mxu0 0
    %3524 = vmatpush1.bf16.msra.mxu0 0
    %3525 = vmatprep.subr.bf16.mxu0 0
    %3526 = vmatpush1.bf16.msra.mxu0 0
    %3527 = vmatprep.subr.bf16.mxu0 0
    %3528 = vmatpush1.bf16.msra.mxu0 0
    %3529 = vmatprep.subr.bf16.mxu0 0
    %3530 = vmatpush1.bf16.msra.mxu0 0
    %3531 = vmatprep.subr.bf16.mxu0 0
    %3532 = vmatpush1.bf16.msra.mxu0 0
    %3533 = vmatprep.mubr.bf16.mxu0 0
    %3534 = vmatmul.mubr.bf16.gmra.mrb[0].mxu0 %v3499
    %v3535 = vpop.f32.mrb[0].mxu0
    %v3536 = vadd.f32 0.0, %v3535
    %v3537 = vpop.f32.mrb[0].mxu0
    %v3538 = vpop.f32.mrb[0].mxu0
    %v3539 = vpop.f32.mrb[0].mxu0
    %3540 = vdwg.mxu0
    %v3605 = vunpack.c.l.b16 %v3417
    %v3606 = vunpack.c.l.b16 %v3418
    %v3607 = vunpack.c.l.b16 %v3419
    %v3608 = vunpack.c.l.b16 %v3420
    %v3609 = vunpack.c.l.b16 %v3421
    %v3610 = vunpack.c.l.b16 %v3422
    %v3611 = vunpack.c.l.b16 %v3423
    %v3612 = vunpack.c.l.b16 %v3424
    %v3613 = vunpack.c.l.b16 %v3425
    %v3614 = vunpack.c.l.b16 %v3426
    %v3615 = vunpack.c.l.b16 %v3427
    %v3616 = vunpack.c.l.b16 %v3428
    %v3617 = vunpack.c.l.b16 %v3429
    %v3618 = vunpack.c.l.b16 %v3430
    %v3619 = vunpack.c.l.b16 %v3431
    %v3620 = vunpack.c.l.b16 %v3432
    %v3621 = vunpack.c.l.b16 %v3433
    %v3622 = vunpack.c.l.b16 %v3434
    %v3623 = vunpack.c.l.b16 %v3435
    %v3624 = vunpack.c.l.b16 %v3436
    %v3625 = vunpack.c.l.b16 %v3437
    %v3626 = vunpack.c.l.b16 %v3438
    %v3627 = vunpack.c.l.b16 %v3439
    %v3628 = vunpack.c.l.b16 %v3440
    %v3629 = vunpack.c.l.b16 %v3441
    %v3630 = vunpack.c.l.b16 %v3442
    %v3631 = vunpack.c.l.b16 %v3443
    %v3632 = vunpack.c.l.b16 %v3444
    %v3633 = vunpack.c.l.b16 %v3445
    %v3634 = vunpack.c.l.b16 %v3446
    %v3635 = vunpack.c.l.b16 %v3447
    %v3636 = vunpack.c.l.b16 %v3448
    %v3637 = vunpack.c.l.b16 %v3449
    %v3638 = vunpack.c.l.b16 %v3450
    %v3639 = vunpack.c.l.b16 %v3451
    %v3640 = vunpack.c.l.b16 %v3452
    %v3641 = vunpack.c.l.b16 %v3453
    %v3642 = vunpack.c.l.b16 %v3454
    %v3643 = vunpack.c.l.b16 %v3455
    %v3644 = vunpack.c.l.b16 %v3456
    %v3645 = vunpack.c.l.b16 %v3457
    %v3646 = vunpack.c.l.b16 %v3458
    %v3647 = vunpack.c.l.b16 %v3459
    %v3648 = vunpack.c.l.b16 %v3460
    %v3649 = vunpack.c.l.b16 %v3461
    %v3650 = vunpack.c.l.b16 %v3462
    %v3651 = vunpack.c.l.b16 %v3463
    %v3652 = vunpack.c.l.b16 %v3464
    %v3653 = vunpack.c.l.b16 %v3465
    %v3654 = vunpack.c.l.b16 %v3466
    %v3655 = vunpack.c.l.b16 %v3467
    %v3656 = vunpack.c.l.b16 %v3468
    %v3657 = vunpack.c.l.b16 %v3469
    %v3658 = vunpack.c.l.b16 %v3470
    %v3659 = vunpack.c.l.b16 %v3471
    %v3660 = vunpack.c.l.b16 %v3472
    %v3661 = vunpack.c.l.b16 %v3473
    %v3662 = vunpack.c.l.b16 %v3474
    %v3663 = vunpack.c.l.b16 %v3475
    %v3664 = vunpack.c.l.b16 %v3476
    %v3665 = vunpack.c.l.b16 %v3477
    %v3666 = vunpack.c.l.b16 %v3478
    %v3667 = vunpack.c.l.b16 %v3479
    %v3668 = vunpack.c.l.b16 %v3480
    %v3669 = vpack.c.b16 %v3606, %v3605
    %v3670 = vpack.c.b16 %v3608, %v3607
    %v3671 = vpack.c.b16 %v3610, %v3609
    %v3672 = vpack.c.b16 %v3612, %v3611
    %v3673 = vpack.c.b16 %v3614, %v3613
    %v3674 = vpack.c.b16 %v3616, %v3615
    %v3675 = vpack.c.b16 %v3618, %v3617
    %v3676 = vpack.c.b16 %v3620, %v3619
    %v3677 = vpack.c.b16 %v3622, %v3621
    %v3678 = vpack.c.b16 %v3624, %v3623
    %v3679 = vpack.c.b16 %v3626, %v3625
    %v3680 = vpack.c.b16 %v3628, %v3627
    %v3681 = vpack.c.b16 %v3630, %v3629
    %v3682 = vpack.c.b16 %v3632, %v3631
    %v3683 = vpack.c.b16 %v3634, %v3633
    %v3684 = vpack.c.b16 %v3636, %v3635
    %v3685 = vpack.c.b16 %v3638, %v3637
    %v3686 = vpack.c.b16 %v3640, %v3639
    %v3687 = vpack.c.b16 %v3642, %v3641
    %v3688 = vpack.c.b16 %v3644, %v3643
    %v3689 = vpack.c.b16 %v3646, %v3645
    %v3690 = vpack.c.b16 %v3648, %v3647
    %v3691 = vpack.c.b16 %v3650, %v3649
    %v3692 = vpack.c.b16 %v3652, %v3651
    %v3693 = vpack.c.b16 %v3654, %v3653
    %v3694 = vpack.c.b16 %v3656, %v3655
    %v3695 = vpack.c.b16 %v3658, %v3657
    %v3696 = vpack.c.b16 %v3660, %v3659
    %v3697 = vpack.c.b16 %v3662, %v3661
    %v3698 = vpack.c.b16 %v3664, %v3663
    %v3699 = vpack.c.b16 %v3666, %v3665
    %v3700 = vpack.c.b16 %v3668, %v3667
    %3733 = vmatprep.subr.bf16.mxu0 0
    %3734 = vmatpush1.bf16.msra.mxu0 %v3669
    %3735 = vmatprep.subr.bf16.mxu0 0
    %3736 = vmatpush1.bf16.msra.mxu0 %v3670
    %3737 = vmatprep.subr.bf16.mxu0 0
    %3738 = vmatpush1.bf16.msra.mxu0 %v3671
    %3739 = vmatprep.subr.bf16.mxu0 0
    %3740 = vmatpush1.bf16.msra.mxu0 %v3672
    %3741 = vmatprep.subr.bf16.mxu0 0
    %3742 = vmatpush1.bf16.msra.mxu0 %v3673
    %3743 = vmatprep.subr.bf16.mxu0 0
    %3744 = vmatpush1.bf16.msra.mxu0 %v3674
    %3745 = vmatprep.subr.bf16.mxu0 0
    %3746 = vmatpush1.bf16.msra.mxu0 %v3675
    %3747 = vmatprep.subr.bf16.mxu0 0
    %3748 = vmatpush1.bf16.msra.mxu0 %v3676
    %3749 = vmatprep.subr.bf16.mxu0 0
    %3750 = vmatpush1.bf16.msra.mxu0 %v3677
    %3751 = vmatprep.subr.bf16.mxu0 0
    %3752 = vmatpush1.bf16.msra.mxu0 %v3678
    %3753 = vmatprep.subr.bf16.mxu0 0
    %3754 = vmatpush1.bf16.msra.mxu0 %v3679
    %3755 = vmatprep.subr.bf16.mxu0 0
    %3756 = vmatpush1.bf16.msra.mxu0 %v3680
    %3757 = vmatprep.subr.bf16.mxu0 0
    %3758 = vmatpush1.bf16.msra.mxu0 %v3681
    %3759 = vmatprep.subr.bf16.mxu0 0
    %3760 = vmatpush1.bf16.msra.mxu0 %v3682
    %3761 = vmatprep.subr.bf16.mxu0 0
    %3762 = vmatpush1.bf16.msra.mxu0 %v3683
    %3763 = vmatprep.subr.bf16.mxu0 0
    %3764 = vmatpush1.bf16.msra.mxu0 %v3684
    %3765 = vmatprep.mubr.bf16.mxu0 %v3070
    %3766 = vmatmul.mubr.bf16.gmra.mrb[0].mxu0 %v3069
    %v3767 = vpop.f32.mrb[0].mxu0
    %v3768 = vadd.f32 %v3536, %v3767
    %v3769 = vpop.f32.mrb[0].mxu0
    %v3770 = vpop.f32.mrb[0].mxu0
    %v3771 = vpop.f32.mrb[0].mxu0
    %3772 = vdwg.mxu0
    %3773 = vmatprep.subr.bf16.mxu0 0
    %3774 = vmatpush1.bf16.msra.mxu0 %v3685
    %3775 = vmatprep.subr.bf16.mxu0 0
    %3776 = vmatpush1.bf16.msra.mxu0 %v3686
    %3777 = vmatprep.subr.bf16.mxu0 0
    %3778 = vmatpush1.bf16.msra.mxu0 %v3687
    %3779 = vmatprep.subr.bf16.mxu0 0
    %3780 = vmatpush1.bf16.msra.mxu0 %v3688
    %3781 = vmatprep.subr.bf16.mxu0 0
    %3782 = vmatpush1.bf16.msra.mxu0 %v3689
    %3783 = vmatprep.subr.bf16.mxu0 0
    %3784 = vmatpush1.bf16.msra.mxu0 %v3690
    %3785 = vmatprep.subr.bf16.mxu0 0
    %3786 = vmatpush1.bf16.msra.mxu0 %v3691
    %3787 = vmatprep.subr.bf16.mxu0 0
    %3788 = vmatpush1.bf16.msra.mxu0 %v3692
    %3789 = vmatprep.subr.bf16.mxu0 0
    %3790 = vmatpush1.bf16.msra.mxu0 %v3693
    %3791 = vmatprep.subr.bf16.mxu0 0
    %3792 = vmatpush1.bf16.msra.mxu0 %v3694
    %3793 = vmatprep.subr.bf16.mxu0 0
    %3794 = vmatpush1.bf16.msra.mxu0 %v3695
    %3795 = vmatprep.subr.bf16.mxu0 0
    %3796 = vmatpush1.bf16.msra.mxu0 %v3696
    %3797 = vmatprep.subr.bf16.mxu0 0
    %3798 = vmatpush1.bf16.msra.mxu0 %v3697
    %3799 = vmatprep.subr.bf16.mxu0 0
    %3800 = vmatpush1.bf16.msra.mxu0 %v3698
    %3801 = vmatprep.subr.bf16.mxu0 0
    %3802 = vmatpush1.bf16.msra.mxu0 %v3699
    %3803 = vmatprep.subr.bf16.mxu0 0
    %3804 = vmatpush1.bf16.msra.mxu0 %v3700
    %3805 = vmatprep.mubr.bf16.mxu0 %v3072
    %3806 = vmatmul.mubr.bf16.gmra.mrb[0].mxu0 %v3071
    %v3807 = vpop.f32.mrb[0].mxu0
    %v3808 = vadd.f32 %v3768, %v3807
    %v3809 = vpop.f32.mrb[0].mxu0
    %v3810 = vpop.f32.mrb[0].mxu0
    %v3811 = vpop.f32.mrb[0].mxu0
    %3812 = vdwg.mxu0
    %v3813 = vld [vmem:[%s22] sm:$0x1]
    %v3815 = vlaneseq
    %v3816 = vshrl.u32 %v3815, 7
    %v3817 = vsub.s32 0, %v3816
    %v3818 = vrot.slane %v3813, %v3817
    %v3820 = vadd.f32 %v3808, %v3818
    %v3821 = vmax.f32 %v3820, 0.0
    %v3822 = vpack.c.bf16 %v3821, %v3821
    %v3823 = vld [vmem:[%s23] sm:$0xf]
    %v3824 = vld [vmem:[%s23 + $0x4] sm:$0xf]
    %v3825 = vld [vmem:[%s23 + $0x8] sm:$0xf]
    %v3826 = vld [vmem:[%s23 + $0xc] sm:$0xf]
    %v3827 = vld [vmem:[%s24] sm:$0x1]
    %v3829 = vlaneseq
    %v3830 = vshrl.u32 %v3829, 7
    %v3831 = vsub.s32 0, %v3830
    %v3832 = vrot.slane %v3827, %v3831
    %v3838 = vunpack.c.l.b16 %v3823
    %v3839 = vunpack.c.l.b16 %v3824
    %v3840 = vunpack.c.l.b16 %v3825
    %v3841 = vunpack.c.l.b16 %v3826
    %v3842 = vpack.c.b16 %v3839, %v3838
    %v3843 = vpack.c.b16 %v3841, %v3840
    %v3847 = vsel %vm584, %v3822, 0
    %3849 = vmatprep.subr.bf16.mxu0 0
    %3850 = vmatpush1.bf16.msra.mxu0 %v3842
    %3851 = vmatprep.subr.bf16.mxu0 0
    %3852 = vmatpush1.bf16.msra.mxu0 %v3843
    %3853 = vmatprep.subr.bf16.mxu0 0
    %3854 = vmatpush1.bf16.msra.mxu0 0
    %3855 = vmatprep.subr.bf16.mxu0 0
    %3856 = vmatpush1.bf16.msra.mxu0 0
    %3857 = vmatprep.subr.bf16.mxu0 0
    %3858 = vmatpush1.bf16.msra.mxu0 0
    %3859 = vmatprep.subr.bf16.mxu0 0
    %3860 = vmatpush1.bf16.msra.mxu0 0
    %3861 = vmatprep.subr.bf16.mxu0 0
    %3862 = vmatpush1.bf16.msra.mxu0 0
    %3863 = vmatprep.subr.bf16.mxu0 0
    %3864 = vmatpush1.bf16.msra.mxu0 0
    %3865 = vmatprep.subr.bf16.mxu0 0
    %3866 = vmatpush1.bf16.msra.mxu0 0
    %3867 = vmatprep.subr.bf16.mxu0 0
    %3868 = vmatpush1.bf16.msra.mxu0 0
    %3869 = vmatprep.subr.bf16.mxu0 0
    %3870 = vmatpush1.bf16.msra.mxu0 0
    %3871 = vmatprep.subr.bf16.mxu0 0
    %3872 = vmatpush1.bf16.msra.mxu0 0
    %3873 = vmatprep.subr.bf16.mxu0 0
    %3874 = vmatpush1.bf16.msra.mxu0 0
    %3875 = vmatprep.subr.bf16.mxu0 0
    %3876 = vmatpush1.bf16.msra.mxu0 0
    %3877 = vmatprep.subr.bf16.mxu0 0
    %3878 = vmatpush1.bf16.msra.mxu0 0
    %3879 = vmatprep.subr.bf16.mxu0 0
    %3880 = vmatpush1.bf16.msra.mxu0 0
    %3881 = vmatprep.mubr.bf16.mxu0 0
    %3882 = vmatmul.mubr.bf16.gmra.mrb[0].mxu0 %v3847
    %v3883 = vpop.f32.mrb[0].mxu0
    %v3884 = vadd.f32 %v3832, %v3883
    %v3885 = vpop.f32.mrb[0].mxu0
    %v3886 = vpop.f32.mrb[0].mxu0
    %v3887 = vpop.f32.mrb[0].mxu0
    %3888 = vdwg.mxu0
    %vm3889 = vcmask 17408
    %3890 = vst.msk [vmem:[#allocation4] sm:$0x3] %vm3889, %v3884
    // Predicated region
    $region102: #{nn4snli_forward.1} parent=1 // pred_check
      _
    $region103: #{nn4snli_forward.1} parent=1 // pred_check_branch
      %3892 = sbr.rel (0) target = $region105
    $region104: #{nn4snli_forward.1} parent=1 // pred_region
      %s3894 = ssub.s32 32, 32
      %3895 = vsyncadd [#allocation5], %s3894
      %s3897 = sshll.u32 [#allocation4], 4
      %s3898 = int_to_ptr.vmem [resolvable:$true] %s3897
      %3900 = dma.vmem_to_hbm [thread:$0]  %s3898, 32, %s25, [#allocation5]
    $region105: #{nn4snli_forward.1} parent=1 // pred_fallthru
      _
    // Predicated region
    $region106: #{nn4snli_forward.1} parent=1 // pred_check
      _
    $region107: #{nn4snli_forward.1} parent=1 // pred_check_branch
      %3902 = sbr.rel (0) target = $region109
    $region108: #{nn4snli_forward.1} parent=1 // pred_region
      %3903 = dma.done [#allocation5], 32
    $region109: #{nn4snli_forward.1} parent=1 // pred_fallthru
      _
    %3904 = vsyncpa [#allocation5], 1

</llo_original>
